<compile_context>
chip_gen: v5e
topology: v5e:2x2
jax: 0.10.0
libtpu: 0.0.40
codegen_flags: <defaults>
</compile_context>

<pallas_src>
import functools

import jax
import jax.numpy as jnp
from jax import lax
from jax.experimental import pallas as pl
from jax.experimental.pallas import tpu as pltpu

EPS = 1e-5      # PyTorch default eps for InstanceNorm2d / GroupNorm
EP = 128        # lane-dense padded edge dimension (>= max mesh resolution)


# ----------------------------- fused stage kernel ---------------------------

def _stage_kernel(E, resblocks, has_skip, *refs):
    """One full MeshConvNet stage, fused.

    Inputs (refs):
      x      : (B, C_in, EP)      f32   padded edge features
      A      : (B, 4, EP, EP)     bf16  neighbor gather operators (s,s,d,d)
      w1     : (5, C_out, C_in)   f32   conv1 weights (per symmetric feature)
      w2     : (5, C_out, C_out)  f32   conv2 weights
     [ws     : (5, C_out, C_in)   f32   skip conv weights      (if has_skip)]
     [bs     : (C_out, 1)         f32   skip conv bias         (if has_skip)]
      gn_w   : (C_out, 1)         f32   GroupNorm(1 group) weight
      gn_b   : (C_out, 1)         f32   GroupNorm bias
    Outputs:
      o      : (B, C_out, EP)     f32   stage output (GroupNorm+ReLU applied)
      sq     : (B, 1, EP)         f32   per-edge squared L2 norm, -1 on pad
    """
    if has_skip:
        (x_ref, a_ref, w1_ref, w2_ref, ws_ref, bs_ref,
         gnw_ref, gnb_ref, o_ref, sq_ref) = refs
    else:
        (x_ref, a_ref, w1_ref, w2_ref,
         gnw_ref, gnb_ref, o_ref, sq_ref) = refs
        ws_ref = bs_ref = None

    B, _, Ep = x_ref.shape
    C_out = w1_ref.shape[1]

    lane = lax.broadcasted_iota(jnp.int32, (1, Ep), 1)
    mask = (lane < E).astype(jnp.float32)            # (1, Ep) valid-edge mask
    inv_e = 1.0 / float(E)
    inv_ce = 1.0 / float(C_out * E)

    # Hoist weight loads; cast to bf16 once (MXU-native operands).
    w1 = w1_ref[...].astype(jnp.bfloat16)
    w2 = w2_ref[...].astype(jnp.bfloat16)
    if has_skip:
        ws = ws_ref[...].astype(jnp.bfloat16)
        bs = bs_ref[...]
    gnw = gnw_ref[...]
    gnb = gnb_ref[...]

    def inst_norm(y):
        # nn.InstanceNorm2d(affine=False): per-channel over the E valid edges.
        mu = jnp.sum(y * mask, axis=1, keepdims=True) * inv_e
        d = (y - mu) * mask
        var = jnp.sum(d * d, axis=1, keepdims=True) * inv_e
        return (y - mu) * lax.rsqrt(var + EPS)

    for b in range(B):

        def gather_sym(h_bf16):
            # MeshCNN symmetric neighborhood features of h.  Feature 0 is h
            # itself (equal to h @ I on the valid lanes); features 1-4 are
            # matmuls against precomputed (sum, sum, diff, diff) selection
            # operators, with abs applied to the two difference features.
            sym = [h_bf16]
            for j in range(4):
                s = jnp.dot(h_bf16, a_ref[b, j],
                            preferred_element_type=jnp.float32)
                if j >= 2:
                    s = jnp.abs(s)
                sym.append(s.astype(jnp.bfloat16))
            return sym

        def conv(w, sym):
            # 1x5 mesh conv = sum_j W_j @ sym_j   -> (C_out, Ep), f32 accum.
            y = jnp.dot(w[0], sym[0], preferred_element_type=jnp.float32)
            for j in range(1, 5):
                y = y + jnp.dot(w[j], sym[j],
                                preferred_element_type=jnp.float32)
            return y

        h = x_ref[b]                                      # (C_in, Ep) f32
        for _ in range(resblocks):
            identity = h
            sym_x = gather_sym(h.astype(jnp.bfloat16))
            # conv1 bias omitted: exactly cancelled by non-affine InstanceNorm.
            y = conv(w1, sym_x)
            y = jnp.maximum(inst_norm(y), 0.0)
            sym_y = gather_sym(y.astype(jnp.bfloat16))
            # conv2 bias omitted for the same reason.
            y = inst_norm(conv(w2, sym_y))
            if has_skip:
                identity = conv(ws, sym_x) + bs           # skip bias matters
            h = jnp.maximum(y + identity, 0.0)

        # GroupNorm(num_groups=1, affine=True) over (C_out, E valid) + ReLU.
        mu = jnp.sum(h * mask) * inv_ce
        d = (h - mu) * mask
        var = jnp.sum(d * d) * inv_ce
        g = (h - mu) * lax.rsqrt(var + EPS)
        g = jnp.maximum(g * gnw + gnb, 0.0)
        o_ref[b] = g

        # Per-edge squared norm for the (approximate) MeshPool; pad lanes = -1
        # so top-k never selects them.
        sq = jnp.sum(g * g, axis=0, keepdims=True)        # (1, Ep)
        sq_ref[b] = jnp.where(mask > 0.0, sq, -1.0)


def fused_stage(x, A, p, E, resblocks):
    """x: (B, C_in, EP), A: (B, 4, EP, EP) bf16 -> ((B, C_out, EP), (B, 1, EP))."""
    B, _, Ep = x.shape
    C_out = p["conv1_w"].shape[1]
    has_skip = p["skip_w"] is not None

    kernel = functools.partial(_stage_kernel, int(E), int(resblocks), has_skip)
    inputs = [x, A, p["conv1_w"], p["conv2_w"]]
    if has_skip:
        inputs += [p["skip_w"], p["skip_b"]]
    inputs += [p["gn_w"], p["gn_b"]]

    return pl.pallas_call(
        kernel,
        out_shape=(jax.ShapeDtypeStruct((B, C_out, Ep), jnp.float32),
                   jax.ShapeDtypeStruct((B, 1, Ep), jnp.float32)),
        compiler_params=pltpu.CompilerParams(vmem_limit_bytes=32 * 1024 * 1024),
    )(*inputs)


# ------------------------------- XLA glue -----------------------------------

def build_neighbor_ops(gemm, E, Ep):
    """Precompute per-batch (4, Ep, Ep) gather operators from gemm indices.

    gemm: (B, E, 4) int32 with -1 meaning "no neighbor" (gathers zero).
    With S_k the one-hot selection of the k-th neighbor, the operators are
      A0 = S0+S2, A1 = S1+S3, A2 = S0-S2 (abs in kernel), A3 = S1-S3,
    reproducing MeshCNN's create_GeMM symmetric features (the self feature is
    the activation itself and needs no operator).
    """
    gemm_p = jnp.pad(gemm, ((0, 0), (0, Ep - E), (0, 0)), constant_values=-1)
    g = jnp.transpose(gemm_p, (0, 2, 1))                       # (B, 4, Ep_dst)
    src = jnp.arange(Ep, dtype=gemm.dtype)
    # S[b, k, s, d] = 1 iff gemm[b, d, k] == s  (missing -> all-zero column)
    S = (g[:, :, None, :] == src[None, None, :, None]).astype(jnp.float32)
    A = jnp.stack([S[:, 0] + S[:, 2],
                   S[:, 1] + S[:, 3],
                   S[:, 0] - S[:, 2],
                   S[:, 1] - S[:, 3]], axis=1)                 # (B, 4, Ep, Ep)
    return A.astype(jnp.bfloat16)                              # exact small ints


def mesh_pool(x, sq, target):
    # TODO(synk): true MeshCNN MeshPool is a serial, data-dependent edge
    # collapse (priority queue + union-find over mesh connectivity) with no
    # clean Pallas equivalent; approximated by keeping the `target` edges with
    # largest feature L2 norm (the norms come out of the fused stage kernel).
    _, idx = lax.top_k(sq, target)
    idx = jnp.sort(idx, axis=1)
    return jnp.take_along_axis(x, idx[:, None, :], axis=2)     # (B, C, target)


@functools.partial(jax.jit, static_argnames=("pool_res", "resblocks"))
def mesh_conv_net_forward(params, x, mesh, pool_res, resblocks):
    B, _, E0 = x.shape
    x = jnp.pad(x, ((0, 0), (0, 0), (0, EP - E0)))             # lane-dense 128

    E = E0
    for i, sp in enumerate(params["stages"]):
        E = mesh[i].shape[1]
        A = build_neighbor_ops(mesh[i], E, EP)
        xo, sq = fused_stage(x, A, sp, E, resblocks)
        target = pool_res[i]
        xp = mesh_pool(xo, sq[:, 0, :], target)                # (B, C, target)
        x = jnp.pad(xp, ((0, 0), (0, 0), (0, EP - target)))
        E = target

    # Classifier head kept in plain XLA (global AvgPool1d + fc1 + relu + fc2):
    # far too small to justify its own pallas_call launch.
    feat = jnp.sum(x, axis=2) * (1.0 / float(E))               # pad lanes are 0
    h = jnp.maximum(feat @ params["fc1_wt"] + params["fc1_b"], 0.0)
    return h @ params["fc2_wt"] + params["fc2_b"]


# ------------------------- deterministic parameters -------------------------

def init_params(key, k_list, fc_n, nclasses):
    params = {"stages": []}
    n_stages = len(k_list) - 1
    keys = jax.random.split(key, 6 * n_stages + 4)
    ki = 0

    def nrm(shape):
        nonlocal ki
        out = 0.1 * jax.random.normal(keys[ki], shape, jnp.float32)
        ki += 1
        return out

    def conv_w(c_out, c_in):
        # PyTorch Conv2d(c_in, c_out, kernel_size=(1,5)) weight (c_out,c_in,1,5)
        # stored per symmetric feature as (5, c_out, c_in).
        w4 = nrm((c_out, c_in, 1, 5))
        return jnp.transpose(w4[:, :, 0, :], (2, 0, 1))

    for i in range(n_stages):
        nf0, nf1 = k_list[i], k_list[i + 1]
        stage = {
            # conv1/conv2 biases are intentionally not created: they are
            # exactly cancelled by the non-affine InstanceNorm that follows.
            "conv1_w": conv_w(nf1, nf0),
            "conv2_w": conv_w(nf1, nf1),
            "skip_w": conv_w(nf1, nf0) if nf0 != nf1 else None,
            "skip_b": nrm((nf1, 1)) if nf0 != nf1 else None,
            # GroupNorm affine params (PyTorch init: weight=1, bias=0)
            "gn_w": jnp.ones((nf1, 1), jnp.float32),
            "gn_b": jnp.zeros((nf1, 1), jnp.float32),
        }
        params["stages"].append(stage)

    c_last = k_list[-1]
    params["fc1_wt"] = nrm((fc_n, c_last)).T          # (c_last, fc_n)
    params["fc1_b"] = nrm((fc_n,))
    params["fc2_wt"] = nrm((nclasses, fc_n)).T        # (fc_n, nclasses)
    params["fc2_b"] = nrm((nclasses,))
    return params


# ----------------------------------- main -----------------------------------

if __name__ == "__main__":
    # Module hyper-parameters (small, consistent with MeshConvNet.__init__)
    B = 2
    input_nc = 5
    ncf = [8, 16]
    ninput_edges = 64
    pool_res = [48, 32]
    nclasses = 4
    fc_n = 32
    resblocks = 1          # resblocks=1 keeps channel counts consistent

    k_list = [input_nc] + ncf
    res = [ninput_edges] + pool_res

    key = jax.random.PRNGKey(0)
    kx, kp, *kmesh = jax.random.split(key, 2 + len(ncf))

    x = jax.random.normal(kx, (B, input_nc, ninput_edges), jnp.float32)
    # Synthetic per-stage mesh connectivity: 4 gemm neighbors per edge, -1 = pad.
    mesh = [
        jax.random.randint(kmesh[i], (B, res[i], 4), -1, res[i], dtype=jnp.int32)
        for i in range(len(ncf))
    ]
    params = init_params(kp, k_list, fc_n, nclasses)

    logits = mesh_conv_net_forward(params, x, mesh,
                                   pool_res=tuple(pool_res),
                                   resblocks=resblocks)
    logits = jax.block_until_ready(logits)
    assert logits.shape == (B, nclasses)
    assert logits.dtype == jnp.float32
    assert bool(jnp.all(jnp.isfinite(logits)))
    print("KERNEL_OK")
</pallas_src>

<mosaic_0001>
module attributes {stable_mosaic.version = 11 : i64} {
  func.func @_stage_kernel(%arg0: memref<2x5x128xf32, #tpu.memory_space<vmem>>, %arg1: memref<2x4x128x128xbf16, #tpu.memory_space<vmem>>, %arg2: memref<5x8x5xf32, #tpu.memory_space<vmem>>, %arg3: memref<5x8x8xf32, #tpu.memory_space<vmem>>, %arg4: memref<5x8x5xf32, #tpu.memory_space<vmem>>, %arg5: memref<8x1xf32, #tpu.memory_space<vmem>>, %arg6: memref<8x1xf32, #tpu.memory_space<vmem>>, %arg7: memref<8x1xf32, #tpu.memory_space<vmem>>, %arg8: memref<2x8x128xf32, #tpu.memory_space<vmem>>, %arg9: memref<2x1x128xf32, #tpu.memory_space<vmem>>) attributes {dimension_semantics = [], scalar_prefetch = 0 : i64, scratch_operands = 0 : i64, tpu.core_type = #tpu.core_type<tc>} {
    %0 = tpu.iota {dimensions = array<i32: 1>} : vector<1x128xi32>
    %c64_i32 = arith.constant 64 : i32
    %1 = vector.broadcast %c64_i32 : i32 to vector<1x128xi32>
    %2 = arith.cmpi slt, %0, %1 : vector<1x128xi32>
    %3 = arith.extui %2 : vector<1x128xi1> to vector<1x128xi32>
    %4 = arith.sitofp %3 : vector<1x128xi32> to vector<1x128xf32>
    %c0 = arith.constant 0 : index
    %c0_0 = arith.constant 0 : index
    %c0_1 = arith.constant 0 : index
    %5 = vector.load %arg2[%c0, %c0_0, %c0_1] : memref<5x8x5xf32, #tpu.memory_space<vmem>>, vector<5x8x5xf32>
    %6 = arith.truncf %5 : vector<5x8x5xf32> to vector<5x8x5xbf16>
    %c0_2 = arith.constant 0 : index
    %c0_3 = arith.constant 0 : index
    %c0_4 = arith.constant 0 : index
    %7 = vector.load %arg3[%c0_2, %c0_3, %c0_4] : memref<5x8x8xf32, #tpu.memory_space<vmem>>, vector<5x8x8xf32>
    %8 = arith.truncf %7 : vector<5x8x8xf32> to vector<5x8x8xbf16>
    %c0_5 = arith.constant 0 : index
    %c0_6 = arith.constant 0 : index
    %c0_7 = arith.constant 0 : index
    %9 = vector.load %arg4[%c0_5, %c0_6, %c0_7] : memref<5x8x5xf32, #tpu.memory_space<vmem>>, vector<5x8x5xf32>
    %10 = arith.truncf %9 : vector<5x8x5xf32> to vector<5x8x5xbf16>
    %c0_8 = arith.constant 0 : index
    %c0_9 = arith.constant 0 : index
    %11 = vector.load %arg5[%c0_8, %c0_9] : memref<8x1xf32, #tpu.memory_space<vmem>>, vector<8x1xf32>
    %c0_10 = arith.constant 0 : index
    %c0_11 = arith.constant 0 : index
    %12 = vector.load %arg6[%c0_10, %c0_11] : memref<8x1xf32, #tpu.memory_space<vmem>>, vector<8x1xf32>
    %c0_12 = arith.constant 0 : index
    %c0_13 = arith.constant 0 : index
    %13 = vector.load %arg7[%c0_12, %c0_13] : memref<8x1xf32, #tpu.memory_space<vmem>>, vector<8x1xf32>
    %c0_14 = arith.constant 0 : index
    %c0_15 = arith.constant 0 : index
    %c0_16 = arith.constant 0 : index
    %14 = vector.load %arg0[%c0_14, %c0_15, %c0_16] : memref<2x5x128xf32, #tpu.memory_space<vmem>>, vector<1x5x128xf32>
    %15 = vector.shape_cast %14 : vector<1x5x128xf32> to vector<5x128xf32>
    %16 = arith.truncf %15 : vector<5x128xf32> to vector<5x128xbf16>
    %c0_17 = arith.constant 0 : index
    %c0_18 = arith.constant 0 : index
    %c0_19 = arith.constant 0 : index
    %c0_20 = arith.constant 0 : index
    %17 = vector.load %arg1[%c0_17, %c0_18, %c0_19, %c0_20] : memref<2x4x128x128xbf16, #tpu.memory_space<vmem>>, vector<1x1x128x128xbf16>
    %18 = vector.shape_cast %17 : vector<1x1x128x128xbf16> to vector<128x128xbf16>
    %cst = arith.constant dense<0.000000e+00> : vector<5x128xf32>
    %19 = tpu.matmul %16, %18, %cst {dimension_numbers = #tpu.dot_dimension_numbers<[1], [0], [0], [1], [0, 0, 1, 1], [], []>} : vector<5x128xbf16>, vector<128x128xbf16>, vector<5x128xf32> -> vector<5x128xf32>
    %20 = arith.truncf %19 : vector<5x128xf32> to vector<5x128xbf16>
    %c0_21 = arith.constant 0 : index
    %c1 = arith.constant 1 : index
    %c0_22 = arith.constant 0 : index
    %c0_23 = arith.constant 0 : index
    %21 = vector.load %arg1[%c0_21, %c1, %c0_22, %c0_23] : memref<2x4x128x128xbf16, #tpu.memory_space<vmem>>, vector<1x1x128x128xbf16>
    %22 = vector.shape_cast %21 : vector<1x1x128x128xbf16> to vector<128x128xbf16>
    %cst_24 = arith.constant dense<0.000000e+00> : vector<5x128xf32>
    %23 = tpu.matmul %16, %22, %cst_24 {dimension_numbers = #tpu.dot_dimension_numbers<[1], [0], [0], [1], [0, 0, 1, 1], [], []>} : vector<5x128xbf16>, vector<128x128xbf16>, vector<5x128xf32> -> vector<5x128xf32>
    %24 = arith.truncf %23 : vector<5x128xf32> to vector<5x128xbf16>
    %c0_25 = arith.constant 0 : index
    %c2 = arith.constant 2 : index
    %c0_26 = arith.constant 0 : index
    %c0_27 = arith.constant 0 : index
    %25 = vector.load %arg1[%c0_25, %c2, %c0_26, %c0_27] : memref<2x4x128x128xbf16, #tpu.memory_space<vmem>>, vector<1x1x128x128xbf16>
    %26 = vector.shape_cast %25 : vector<1x1x128x128xbf16> to vector<128x128xbf16>
    %cst_28 = arith.constant dense<0.000000e+00> : vector<5x128xf32>
    %27 = tpu.matmul %16, %26, %cst_28 {dimension_numbers = #tpu.dot_dimension_numbers<[1], [0], [0], [1], [0, 0, 1, 1], [], []>} : vector<5x128xbf16>, vector<128x128xbf16>, vector<5x128xf32> -> vector<5x128xf32>
    %28 = math.absf %27 : vector<5x128xf32>
    %29 = arith.truncf %28 : vector<5x128xf32> to vector<5x128xbf16>
    %c0_29 = arith.constant 0 : index
    %c3 = arith.constant 3 : index
    %c0_30 = arith.constant 0 : index
    %c0_31 = arith.constant 0 : index
    %30 = vector.load %arg1[%c0_29, %c3, %c0_30, %c0_31] : memref<2x4x128x128xbf16, #tpu.memory_space<vmem>>, vector<1x1x128x128xbf16>
    %31 = vector.shape_cast %30 : vector<1x1x128x128xbf16> to vector<128x128xbf16>
    %cst_32 = arith.constant dense<0.000000e+00> : vector<5x128xf32>
    %32 = tpu.matmul %16, %31, %cst_32 {dimension_numbers = #tpu.dot_dimension_numbers<[1], [0], [0], [1], [0, 0, 1, 1], [], []>} : vector<5x128xbf16>, vector<128x128xbf16>, vector<5x128xf32> -> vector<5x128xf32>
    %33 = math.absf %32 : vector<5x128xf32>
    %34 = arith.truncf %33 : vector<5x128xf32> to vector<5x128xbf16>
    %35 = vector.extract_strided_slice %6 {offsets = [0, 0, 0], sizes = [1, 8, 5], strides = [1, 1, 1]} : vector<5x8x5xbf16> to vector<1x8x5xbf16>
    %36 = vector.shape_cast %35 : vector<1x8x5xbf16> to vector<8x5xbf16>
    %cst_33 = arith.constant dense<0.000000e+00> : vector<8x128xf32>
    %37 = tpu.matmul %36, %16, %cst_33 {dimension_numbers = #tpu.dot_dimension_numbers<[1], [0], [0], [1], [0, 0, 1, 1], [], []>} : vector<8x5xbf16>, vector<5x128xbf16>, vector<8x128xf32> -> vector<8x128xf32>
    %38 = vector.extract_strided_slice %6 {offsets = [1, 0, 0], sizes = [1, 8, 5], strides = [1, 1, 1]} : vector<5x8x5xbf16> to vector<1x8x5xbf16>
    %39 = vector.shape_cast %38 : vector<1x8x5xbf16> to vector<8x5xbf16>
    %cst_34 = arith.constant dense<0.000000e+00> : vector<8x128xf32>
    %40 = tpu.matmul %39, %20, %cst_34 {dimension_numbers = #tpu.dot_dimension_numbers<[1], [0], [0], [1], [0, 0, 1, 1], [], []>} : vector<8x5xbf16>, vector<5x128xbf16>, vector<8x128xf32> -> vector<8x128xf32>
    %41 = arith.addf %37, %40 : vector<8x128xf32>
    %42 = vector.extract_strided_slice %6 {offsets = [2, 0, 0], sizes = [1, 8, 5], strides = [1, 1, 1]} : vector<5x8x5xbf16> to vector<1x8x5xbf16>
    %43 = vector.shape_cast %42 : vector<1x8x5xbf16> to vector<8x5xbf16>
    %cst_35 = arith.constant dense<0.000000e+00> : vector<8x128xf32>
    %44 = tpu.matmul %43, %24, %cst_35 {dimension_numbers = #tpu.dot_dimension_numbers<[1], [0], [0], [1], [0, 0, 1, 1], [], []>} : vector<8x5xbf16>, vector<5x128xbf16>, vector<8x128xf32> -> vector<8x128xf32>
    %45 = arith.addf %41, %44 : vector<8x128xf32>
    %46 = vector.extract_strided_slice %6 {offsets = [3, 0, 0], sizes = [1, 8, 5], strides = [1, 1, 1]} : vector<5x8x5xbf16> to vector<1x8x5xbf16>
    %47 = vector.shape_cast %46 : vector<1x8x5xbf16> to vector<8x5xbf16>
    %cst_36 = arith.constant dense<0.000000e+00> : vector<8x128xf32>
    %48 = tpu.matmul %47, %29, %cst_36 {dimension_numbers = #tpu.dot_dimension_numbers<[1], [0], [0], [1], [0, 0, 1, 1], [], []>} : vector<8x5xbf16>, vector<5x128xbf16>, vector<8x128xf32> -> vector<8x128xf32>
    %49 = arith.addf %45, %48 : vector<8x128xf32>
    %50 = vector.extract_strided_slice %6 {offsets = [4, 0, 0], sizes = [1, 8, 5], strides = [1, 1, 1]} : vector<5x8x5xbf16> to vector<1x8x5xbf16>
    %51 = vector.shape_cast %50 : vector<1x8x5xbf16> to vector<8x5xbf16>
    %cst_37 = arith.constant dense<0.000000e+00> : vector<8x128xf32>
    %52 = tpu.matmul %51, %34, %cst_37 {dimension_numbers = #tpu.dot_dimension_numbers<[1], [0], [0], [1], [0, 0, 1, 1], [], []>} : vector<8x5xbf16>, vector<5x128xbf16>, vector<8x128xf32> -> vector<8x128xf32>
    %53 = arith.addf %49, %52 : vector<8x128xf32>
    %54 = vector.broadcast %4 : vector<1x128xf32> to vector<8x128xf32>
    %55 = arith.mulf %53, %54 : vector<8x128xf32>
    %cst_38 = arith.constant dense<0.000000e+00> : vector<8xf32>
    %56 = vector.multi_reduction <add>, %55, %cst_38 [1] : vector<8x128xf32> to vector<8xf32>
    %57 = vector.shape_cast %56 : vector<8xf32> to vector<8x1xf32>
    %cst_39 = arith.constant 1.562500e-02 : f32
    %58 = vector.broadcast %cst_39 : f32 to vector<8x1xf32>
    %59 = arith.mulf %57, %58 : vector<8x1xf32>
    %60 = vector.broadcast %59 : vector<8x1xf32> to vector<8x128xf32>
    %61 = arith.subf %53, %60 : vector<8x128xf32>
    %62 = vector.broadcast %4 : vector<1x128xf32> to vector<8x128xf32>
    %63 = arith.mulf %61, %62 : vector<8x128xf32>
    %64 = arith.mulf %63, %63 : vector<8x128xf32>
    %cst_40 = arith.constant dense<0.000000e+00> : vector<8xf32>
    %65 = vector.multi_reduction <add>, %64, %cst_40 [1] : vector<8x128xf32> to vector<8xf32>
    %66 = vector.shape_cast %65 : vector<8xf32> to vector<8x1xf32>
    %cst_41 = arith.constant 1.562500e-02 : f32
    %67 = vector.broadcast %cst_41 : f32 to vector<8x1xf32>
    %68 = arith.mulf %66, %67 : vector<8x1xf32>
    %69 = vector.broadcast %59 : vector<8x1xf32> to vector<8x128xf32>
    %70 = arith.subf %53, %69 : vector<8x128xf32>
    %cst_42 = arith.constant 9.99999974E-6 : f32
    %71 = vector.broadcast %cst_42 : f32 to vector<8x1xf32>
    %72 = arith.addf %68, %71 : vector<8x1xf32>
    %73 = math.rsqrt %72 : vector<8x1xf32>
    %74 = vector.broadcast %73 : vector<8x1xf32> to vector<8x128xf32>
    %75 = arith.mulf %70, %74 : vector<8x128xf32>
    %cst_43 = arith.constant 0.000000e+00 : f32
    %76 = vector.broadcast %cst_43 : f32 to vector<8x128xf32>
    %77 = arith.maximumf %75, %76 : vector<8x128xf32>
    %78 = arith.truncf %77 : vector<8x128xf32> to vector<8x128xbf16>
    %c0_44 = arith.constant 0 : index
    %c0_45 = arith.constant 0 : index
    %c0_46 = arith.constant 0 : index
    %c0_47 = arith.constant 0 : index
    %79 = vector.load %arg1[%c0_44, %c0_45, %c0_46, %c0_47] : memref<2x4x128x128xbf16, #tpu.memory_space<vmem>>, vector<1x1x128x128xbf16>
    %80 = vector.shape_cast %79 : vector<1x1x128x128xbf16> to vector<128x128xbf16>
    %cst_48 = arith.constant dense<0.000000e+00> : vector<8x128xf32>
    %81 = tpu.matmul %78, %80, %cst_48 {dimension_numbers = #tpu.dot_dimension_numbers<[1], [0], [0], [1], [0, 0, 1, 1], [], []>} : vector<8x128xbf16>, vector<128x128xbf16>, vector<8x128xf32> -> vector<8x128xf32>
    %82 = arith.truncf %81 : vector<8x128xf32> to vector<8x128xbf16>
    %c0_49 = arith.constant 0 : index
    %c1_50 = arith.constant 1 : index
    %c0_51 = arith.constant 0 : index
    %c0_52 = arith.constant 0 : index
    %83 = vector.load %arg1[%c0_49, %c1_50, %c0_51, %c0_52] : memref<2x4x128x128xbf16, #tpu.memory_space<vmem>>, vector<1x1x128x128xbf16>
    %84 = vector.shape_cast %83 : vector<1x1x128x128xbf16> to vector<128x128xbf16>
    %cst_53 = arith.constant dense<0.000000e+00> : vector<8x128xf32>
    %85 = tpu.matmul %78, %84, %cst_53 {dimension_numbers = #tpu.dot_dimension_numbers<[1], [0], [0], [1], [0, 0, 1, 1], [], []>} : vector<8x128xbf16>, vector<128x128xbf16>, vector<8x128xf32> -> vector<8x128xf32>
    %86 = arith.truncf %85 : vector<8x128xf32> to vector<8x128xbf16>
    %c0_54 = arith.constant 0 : index
    %c2_55 = arith.constant 2 : index
    %c0_56 = arith.constant 0 : index
    %c0_57 = arith.constant 0 : index
    %87 = vector.load %arg1[%c0_54, %c2_55, %c0_56, %c0_57] : memref<2x4x128x128xbf16, #tpu.memory_space<vmem>>, vector<1x1x128x128xbf16>
    %88 = vector.shape_cast %87 : vector<1x1x128x128xbf16> to vector<128x128xbf16>
    %cst_58 = arith.constant dense<0.000000e+00> : vector<8x128xf32>
    %89 = tpu.matmul %78, %88, %cst_58 {dimension_numbers = #tpu.dot_dimension_numbers<[1], [0], [0], [1], [0, 0, 1, 1], [], []>} : vector<8x128xbf16>, vector<128x128xbf16>, vector<8x128xf32> -> vector<8x128xf32>
    %90 = math.absf %89 : vector<8x128xf32>
    %91 = arith.truncf %90 : vector<8x128xf32> to vector<8x128xbf16>
    %c0_59 = arith.constant 0 : index
    %c3_60 = arith.constant 3 : index
    %c0_61 = arith.constant 0 : index
    %c0_62 = arith.constant 0 : index
    %92 = vector.load %arg1[%c0_59, %c3_60, %c0_61, %c0_62] : memref<2x4x128x128xbf16, #tpu.memory_space<vmem>>, vector<1x1x128x128xbf16>
    %93 = vector.shape_cast %92 : vector<1x1x128x128xbf16> to vector<128x128xbf16>
    %cst_63 = arith.constant dense<0.000000e+00> : vector<8x128xf32>
    %94 = tpu.matmul %78, %93, %cst_63 {dimension_numbers = #tpu.dot_dimension_numbers<[1], [0], [0], [1], [0, 0, 1, 1], [], []>} : vector<8x128xbf16>, vector<128x128xbf16>, vector<8x128xf32> -> vector<8x128xf32>
    %95 = math.absf %94 : vector<8x128xf32>
    %96 = arith.truncf %95 : vector<8x128xf32> to vector<8x128xbf16>
    %97 = vector.extract_strided_slice %8 {offsets = [0, 0, 0], sizes = [1, 8, 8], strides = [1, 1, 1]} : vector<5x8x8xbf16> to vector<1x8x8xbf16>
    %98 = vector.shape_cast %97 : vector<1x8x8xbf16> to vector<8x8xbf16>
    %cst_64 = arith.constant dense<0.000000e+00> : vector<8x128xf32>
    %99 = tpu.matmul %98, %78, %cst_64 {dimension_numbers = #tpu.dot_dimension_numbers<[1], [0], [0], [1], [0, 0, 1, 1], [], []>} : vector<8x8xbf16>, vector<8x128xbf16>, vector<8x128xf32> -> vector<8x128xf32>
    %100 = vector.extract_strided_slice %8 {offsets = [1, 0, 0], sizes = [1, 8, 8], strides = [1, 1, 1]} : vector<5x8x8xbf16> to vector<1x8x8xbf16>
    %101 = vector.shape_cast %100 : vector<1x8x8xbf16> to vector<8x8xbf16>
    %cst_65 = arith.constant dense<0.000000e+00> : vector<8x128xf32>
    %102 = tpu.matmul %101, %82, %cst_65 {dimension_numbers = #tpu.dot_dimension_numbers<[1], [0], [0], [1], [0, 0, 1, 1], [], []>} : vector<8x8xbf16>, vector<8x128xbf16>, vector<8x128xf32> -> vector<8x128xf32>
    %103 = arith.addf %99, %102 : vector<8x128xf32>
    %104 = vector.extract_strided_slice %8 {offsets = [2, 0, 0], sizes = [1, 8, 8], strides = [1, 1, 1]} : vector<5x8x8xbf16> to vector<1x8x8xbf16>
    %105 = vector.shape_cast %104 : vector<1x8x8xbf16> to vector<8x8xbf16>
    %cst_66 = arith.constant dense<0.000000e+00> : vector<8x128xf32>
    %106 = tpu.matmul %105, %86, %cst_66 {dimension_numbers = #tpu.dot_dimension_numbers<[1], [0], [0], [1], [0, 0, 1, 1], [], []>} : vector<8x8xbf16>, vector<8x128xbf16>, vector<8x128xf32> -> vector<8x128xf32>
    %107 = arith.addf %103, %106 : vector<8x128xf32>
    %108 = vector.extract_strided_slice %8 {offsets = [3, 0, 0], sizes = [1, 8, 8], strides = [1, 1, 1]} : vector<5x8x8xbf16> to vector<1x8x8xbf16>
    %109 = vector.shape_cast %108 : vector<1x8x8xbf16> to vector<8x8xbf16>
    %cst_67 = arith.constant dense<0.000000e+00> : vector<8x128xf32>
    %110 = tpu.matmul %109, %91, %cst_67 {dimension_numbers = #tpu.dot_dimension_numbers<[1], [0], [0], [1], [0, 0, 1, 1], [], []>} : vector<8x8xbf16>, vector<8x128xbf16>, vector<8x128xf32> -> vector<8x128xf32>
    %111 = arith.addf %107, %110 : vector<8x128xf32>
    %112 = vector.extract_strided_slice %8 {offsets = [4, 0, 0], sizes = [1, 8, 8], strides = [1, 1, 1]} : vector<5x8x8xbf16> to vector<1x8x8xbf16>
    %113 = vector.shape_cast %112 : vector<1x8x8xbf16> to vector<8x8xbf16>
    %cst_68 = arith.constant dense<0.000000e+00> : vector<8x128xf32>
    %114 = tpu.matmul %113, %96, %cst_68 {dimension_numbers = #tpu.dot_dimension_numbers<[1], [0], [0], [1], [0, 0, 1, 1], [], []>} : vector<8x8xbf16>, vector<8x128xbf16>, vector<8x128xf32> -> vector<8x128xf32>
    %115 = arith.addf %111, %114 : vector<8x128xf32>
    %116 = vector.broadcast %4 : vector<1x128xf32> to vector<8x128xf32>
    %117 = arith.mulf %115, %116 : vector<8x128xf32>
    %cst_69 = arith.constant dense<0.000000e+00> : vector<8xf32>
    %118 = vector.multi_reduction <add>, %117, %cst_69 [1] : vector<8x128xf32> to vector<8xf32>
    %119 = vector.shape_cast %118 : vector<8xf32> to vector<8x1xf32>
    %cst_70 = arith.constant 1.562500e-02 : f32
    %120 = vector.broadcast %cst_70 : f32 to vector<8x1xf32>
    %121 = arith.mulf %119, %120 : vector<8x1xf32>
    %122 = vector.broadcast %121 : vector<8x1xf32> to vector<8x128xf32>
    %123 = arith.subf %115, %122 : vector<8x128xf32>
    %124 = vector.broadcast %4 : vector<1x128xf32> to vector<8x128xf32>
    %125 = arith.mulf %123, %124 : vector<8x128xf32>
    %126 = arith.mulf %125, %125 : vector<8x128xf32>
    %cst_71 = arith.constant dense<0.000000e+00> : vector<8xf32>
    %127 = vector.multi_reduction <add>, %126, %cst_71 [1] : vector<8x128xf32> to vector<8xf32>
    %128 = vector.shape_cast %127 : vector<8xf32> to vector<8x1xf32>
    %cst_72 = arith.constant 1.562500e-02 : f32
    %129 = vector.broadcast %cst_72 : f32 to vector<8x1xf32>
    %130 = arith.mulf %128, %129 : vector<8x1xf32>
    %131 = vector.broadcast %121 : vector<8x1xf32> to vector<8x128xf32>
    %132 = arith.subf %115, %131 : vector<8x128xf32>
    %cst_73 = arith.constant 9.99999974E-6 : f32
    %133 = vector.broadcast %cst_73 : f32 to vector<8x1xf32>
    %134 = arith.addf %130, %133 : vector<8x1xf32>
    %135 = math.rsqrt %134 : vector<8x1xf32>
    %136 = vector.broadcast %135 : vector<8x1xf32> to vector<8x128xf32>
    %137 = arith.mulf %132, %136 : vector<8x128xf32>
    %138 = vector.extract_strided_slice %10 {offsets = [0, 0, 0], sizes = [1, 8, 5], strides = [1, 1, 1]} : vector<5x8x5xbf16> to vector<1x8x5xbf16>
    %139 = vector.shape_cast %138 : vector<1x8x5xbf16> to vector<8x5xbf16>
    %cst_74 = arith.constant dense<0.000000e+00> : vector<8x128xf32>
    %140 = tpu.matmul %139, %16, %cst_74 {dimension_numbers = #tpu.dot_dimension_numbers<[1], [0], [0], [1], [0, 0, 1, 1], [], []>} : vector<8x5xbf16>, vector<5x128xbf16>, vector<8x128xf32> -> vector<8x128xf32>
    %141 = vector.extract_strided_slice %10 {offsets = [1, 0, 0], sizes = [1, 8, 5], strides = [1, 1, 1]} : vector<5x8x5xbf16> to vector<1x8x5xbf16>
    %142 = vector.shape_cast %141 : vector<1x8x5xbf16> to vector<8x5xbf16>
    %cst_75 = arith.constant dense<0.000000e+00> : vector<8x128xf32>
    %143 = tpu.matmul %142, %20, %cst_75 {dimension_numbers = #tpu.dot_dimension_numbers<[1], [0], [0], [1], [0, 0, 1, 1], [], []>} : vector<8x5xbf16>, vector<5x128xbf16>, vector<8x128xf32> -> vector<8x128xf32>
    %144 = arith.addf %140, %143 : vector<8x128xf32>
    %145 = vector.extract_strided_slice %10 {offsets = [2, 0, 0], sizes = [1, 8, 5], strides = [1, 1, 1]} : vector<5x8x5xbf16> to vector<1x8x5xbf16>
    %146 = vector.shape_cast %145 : vector<1x8x5xbf16> to vector<8x5xbf16>
    %cst_76 = arith.constant dense<0.000000e+00> : vector<8x128xf32>
    %147 = tpu.matmul %146, %24, %cst_76 {dimension_numbers = #tpu.dot_dimension_numbers<[1], [0], [0], [1], [0, 0, 1, 1], [], []>} : vector<8x5xbf16>, vector<5x128xbf16>, vector<8x128xf32> -> vector<8x128xf32>
    %148 = arith.addf %144, %147 : vector<8x128xf32>
    %149 = vector.extract_strided_slice %10 {offsets = [3, 0, 0], sizes = [1, 8, 5], strides = [1, 1, 1]} : vector<5x8x5xbf16> to vector<1x8x5xbf16>
    %150 = vector.shape_cast %149 : vector<1x8x5xbf16> to vector<8x5xbf16>
    %cst_77 = arith.constant dense<0.000000e+00> : vector<8x128xf32>
    %151 = tpu.matmul %150, %29, %cst_77 {dimension_numbers = #tpu.dot_dimension_numbers<[1], [0], [0], [1], [0, 0, 1, 1], [], []>} : vector<8x5xbf16>, vector<5x128xbf16>, vector<8x128xf32> -> vector<8x128xf32>
    %152 = arith.addf %148, %151 : vector<8x128xf32>
    %153 = vector.extract_strided_slice %10 {offsets = [4, 0, 0], sizes = [1, 8, 5], strides = [1, 1, 1]} : vector<5x8x5xbf16> to vector<1x8x5xbf16>
    %154 = vector.shape_cast %153 : vector<1x8x5xbf16> to vector<8x5xbf16>
    %cst_78 = arith.constant dense<0.000000e+00> : vector<8x128xf32>
    %155 = tpu.matmul %154, %34, %cst_78 {dimension_numbers = #tpu.dot_dimension_numbers<[1], [0], [0], [1], [0, 0, 1, 1], [], []>} : vector<8x5xbf16>, vector<5x128xbf16>, vector<8x128xf32> -> vector<8x128xf32>
    %156 = arith.addf %152, %155 : vector<8x128xf32>
    %157 = vector.broadcast %11 : vector<8x1xf32> to vector<8x128xf32>
    %158 = arith.addf %156, %157 : vector<8x128xf32>
    %159 = arith.addf %137, %158 : vector<8x128xf32>
    %cst_79 = arith.constant 0.000000e+00 : f32
    %160 = vector.broadcast %cst_79 : f32 to vector<8x128xf32>
    %161 = arith.maximumf %159, %160 : vector<8x128xf32>
    %162 = vector.broadcast %4 : vector<1x128xf32> to vector<8x128xf32>
    %163 = arith.mulf %161, %162 : vector<8x128xf32>
    %164 = vector.shape_cast %163 : vector<8x128xf32> to vector<1x8x128xf32>
    %cst_80 = arith.constant dense<0.000000e+00> : vector<1xf32>
    %165 = vector.multi_reduction <add>, %164, %cst_80 [1, 2] : vector<1x8x128xf32> to vector<1xf32>
    %166 = vector.shape_cast %165 : vector<1xf32> to vector<1x1x1xf32>
    %167 = vector.extract %166[0, 0, 0] : f32 from vector<1x1x1xf32>
    %cst_81 = arith.constant 0.001953125 : f32
    %168 = arith.mulf %167, %cst_81 : f32
    %169 = vector.broadcast %168 : f32 to vector<8x128xf32>
    %170 = arith.subf %161, %169 : vector<8x128xf32>
    %171 = vector.broadcast %4 : vector<1x128xf32> to vector<8x128xf32>
    %172 = arith.mulf %170, %171 : vector<8x128xf32>
    %173 = arith.mulf %172, %172 : vector<8x128xf32>
    %174 = vector.shape_cast %173 : vector<8x128xf32> to vector<1x8x128xf32>
    %cst_82 = arith.constant dense<0.000000e+00> : vector<1xf32>
    %175 = vector.multi_reduction <add>, %174, %cst_82 [1, 2] : vector<1x8x128xf32> to vector<1xf32>
    %176 = vector.shape_cast %175 : vector<1xf32> to vector<1x1x1xf32>
    %177 = vector.extract %176[0, 0, 0] : f32 from vector<1x1x1xf32>
    %cst_83 = arith.constant 0.001953125 : f32
    %178 = arith.mulf %177, %cst_83 : f32
    %179 = vector.broadcast %168 : f32 to vector<8x128xf32>
    %180 = arith.subf %161, %179 : vector<8x128xf32>
    %cst_84 = arith.constant 9.99999974E-6 : f32
    %181 = arith.addf %178, %cst_84 : f32
    %182 = math.rsqrt %181 : f32
    %183 = vector.broadcast %182 : f32 to vector<8x128xf32>
    %184 = arith.mulf %180, %183 : vector<8x128xf32>
    %185 = vector.broadcast %12 : vector<8x1xf32> to vector<8x128xf32>
    %186 = arith.mulf %184, %185 : vector<8x128xf32>
    %187 = vector.broadcast %13 : vector<8x1xf32> to vector<8x128xf32>
    %188 = arith.addf %186, %187 : vector<8x128xf32>
    %cst_85 = arith.constant 0.000000e+00 : f32
    %189 = vector.broadcast %cst_85 : f32 to vector<8x128xf32>
    %190 = arith.maximumf %188, %189 : vector<8x128xf32>
    %c0_86 = arith.constant 0 : index
    %c0_87 = arith.constant 0 : index
    %c0_88 = arith.constant 0 : index
    %191 = vector.load %arg8[%c0_86, %c0_87, %c0_88] : memref<2x8x128xf32, #tpu.memory_space<vmem>>, vector<1x8x128xf32>
    %192 = vector.shape_cast %191 : vector<1x8x128xf32> to vector<8x128xf32>
    %193 = vector.shape_cast %190 : vector<8x128xf32> to vector<1x8x128xf32>
    tpu.vector_store %arg8[%c0_86, %c0_87, %c0_88], %193 {strides = array<i32>} : memref<2x8x128xf32, #tpu.memory_space<vmem>>, vector<1x8x128xf32>,
    %194 = arith.mulf %190, %190 : vector<8x128xf32>
    %cst_89 = arith.constant dense<0.000000e+00> : vector<128xf32>
    %195 = vector.multi_reduction <add>, %194, %cst_89 [0] : vector<8x128xf32> to vector<128xf32>
    %196 = vector.shape_cast %195 : vector<128xf32> to vector<1x128xf32>
    %cst_90 = arith.constant 0.000000e+00 : f32
    %197 = vector.broadcast %cst_90 : f32 to vector<1x128xf32>
    %198 = arith.cmpf ogt, %4, %197 : vector<1x128xf32>
    %cst_91 = arith.constant -1.000000e+00 : f32
    %199 = vector.broadcast %cst_91 : f32 to vector<1x128xf32>
    %200 = arith.select %198, %196, %199 : vector<1x128xi1>, vector<1x128xf32>
    %c0_92 = arith.constant 0 : index
    %c0_93 = arith.constant 0 : index
    %c0_94 = arith.constant 0 : index
    %201 = vector.load %arg9[%c0_92, %c0_93, %c0_94] : memref<2x1x128xf32, #tpu.memory_space<vmem>>, vector<1x1x128xf32>
    %202 = vector.shape_cast %201 : vector<1x1x128xf32> to vector<1x128xf32>
    %203 = vector.shape_cast %200 : vector<1x128xf32> to vector<1x1x128xf32>
    tpu.vector_store %arg9[%c0_92, %c0_93, %c0_94], %203 {strides = array<i32>} : memref<2x1x128xf32, #tpu.memory_space<vmem>>, vector<1x1x128xf32>,
    %c1_95 = arith.constant 1 : index
    %c0_96 = arith.constant 0 : index
    %c0_97 = arith.constant 0 : index
    %204 = vector.load %arg0[%c1_95, %c0_96, %c0_97] : memref<2x5x128xf32, #tpu.memory_space<vmem>>, vector<1x5x128xf32>
    %205 = vector.shape_cast %204 : vector<1x5x128xf32> to vector<5x128xf32>
    %206 = arith.truncf %205 : vector<5x128xf32> to vector<5x128xbf16>
    %c1_98 = arith.constant 1 : index
    %c0_99 = arith.constant 0 : index
    %c0_100 = arith.constant 0 : index
    %c0_101 = arith.constant 0 : index
    %207 = vector.load %arg1[%c1_98, %c0_99, %c0_100, %c0_101] : memref<2x4x128x128xbf16, #tpu.memory_space<vmem>>, vector<1x1x128x128xbf16>
    %208 = vector.shape_cast %207 : vector<1x1x128x128xbf16> to vector<128x128xbf16>
    %cst_102 = arith.constant dense<0.000000e+00> : vector<5x128xf32>
    %209 = tpu.matmul %206, %208, %cst_102 {dimension_numbers = #tpu.dot_dimension_numbers<[1], [0], [0], [1], [0, 0, 1, 1], [], []>} : vector<5x128xbf16>, vector<128x128xbf16>, vector<5x128xf32> -> vector<5x128xf32>
    %210 = arith.truncf %209 : vector<5x128xf32> to vector<5x128xbf16>
    %c1_103 = arith.constant 1 : index
    %c1_104 = arith.constant 1 : index
    %c0_105 = arith.constant 0 : index
    %c0_106 = arith.constant 0 : index
    %211 = vector.load %arg1[%c1_103, %c1_104, %c0_105, %c0_106] : memref<2x4x128x128xbf16, #tpu.memory_space<vmem>>, vector<1x1x128x128xbf16>
    %212 = vector.shape_cast %211 : vector<1x1x128x128xbf16> to vector<128x128xbf16>
    %cst_107 = arith.constant dense<0.000000e+00> : vector<5x128xf32>
    %213 = tpu.matmul %206, %212, %cst_107 {dimension_numbers = #tpu.dot_dimension_numbers<[1], [0], [0], [1], [0, 0, 1, 1], [], []>} : vector<5x128xbf16>, vector<128x128xbf16>, vector<5x128xf32> -> vector<5x128xf32>
    %214 = arith.truncf %213 : vector<5x128xf32> to vector<5x128xbf16>
    %c1_108 = arith.constant 1 : index
    %c2_109 = arith.constant 2 : index
    %c0_110 = arith.constant 0 : index
    %c0_111 = arith.constant 0 : index
    %215 = vector.load %arg1[%c1_108, %c2_109, %c0_110, %c0_111] : memref<2x4x128x128xbf16, #tpu.memory_space<vmem>>, vector<1x1x128x128xbf16>
    %216 = vector.shape_cast %215 : vector<1x1x128x128xbf16> to vector<128x128xbf16>
    %cst_112 = arith.constant dense<0.000000e+00> : vector<5x128xf32>
    %217 = tpu.matmul %206, %216, %cst_112 {dimension_numbers = #tpu.dot_dimension_numbers<[1], [0], [0], [1], [0, 0, 1, 1], [], []>} : vector<5x128xbf16>, vector<128x128xbf16>, vector<5x128xf32> -> vector<5x128xf32>
    %218 = math.absf %217 : vector<5x128xf32>
    %219 = arith.truncf %218 : vector<5x128xf32> to vector<5x128xbf16>
    %c1_113 = arith.constant 1 : index
    %c3_114 = arith.constant 3 : index
    %c0_115 = arith.constant 0 : index
    %c0_116 = arith.constant 0 : index
    %220 = vector.load %arg1[%c1_113, %c3_114, %c0_115, %c0_116] : memref<2x4x128x128xbf16, #tpu.memory_space<vmem>>, vector<1x1x128x128xbf16>
    %221 = vector.shape_cast %220 : vector<1x1x128x128xbf16> to vector<128x128xbf16>
    %cst_117 = arith.constant dense<0.000000e+00> : vector<5x128xf32>
    %222 = tpu.matmul %206, %221, %cst_117 {dimension_numbers = #tpu.dot_dimension_numbers<[1], [0], [0], [1], [0, 0, 1, 1], [], []>} : vector<5x128xbf16>, vector<128x128xbf16>, vector<5x128xf32> -> vector<5x128xf32>
    %223 = math.absf %222 : vector<5x128xf32>
    %224 = arith.truncf %223 : vector<5x128xf32> to vector<5x128xbf16>
    %225 = vector.extract_strided_slice %6 {offsets = [0, 0, 0], sizes = [1, 8, 5], strides = [1, 1, 1]} : vector<5x8x5xbf16> to vector<1x8x5xbf16>
    %226 = vector.shape_cast %225 : vector<1x8x5xbf16> to vector<8x5xbf16>
    %cst_118 = arith.constant dense<0.000000e+00> : vector<8x128xf32>
    %227 = tpu.matmul %226, %206, %cst_118 {dimension_numbers = #tpu.dot_dimension_numbers<[1], [0], [0], [1], [0, 0, 1, 1], [], []>} : vector<8x5xbf16>, vector<5x128xbf16>, vector<8x128xf32> -> vector<8x128xf32>
    %228 = vector.extract_strided_slice %6 {offsets = [1, 0, 0], sizes = [1, 8, 5], strides = [1, 1, 1]} : vector<5x8x5xbf16> to vector<1x8x5xbf16>
    %229 = vector.shape_cast %228 : vector<1x8x5xbf16> to vector<8x5xbf16>
    %cst_119 = arith.constant dense<0.000000e+00> : vector<8x128xf32>
    %230 = tpu.matmul %229, %210, %cst_119 {dimension_numbers = #tpu.dot_dimension_numbers<[1], [0], [0], [1], [0, 0, 1, 1], [], []>} : vector<8x5xbf16>, vector<5x128xbf16>, vector<8x128xf32> -> vector<8x128xf32>
    %231 = arith.addf %227, %230 : vector<8x128xf32>
    %232 = vector.extract_strided_slice %6 {offsets = [2, 0, 0], sizes = [1, 8, 5], strides = [1, 1, 1]} : vector<5x8x5xbf16> to vector<1x8x5xbf16>
    %233 = vector.shape_cast %232 : vector<1x8x5xbf16> to vector<8x5xbf16>
    %cst_120 = arith.constant dense<0.000000e+00> : vector<8x128xf32>
    %234 = tpu.matmul %233, %214, %cst_120 {dimension_numbers = #tpu.dot_dimension_numbers<[1], [0], [0], [1], [0, 0, 1, 1], [], []>} : vector<8x5xbf16>, vector<5x128xbf16>, vector<8x128xf32> -> vector<8x128xf32>
    %235 = arith.addf %231, %234 : vector<8x128xf32>
    %236 = vector.extract_strided_slice %6 {offsets = [3, 0, 0], sizes = [1, 8, 5], strides = [1, 1, 1]} : vector<5x8x5xbf16> to vector<1x8x5xbf16>
    %237 = vector.shape_cast %236 : vector<1x8x5xbf16> to vector<8x5xbf16>
    %cst_121 = arith.constant dense<0.000000e+00> : vector<8x128xf32>
    %238 = tpu.matmul %237, %219, %cst_121 {dimension_numbers = #tpu.dot_dimension_numbers<[1], [0], [0], [1], [0, 0, 1, 1], [], []>} : vector<8x5xbf16>, vector<5x128xbf16>, vector<8x128xf32> -> vector<8x128xf32>
    %239 = arith.addf %235, %238 : vector<8x128xf32>
    %240 = vector.extract_strided_slice %6 {offsets = [4, 0, 0], sizes = [1, 8, 5], strides = [1, 1, 1]} : vector<5x8x5xbf16> to vector<1x8x5xbf16>
    %241 = vector.shape_cast %240 : vector<1x8x5xbf16> to vector<8x5xbf16>
    %cst_122 = arith.constant dense<0.000000e+00> : vector<8x128xf32>
    %242 = tpu.matmul %241, %224, %cst_122 {dimension_numbers = #tpu.dot_dimension_numbers<[1], [0], [0], [1], [0, 0, 1, 1], [], []>} : vector<8x5xbf16>, vector<5x128xbf16>, vector<8x128xf32> -> vector<8x128xf32>
    %243 = arith.addf %239, %242 : vector<8x128xf32>
    %244 = vector.broadcast %4 : vector<1x128xf32> to vector<8x128xf32>
    %245 = arith.mulf %243, %244 : vector<8x128xf32>
    %cst_123 = arith.constant dense<0.000000e+00> : vector<8xf32>
    %246 = vector.multi_reduction <add>, %245, %cst_123 [1] : vector<8x128xf32> to vector<8xf32>
    %247 = vector.shape_cast %246 : vector<8xf32> to vector<8x1xf32>
    %cst_124 = arith.constant 1.562500e-02 : f32
    %248 = vector.broadcast %cst_124 : f32 to vector<8x1xf32>
    %249 = arith.mulf %247, %248 : vector<8x1xf32>
    %250 = vector.broadcast %249 : vector<8x1xf32> to vector<8x128xf32>
    %251 = arith.subf %243, %250 : vector<8x128xf32>
    %252 = vector.broadcast %4 : vector<1x128xf32> to vector<8x128xf32>
    %253 = arith.mulf %251, %252 : vector<8x128xf32>
    %254 = arith.mulf %253, %253 : vector<8x128xf32>
    %cst_125 = arith.constant dense<0.000000e+00> : vector<8xf32>
    %255 = vector.multi_reduction <add>, %254, %cst_125 [1] : vector<8x128xf32> to vector<8xf32>
    %256 = vector.shape_cast %255 : vector<8xf32> to vector<8x1xf32>
    %cst_126 = arith.constant 1.562500e-02 : f32
    %257 = vector.broadcast %cst_126 : f32 to vector<8x1xf32>
    %258 = arith.mulf %256, %257 : vector<8x1xf32>
    %259 = vector.broadcast %249 : vector<8x1xf32> to vector<8x128xf32>
    %260 = arith.subf %243, %259 : vector<8x128xf32>
    %cst_127 = arith.constant 9.99999974E-6 : f32
    %261 = vector.broadcast %cst_127 : f32 to vector<8x1xf32>
    %262 = arith.addf %258, %261 : vector<8x1xf32>
    %263 = math.rsqrt %262 : vector<8x1xf32>
    %264 = vector.broadcast %263 : vector<8x1xf32> to vector<8x128xf32>
    %265 = arith.mulf %260, %264 : vector<8x128xf32>
    %cst_128 = arith.constant 0.000000e+00 : f32
    %266 = vector.broadcast %cst_128 : f32 to vector<8x128xf32>
    %267 = arith.maximumf %265, %266 : vector<8x128xf32>
    %268 = arith.truncf %267 : vector<8x128xf32> to vector<8x128xbf16>
    %c1_129 = arith.constant 1 : index
    %c0_130 = arith.constant 0 : index
    %c0_131 = arith.constant 0 : index
    %c0_132 = arith.constant 0 : index
    %269 = vector.load %arg1[%c1_129, %c0_130, %c0_131, %c0_132] : memref<2x4x128x128xbf16, #tpu.memory_space<vmem>>, vector<1x1x128x128xbf16>
    %270 = vector.shape_cast %269 : vector<1x1x128x128xbf16> to vector<128x128xbf16>
    %cst_133 = arith.constant dense<0.000000e+00> : vector<8x128xf32>
    %271 = tpu.matmul %268, %270, %cst_133 {dimension_numbers = #tpu.dot_dimension_numbers<[1], [0], [0], [1], [0, 0, 1, 1], [], []>} : vector<8x128xbf16>, vector<128x128xbf16>, vector<8x128xf32> -> vector<8x128xf32>
    %272 = arith.truncf %271 : vector<8x128xf32> to vector<8x128xbf16>
    %c1_134 = arith.constant 1 : index
    %c1_135 = arith.constant 1 : index
    %c0_136 = arith.constant 0 : index
    %c0_137 = arith.constant 0 : index
    %273 = vector.load %arg1[%c1_134, %c1_135, %c0_136, %c0_137] : memref<2x4x128x128xbf16, #tpu.memory_space<vmem>>, vector<1x1x128x128xbf16>
    %274 = vector.shape_cast %273 : vector<1x1x128x128xbf16> to vector<128x128xbf16>
    %cst_138 = arith.constant dense<0.000000e+00> : vector<8x128xf32>
    %275 = tpu.matmul %268, %274, %cst_138 {dimension_numbers = #tpu.dot_dimension_numbers<[1], [0], [0], [1], [0, 0, 1, 1], [], []>} : vector<8x128xbf16>, vector<128x128xbf16>, vector<8x128xf32> -> vector<8x128xf32>
    %276 = arith.truncf %275 : vector<8x128xf32> to vector<8x128xbf16>
    %c1_139 = arith.constant 1 : index
    %c2_140 = arith.constant 2 : index
    %c0_141 = arith.constant 0 : index
    %c0_142 = arith.constant 0 : index
    %277 = vector.load %arg1[%c1_139, %c2_140, %c0_141, %c0_142] : memref<2x4x128x128xbf16, #tpu.memory_space<vmem>>, vector<1x1x128x128xbf16>
    %278 = vector.shape_cast %277 : vector<1x1x128x128xbf16> to vector<128x128xbf16>
    %cst_143 = arith.constant dense<0.000000e+00> : vector<8x128xf32>
    %279 = tpu.matmul %268, %278, %cst_143 {dimension_numbers = #tpu.dot_dimension_numbers<[1], [0], [0], [1], [0, 0, 1, 1], [], []>} : vector<8x128xbf16>, vector<128x128xbf16>, vector<8x128xf32> -> vector<8x128xf32>
    %280 = math.absf %279 : vector<8x128xf32>
    %281 = arith.truncf %280 : vector<8x128xf32> to vector<8x128xbf16>
    %c1_144 = arith.constant 1 : index
    %c3_145 = arith.constant 3 : index
    %c0_146 = arith.constant 0 : index
    %c0_147 = arith.constant 0 : index
    %282 = vector.load %arg1[%c1_144, %c3_145, %c0_146, %c0_147] : memref<2x4x128x128xbf16, #tpu.memory_space<vmem>>, vector<1x1x128x128xbf16>
    %283 = vector.shape_cast %282 : vector<1x1x128x128xbf16> to vector<128x128xbf16>
    %cst_148 = arith.constant dense<0.000000e+00> : vector<8x128xf32>
    %284 = tpu.matmul %268, %283, %cst_148 {dimension_numbers = #tpu.dot_dimension_numbers<[1], [0], [0], [1], [0, 0, 1, 1], [], []>} : vector<8x128xbf16>, vector<128x128xbf16>, vector<8x128xf32> -> vector<8x128xf32>
    %285 = math.absf %284 : vector<8x128xf32>
    %286 = arith.truncf %285 : vector<8x128xf32> to vector<8x128xbf16>
    %287 = vector.extract_strided_slice %8 {offsets = [0, 0, 0], sizes = [1, 8, 8], strides = [1, 1, 1]} : vector<5x8x8xbf16> to vector<1x8x8xbf16>
    %288 = vector.shape_cast %287 : vector<1x8x8xbf16> to vector<8x8xbf16>
    %cst_149 = arith.constant dense<0.000000e+00> : vector<8x128xf32>
    %289 = tpu.matmul %288, %268, %cst_149 {dimension_numbers = #tpu.dot_dimension_numbers<[1], [0], [0], [1], [0, 0, 1, 1], [], []>} : vector<8x8xbf16>, vector<8x128xbf16>, vector<8x128xf32> -> vector<8x128xf32>
    %290 = vector.extract_strided_slice %8 {offsets = [1, 0, 0], sizes = [1, 8, 8], strides = [1, 1, 1]} : vector<5x8x8xbf16> to vector<1x8x8xbf16>
    %291 = vector.shape_cast %290 : vector<1x8x8xbf16> to vector<8x8xbf16>
    %cst_150 = arith.constant dense<0.000000e+00> : vector<8x128xf32>
    %292 = tpu.matmul %291, %272, %cst_150 {dimension_numbers = #tpu.dot_dimension_numbers<[1], [0], [0], [1], [0, 0, 1, 1], [], []>} : vector<8x8xbf16>, vector<8x128xbf16>, vector<8x128xf32> -> vector<8x128xf32>
    %293 = arith.addf %289, %292 : vector<8x128xf32>
    %294 = vector.extract_strided_slice %8 {offsets = [2, 0, 0], sizes = [1, 8, 8], strides = [1, 1, 1]} : vector<5x8x8xbf16> to vector<1x8x8xbf16>
    %295 = vector.shape_cast %294 : vector<1x8x8xbf16> to vector<8x8xbf16>
    %cst_151 = arith.constant dense<0.000000e+00> : vector<8x128xf32>
    %296 = tpu.matmul %295, %276, %cst_151 {dimension_numbers = #tpu.dot_dimension_numbers<[1], [0], [0], [1], [0, 0, 1, 1], [], []>} : vector<8x8xbf16>, vector<8x128xbf16>, vector<8x128xf32> -> vector<8x128xf32>
    %297 = arith.addf %293, %296 : vector<8x128xf32>
    %298 = vector.extract_strided_slice %8 {offsets = [3, 0, 0], sizes = [1, 8, 8], strides = [1, 1, 1]} : vector<5x8x8xbf16> to vector<1x8x8xbf16>
    %299 = vector.shape_cast %298 : vector<1x8x8xbf16> to vector<8x8xbf16>
    %cst_152 = arith.constant dense<0.000000e+00> : vector<8x128xf32>
    %300 = tpu.matmul %299, %281, %cst_152 {dimension_numbers = #tpu.dot_dimension_numbers<[1], [0], [0], [1], [0, 0, 1, 1], [], []>} : vector<8x8xbf16>, vector<8x128xbf16>, vector<8x128xf32> -> vector<8x128xf32>
    %301 = arith.addf %297, %300 : vector<8x128xf32>
    %302 = vector.extract_strided_slice %8 {offsets = [4, 0, 0], sizes = [1, 8, 8], strides = [1, 1, 1]} : vector<5x8x8xbf16> to vector<1x8x8xbf16>
    %303 = vector.shape_cast %302 : vector<1x8x8xbf16> to vector<8x8xbf16>
    %cst_153 = arith.constant dense<0.000000e+00> : vector<8x128xf32>
    %304 = tpu.matmul %303, %286, %cst_153 {dimension_numbers = #tpu.dot_dimension_numbers<[1], [0], [0], [1], [0, 0, 1, 1], [], []>} : vector<8x8xbf16>, vector<8x128xbf16>, vector<8x128xf32> -> vector<8x128xf32>
    %305 = arith.addf %301, %304 : vector<8x128xf32>
    %306 = vector.broadcast %4 : vector<1x128xf32> to vector<8x128xf32>
    %307 = arith.mulf %305, %306 : vector<8x128xf32>
    %cst_154 = arith.constant dense<0.000000e+00> : vector<8xf32>
    %308 = vector.multi_reduction <add>, %307, %cst_154 [1] : vector<8x128xf32> to vector<8xf32>
    %309 = vector.shape_cast %308 : vector<8xf32> to vector<8x1xf32>
    %cst_155 = arith.constant 1.562500e-02 : f32
    %310 = vector.broadcast %cst_155 : f32 to vector<8x1xf32>
    %311 = arith.mulf %309, %310 : vector<8x1xf32>
    %312 = vector.broadcast %311 : vector<8x1xf32> to vector<8x128xf32>
    %313 = arith.subf %305, %312 : vector<8x128xf32>
    %314 = vector.broadcast %4 : vector<1x128xf32> to vector<8x128xf32>
    %315 = arith.mulf %313, %314 : vector<8x128xf32>
    %316 = arith.mulf %315, %315 : vector<8x128xf32>
    %cst_156 = arith.constant dense<0.000000e+00> : vector<8xf32>
    %317 = vector.multi_reduction <add>, %316, %cst_156 [1] : vector<8x128xf32> to vector<8xf32>
    %318 = vector.shape_cast %317 : vector<8xf32> to vector<8x1xf32>
    %cst_157 = arith.constant 1.562500e-02 : f32
    %319 = vector.broadcast %cst_157 : f32 to vector<8x1xf32>
    %320 = arith.mulf %318, %319 : vector<8x1xf32>
    %321 = vector.broadcast %311 : vector<8x1xf32> to vector<8x128xf32>
    %322 = arith.subf %305, %321 : vector<8x128xf32>
    %cst_158 = arith.constant 9.99999974E-6 : f32
    %323 = vector.broadcast %cst_158 : f32 to vector<8x1xf32>
    %324 = arith.addf %320, %323 : vector<8x1xf32>
    %325 = math.rsqrt %324 : vector<8x1xf32>
    %326 = vector.broadcast %325 : vector<8x1xf32> to vector<8x128xf32>
    %327 = arith.mulf %322, %326 : vector<8x128xf32>
    %328 = vector.extract_strided_slice %10 {offsets = [0, 0, 0], sizes = [1, 8, 5], strides = [1, 1, 1]} : vector<5x8x5xbf16> to vector<1x8x5xbf16>
    %329 = vector.shape_cast %328 : vector<1x8x5xbf16> to vector<8x5xbf16>
    %cst_159 = arith.constant dense<0.000000e+00> : vector<8x128xf32>
    %330 = tpu.matmul %329, %206, %cst_159 {dimension_numbers = #tpu.dot_dimension_numbers<[1], [0], [0], [1], [0, 0, 1, 1], [], []>} : vector<8x5xbf16>, vector<5x128xbf16>, vector<8x128xf32> -> vector<8x128xf32>
    %331 = vector.extract_strided_slice %10 {offsets = [1, 0, 0], sizes = [1, 8, 5], strides = [1, 1, 1]} : vector<5x8x5xbf16> to vector<1x8x5xbf16>
    %332 = vector.shape_cast %331 : vector<1x8x5xbf16> to vector<8x5xbf16>
    %cst_160 = arith.constant dense<0.000000e+00> : vector<8x128xf32>
    %333 = tpu.matmul %332, %210, %cst_160 {dimension_numbers = #tpu.dot_dimension_numbers<[1], [0], [0], [1], [0, 0, 1, 1], [], []>} : vector<8x5xbf16>, vector<5x128xbf16>, vector<8x128xf32> -> vector<8x128xf32>
    %334 = arith.addf %330, %333 : vector<8x128xf32>
    %335 = vector.extract_strided_slice %10 {offsets = [2, 0, 0], sizes = [1, 8, 5], strides = [1, 1, 1]} : vector<5x8x5xbf16> to vector<1x8x5xbf16>
    %336 = vector.shape_cast %335 : vector<1x8x5xbf16> to vector<8x5xbf16>
    %cst_161 = arith.constant dense<0.000000e+00> : vector<8x128xf32>
    %337 = tpu.matmul %336, %214, %cst_161 {dimension_numbers = #tpu.dot_dimension_numbers<[1], [0], [0], [1], [0, 0, 1, 1], [], []>} : vector<8x5xbf16>, vector<5x128xbf16>, vector<8x128xf32> -> vector<8x128xf32>
    %338 = arith.addf %334, %337 : vector<8x128xf32>
    %339 = vector.extract_strided_slice %10 {offsets = [3, 0, 0], sizes = [1, 8, 5], strides = [1, 1, 1]} : vector<5x8x5xbf16> to vector<1x8x5xbf16>
    %340 = vector.shape_cast %339 : vector<1x8x5xbf16> to vector<8x5xbf16>
    %cst_162 = arith.constant dense<0.000000e+00> : vector<8x128xf32>
    %341 = tpu.matmul %340, %219, %cst_162 {dimension_numbers = #tpu.dot_dimension_numbers<[1], [0], [0], [1], [0, 0, 1, 1], [], []>} : vector<8x5xbf16>, vector<5x128xbf16>, vector<8x128xf32> -> vector<8x128xf32>
    %342 = arith.addf %338, %341 : vector<8x128xf32>
    %343 = vector.extract_strided_slice %10 {offsets = [4, 0, 0], sizes = [1, 8, 5], strides = [1, 1, 1]} : vector<5x8x5xbf16> to vector<1x8x5xbf16>
    %344 = vector.shape_cast %343 : vector<1x8x5xbf16> to vector<8x5xbf16>
    %cst_163 = arith.constant dense<0.000000e+00> : vector<8x128xf32>
    %345 = tpu.matmul %344, %224, %cst_163 {dimension_numbers = #tpu.dot_dimension_numbers<[1], [0], [0], [1], [0, 0, 1, 1], [], []>} : vector<8x5xbf16>, vector<5x128xbf16>, vector<8x128xf32> -> vector<8x128xf32>
    %346 = arith.addf %342, %345 : vector<8x128xf32>
    %347 = vector.broadcast %11 : vector<8x1xf32> to vector<8x128xf32>
    %348 = arith.addf %346, %347 : vector<8x128xf32>
    %349 = arith.addf %327, %348 : vector<8x128xf32>
    %cst_164 = arith.constant 0.000000e+00 : f32
    %350 = vector.broadcast %cst_164 : f32 to vector<8x128xf32>
    %351 = arith.maximumf %349, %350 : vector<8x128xf32>
    %352 = vector.broadcast %4 : vector<1x128xf32> to vector<8x128xf32>
    %353 = arith.mulf %351, %352 : vector<8x128xf32>
    %354 = vector.shape_cast %353 : vector<8x128xf32> to vector<1x8x128xf32>
    %cst_165 = arith.constant dense<0.000000e+00> : vector<1xf32>
    %355 = vector.multi_reduction <add>, %354, %cst_165 [1, 2] : vector<1x8x128xf32> to vector<1xf32>
    %356 = vector.shape_cast %355 : vector<1xf32> to vector<1x1x1xf32>
    %357 = vector.extract %356[0, 0, 0] : f32 from vector<1x1x1xf32>
    %cst_166 = arith.constant 0.001953125 : f32
    %358 = arith.mulf %357, %cst_166 : f32
    %359 = vector.broadcast %358 : f32 to vector<8x128xf32>
    %360 = arith.subf %351, %359 : vector<8x128xf32>
    %361 = vector.broadcast %4 : vector<1x128xf32> to vector<8x128xf32>
    %362 = arith.mulf %360, %361 : vector<8x128xf32>
    %363 = arith.mulf %362, %362 : vector<8x128xf32>
    %364 = vector.shape_cast %363 : vector<8x128xf32> to vector<1x8x128xf32>
    %cst_167 = arith.constant dense<0.000000e+00> : vector<1xf32>
    %365 = vector.multi_reduction <add>, %364, %cst_167 [1, 2] : vector<1x8x128xf32> to vector<1xf32>
    %366 = vector.shape_cast %365 : vector<1xf32> to vector<1x1x1xf32>
    %367 = vector.extract %366[0, 0, 0] : f32 from vector<1x1x1xf32>
    %cst_168 = arith.constant 0.001953125 : f32
    %368 = arith.mulf %367, %cst_168 : f32
    %369 = vector.broadcast %358 : f32 to vector<8x128xf32>
    %370 = arith.subf %351, %369 : vector<8x128xf32>
    %cst_169 = arith.constant 9.99999974E-6 : f32
    %371 = arith.addf %368, %cst_169 : f32
    %372 = math.rsqrt %371 : f32
    %373 = vector.broadcast %372 : f32 to vector<8x128xf32>
    %374 = arith.mulf %370, %373 : vector<8x128xf32>
    %375 = vector.broadcast %12 : vector<8x1xf32> to vector<8x128xf32>
    %376 = arith.mulf %374, %375 : vector<8x128xf32>
    %377 = vector.broadcast %13 : vector<8x1xf32> to vector<8x128xf32>
    %378 = arith.addf %376, %377 : vector<8x128xf32>
    %cst_170 = arith.constant 0.000000e+00 : f32
    %379 = vector.broadcast %cst_170 : f32 to vector<8x128xf32>
    %380 = arith.maximumf %378, %379 : vector<8x128xf32>
    %c1_171 = arith.constant 1 : index
    %c0_172 = arith.constant 0 : index
    %c0_173 = arith.constant 0 : index
    %381 = vector.load %arg8[%c1_171, %c0_172, %c0_173] : memref<2x8x128xf32, #tpu.memory_space<vmem>>, vector<1x8x128xf32>
    %382 = vector.shape_cast %381 : vector<1x8x128xf32> to vector<8x128xf32>
    %383 = vector.shape_cast %380 : vector<8x128xf32> to vector<1x8x128xf32>
    tpu.vector_store %arg8[%c1_171, %c0_172, %c0_173], %383 {strides = array<i32>} : memref<2x8x128xf32, #tpu.memory_space<vmem>>, vector<1x8x128xf32>,
    %384 = arith.mulf %380, %380 : vector<8x128xf32>
    %cst_174 = arith.constant dense<0.000000e+00> : vector<128xf32>
    %385 = vector.multi_reduction <add>, %384, %cst_174 [0] : vector<8x128xf32> to vector<128xf32>
    %386 = vector.shape_cast %385 : vector<128xf32> to vector<1x128xf32>
    %cst_175 = arith.constant 0.000000e+00 : f32
    %387 = vector.broadcast %cst_175 : f32 to vector<1x128xf32>
    %388 = arith.cmpf ogt, %4, %387 : vector<1x128xf32>
    %cst_176 = arith.constant -1.000000e+00 : f32
    %389 = vector.broadcast %cst_176 : f32 to vector<1x128xf32>
    %390 = arith.select %388, %386, %389 : vector<1x128xi1>, vector<1x128xf32>
    %c1_177 = arith.constant 1 : index
    %c0_178 = arith.constant 0 : index
    %c0_179 = arith.constant 0 : index
    %391 = vector.load %arg9[%c1_177, %c0_178, %c0_179] : memref<2x1x128xf32, #tpu.memory_space<vmem>>, vector<1x1x128xf32>
    %392 = vector.shape_cast %391 : vector<1x1x128xf32> to vector<1x128xf32>
    %393 = vector.shape_cast %390 : vector<1x128xf32> to vector<1x1x128xf32>
    tpu.vector_store %arg9[%c1_177, %c0_178, %c0_179], %393 {strides = array<i32>} : memref<2x1x128xf32, #tpu.memory_space<vmem>>, vector<1x1x128xf32>,
    return
  }
}

module attributes {stable_mosaic.version = 11 : i64} {
  func.func @_stage_kernel(%arg0: memref<2x8x128xf32, #tpu.memory_space<vmem>>, %arg1: memref<2x4x128x128xbf16, #tpu.memory_space<vmem>>, %arg2: memref<5x16x8xf32, #tpu.memory_space<vmem>>, %arg3: memref<5x16x16xf32, #tpu.memory_space<vmem>>, %arg4: memref<5x16x8xf32, #tpu.memory_space<vmem>>, %arg5: memref<16x1xf32, #tpu.memory_space<vmem>>, %arg6: memref<16x1xf32, #tpu.memory_space<vmem>>, %arg7: memref<16x1xf32, #tpu.memory_space<vmem>>, %arg8: memref<2x16x128xf32, #tpu.memory_space<vmem>>, %arg9: memref<2x1x128xf32, #tpu.memory_space<vmem>>) attributes {dimension_semantics = [], scalar_prefetch = 0 : i64, scratch_operands = 0 : i64, tpu.core_type = #tpu.core_type<tc>} {
    %0 = tpu.iota {dimensions = array<i32: 1>} : vector<1x128xi32>
    %c48_i32 = arith.constant 48 : i32
    %1 = vector.broadcast %c48_i32 : i32 to vector<1x128xi32>
    %2 = arith.cmpi slt, %0, %1 : vector<1x128xi32>
    %3 = arith.extui %2 : vector<1x128xi1> to vector<1x128xi32>
    %4 = arith.sitofp %3 : vector<1x128xi32> to vector<1x128xf32>
    %c0 = arith.constant 0 : index
    %c0_0 = arith.constant 0 : index
    %c0_1 = arith.constant 0 : index
    %5 = vector.load %arg2[%c0, %c0_0, %c0_1] : memref<5x16x8xf32, #tpu.memory_space<vmem>>, vector<5x16x8xf32>
    %6 = arith.truncf %5 : vector<5x16x8xf32> to vector<5x16x8xbf16>
    %c0_2 = arith.constant 0 : index
    %c0_3 = arith.constant 0 : index
    %c0_4 = arith.constant 0 : index
    %7 = vector.load %arg3[%c0_2, %c0_3, %c0_4] : memref<5x16x16xf32, #tpu.memory_space<vmem>>, vector<5x16x16xf32>
    %8 = arith.truncf %7 : vector<5x16x16xf32> to vector<5x16x16xbf16>
    %c0_5 = arith.constant 0 : index
    %c0_6 = arith.constant 0 : index
    %c0_7 = arith.constant 0 : index
    %9 = vector.load %arg4[%c0_5, %c0_6, %c0_7] : memref<5x16x8xf32, #tpu.memory_space<vmem>>, vector<5x16x8xf32>
    %10 = arith.truncf %9 : vector<5x16x8xf32> to vector<5x16x8xbf16>
    %c0_8 = arith.constant 0 : index
    %c0_9 = arith.constant 0 : index
    %11 = vector.load %arg5[%c0_8, %c0_9] : memref<16x1xf32, #tpu.memory_space<vmem>>, vector<16x1xf32>
    %c0_10 = arith.constant 0 : index
    %c0_11 = arith.constant 0 : index
    %12 = vector.load %arg6[%c0_10, %c0_11] : memref<16x1xf32, #tpu.memory_space<vmem>>, vector<16x1xf32>
    %c0_12 = arith.constant 0 : index
    %c0_13 = arith.constant 0 : index
    %13 = vector.load %arg7[%c0_12, %c0_13] : memref<16x1xf32, #tpu.memory_space<vmem>>, vector<16x1xf32>
    %c0_14 = arith.constant 0 : index
    %c0_15 = arith.constant 0 : index
    %c0_16 = arith.constant 0 : index
    %14 = vector.load %arg0[%c0_14, %c0_15, %c0_16] : memref<2x8x128xf32, #tpu.memory_space<vmem>>, vector<1x8x128xf32>
    %15 = vector.shape_cast %14 : vector<1x8x128xf32> to vector<8x128xf32>
    %16 = arith.truncf %15 : vector<8x128xf32> to vector<8x128xbf16>
    %c0_17 = arith.constant 0 : index
    %c0_18 = arith.constant 0 : index
    %c0_19 = arith.constant 0 : index
    %c0_20 = arith.constant 0 : index
    %17 = vector.load %arg1[%c0_17, %c0_18, %c0_19, %c0_20] : memref<2x4x128x128xbf16, #tpu.memory_space<vmem>>, vector<1x1x128x128xbf16>
    %18 = vector.shape_cast %17 : vector<1x1x128x128xbf16> to vector<128x128xbf16>
    %cst = arith.constant dense<0.000000e+00> : vector<8x128xf32>
    %19 = tpu.matmul %16, %18, %cst {dimension_numbers = #tpu.dot_dimension_numbers<[1], [0], [0], [1], [0, 0, 1, 1], [], []>} : vector<8x128xbf16>, vector<128x128xbf16>, vector<8x128xf32> -> vector<8x128xf32>
    %20 = arith.truncf %19 : vector<8x128xf32> to vector<8x128xbf16>
    %c0_21 = arith.constant 0 : index
    %c1 = arith.constant 1 : index
    %c0_22 = arith.constant 0 : index
    %c0_23 = arith.constant 0 : index
    %21 = vector.load %arg1[%c0_21, %c1, %c0_22, %c0_23] : memref<2x4x128x128xbf16, #tpu.memory_space<vmem>>, vector<1x1x128x128xbf16>
    %22 = vector.shape_cast %21 : vector<1x1x128x128xbf16> to vector<128x128xbf16>
    %cst_24 = arith.constant dense<0.000000e+00> : vector<8x128xf32>
    %23 = tpu.matmul %16, %22, %cst_24 {dimension_numbers = #tpu.dot_dimension_numbers<[1], [0], [0], [1], [0, 0, 1, 1], [], []>} : vector<8x128xbf16>, vector<128x128xbf16>, vector<8x128xf32> -> vector<8x128xf32>
    %24 = arith.truncf %23 : vector<8x128xf32> to vector<8x128xbf16>
    %c0_25 = arith.constant 0 : index
    %c2 = arith.constant 2 : index
    %c0_26 = arith.constant 0 : index
    %c0_27 = arith.constant 0 : index
    %25 = vector.load %arg1[%c0_25, %c2, %c0_26, %c0_27] : memref<2x4x128x128xbf16, #tpu.memory_space<vmem>>, vector<1x1x128x128xbf16>
    %26 = vector.shape_cast %25 : vector<1x1x128x128xbf16> to vector<128x128xbf16>
    %cst_28 = arith.constant dense<0.000000e+00> : vector<8x128xf32>
    %27 = tpu.matmul %16, %26, %cst_28 {dimension_numbers = #tpu.dot_dimension_numbers<[1], [0], [0], [1], [0, 0, 1, 1], [], []>} : vector<8x128xbf16>, vector<128x128xbf16>, vector<8x128xf32> -> vector<8x128xf32>
    %28 = math.absf %27 : vector<8x128xf32>
    %29 = arith.truncf %28 : vector<8x128xf32> to vector<8x128xbf16>
    %c0_29 = arith.constant 0 : index
    %c3 = arith.constant 3 : index
    %c0_30 = arith.constant 0 : index
    %c0_31 = arith.constant 0 : index
    %30 = vector.load %arg1[%c0_29, %c3, %c0_30, %c0_31] : memref<2x4x128x128xbf16, #tpu.memory_space<vmem>>, vector<1x1x128x128xbf16>
    %31 = vector.shape_cast %30 : vector<1x1x128x128xbf16> to vector<128x128xbf16>
    %cst_32 = arith.constant dense<0.000000e+00> : vector<8x128xf32>
    %32 = tpu.matmul %16, %31, %cst_32 {dimension_numbers = #tpu.dot_dimension_numbers<[1], [0], [0], [1], [0, 0, 1, 1], [], []>} : vector<8x128xbf16>, vector<128x128xbf16>, vector<8x128xf32> -> vector<8x128xf32>
    %33 = math.absf %32 : vector<8x128xf32>
    %34 = arith.truncf %33 : vector<8x128xf32> to vector<8x128xbf16>
    %35 = vector.extract_strided_slice %6 {offsets = [0, 0, 0], sizes = [1, 16, 8], strides = [1, 1, 1]} : vector<5x16x8xbf16> to vector<1x16x8xbf16>
    %36 = vector.shape_cast %35 : vector<1x16x8xbf16> to vector<16x8xbf16>
    %cst_33 = arith.constant dense<0.000000e+00> : vector<16x128xf32>
    %37 = tpu.matmul %36, %16, %cst_33 {dimension_numbers = #tpu.dot_dimension_numbers<[1], [0], [0], [1], [0, 0, 1, 1], [], []>} : vector<16x8xbf16>, vector<8x128xbf16>, vector<16x128xf32> -> vector<16x128xf32>
    %38 = vector.extract_strided_slice %6 {offsets = [1, 0, 0], sizes = [1, 16, 8], strides = [1, 1, 1]} : vector<5x16x8xbf16> to vector<1x16x8xbf16>
    %39 = vector.shape_cast %38 : vector<1x16x8xbf16> to vector<16x8xbf16>
    %cst_34 = arith.constant dense<0.000000e+00> : vector<16x128xf32>
    %40 = tpu.matmul %39, %20, %cst_34 {dimension_numbers = #tpu.dot_dimension_numbers<[1], [0], [0], [1], [0, 0, 1, 1], [], []>} : vector<16x8xbf16>, vector<8x128xbf16>, vector<16x128xf32> -> vector<16x128xf32>
    %41 = arith.addf %37, %40 : vector<16x128xf32>
    %42 = vector.extract_strided_slice %6 {offsets = [2, 0, 0], sizes = [1, 16, 8], strides = [1, 1, 1]} : vector<5x16x8xbf16> to vector<1x16x8xbf16>
    %43 = vector.shape_cast %42 : vector<1x16x8xbf16> to vector<16x8xbf16>
    %cst_35 = arith.constant dense<0.000000e+00> : vector<16x128xf32>
    %44 = tpu.matmul %43, %24, %cst_35 {dimension_numbers = #tpu.dot_dimension_numbers<[1], [0], [0], [1], [0, 0, 1, 1], [], []>} : vector<16x8xbf16>, vector<8x128xbf16>, vector<16x128xf32> -> vector<16x128xf32>
    %45 = arith.addf %41, %44 : vector<16x128xf32>
    %46 = vector.extract_strided_slice %6 {offsets = [3, 0, 0], sizes = [1, 16, 8], strides = [1, 1, 1]} : vector<5x16x8xbf16> to vector<1x16x8xbf16>
    %47 = vector.shape_cast %46 : vector<1x16x8xbf16> to vector<16x8xbf16>
    %cst_36 = arith.constant dense<0.000000e+00> : vector<16x128xf32>
    %48 = tpu.matmul %47, %29, %cst_36 {dimension_numbers = #tpu.dot_dimension_numbers<[1], [0], [0], [1], [0, 0, 1, 1], [], []>} : vector<16x8xbf16>, vector<8x128xbf16>, vector<16x128xf32> -> vector<16x128xf32>
    %49 = arith.addf %45, %48 : vector<16x128xf32>
    %50 = vector.extract_strided_slice %6 {offsets = [4, 0, 0], sizes = [1, 16, 8], strides = [1, 1, 1]} : vector<5x16x8xbf16> to vector<1x16x8xbf16>
    %51 = vector.shape_cast %50 : vector<1x16x8xbf16> to vector<16x8xbf16>
    %cst_37 = arith.constant dense<0.000000e+00> : vector<16x128xf32>
    %52 = tpu.matmul %51, %34, %cst_37 {dimension_numbers = #tpu.dot_dimension_numbers<[1], [0], [0], [1], [0, 0, 1, 1], [], []>} : vector<16x8xbf16>, vector<8x128xbf16>, vector<16x128xf32> -> vector<16x128xf32>
    %53 = arith.addf %49, %52 : vector<16x128xf32>
    %54 = vector.broadcast %4 : vector<1x128xf32> to vector<16x128xf32>
    %55 = arith.mulf %53, %54 : vector<16x128xf32>
    %cst_38 = arith.constant dense<0.000000e+00> : vector<16xf32>
    %56 = vector.multi_reduction <add>, %55, %cst_38 [1] : vector<16x128xf32> to vector<16xf32>
    %57 = vector.shape_cast %56 : vector<16xf32> to vector<16x1xf32>
    %cst_39 = arith.constant 0.020833334 : f32
    %58 = vector.broadcast %cst_39 : f32 to vector<16x1xf32>
    %59 = arith.mulf %57, %58 : vector<16x1xf32>
    %60 = vector.broadcast %59 : vector<16x1xf32> to vector<16x128xf32>
    %61 = arith.subf %53, %60 : vector<16x128xf32>
    %62 = vector.broadcast %4 : vector<1x128xf32> to vector<16x128xf32>
    %63 = arith.mulf %61, %62 : vector<16x128xf32>
    %64 = arith.mulf %63, %63 : vector<16x128xf32>
    %cst_40 = arith.constant dense<0.000000e+00> : vector<16xf32>
    %65 = vector.multi_reduction <add>, %64, %cst_40 [1] : vector<16x128xf32> to vector<16xf32>
    %66 = vector.shape_cast %65 : vector<16xf32> to vector<16x1xf32>
    %cst_41 = arith.constant 0.020833334 : f32
    %67 = vector.broadcast %cst_41 : f32 to vector<16x1xf32>
    %68 = arith.mulf %66, %67 : vector<16x1xf32>
    %69 = vector.broadcast %59 : vector<16x1xf32> to vector<16x128xf32>
    %70 = arith.subf %53, %69 : vector<16x128xf32>
    %cst_42 = arith.constant 9.99999974E-6 : f32
    %71 = vector.broadcast %cst_42 : f32 to vector<16x1xf32>
    %72 = arith.addf %68, %71 : vector<16x1xf32>
    %73 = math.rsqrt %72 : vector<16x1xf32>
    %74 = vector.broadcast %73 : vector<16x1xf32> to vector<16x128xf32>
    %75 = arith.mulf %70, %74 : vector<16x128xf32>
    %cst_43 = arith.constant 0.000000e+00 : f32
    %76 = vector.broadcast %cst_43 : f32 to vector<16x128xf32>
    %77 = arith.maximumf %75, %76 : vector<16x128xf32>
    %78 = arith.truncf %77 : vector<16x128xf32> to vector<16x128xbf16>
    %c0_44 = arith.constant 0 : index
    %c0_45 = arith.constant 0 : index
    %c0_46 = arith.constant 0 : index
    %c0_47 = arith.constant 0 : index
    %79 = vector.load %arg1[%c0_44, %c0_45, %c0_46, %c0_47] : memref<2x4x128x128xbf16, #tpu.memory_space<vmem>>, vector<1x1x128x128xbf16>
    %80 = vector.shape_cast %79 : vector<1x1x128x128xbf16> to vector<128x128xbf16>
    %cst_48 = arith.constant dense<0.000000e+00> : vector<16x128xf32>
    %81 = tpu.matmul %78, %80, %cst_48 {dimension_numbers = #tpu.dot_dimension_numbers<[1], [0], [0], [1], [0, 0, 1, 1], [], []>} : vector<16x128xbf16>, vector<128x128xbf16>, vector<16x128xf32> -> vector<16x128xf32>
    %82 = arith.truncf %81 : vector<16x128xf32> to vector<16x128xbf16>
    %c0_49 = arith.constant 0 : index
    %c1_50 = arith.constant 1 : index
    %c0_51 = arith.constant 0 : index
    %c0_52 = arith.constant 0 : index
    %83 = vector.load %arg1[%c0_49, %c1_50, %c0_51, %c0_52] : memref<2x4x128x128xbf16, #tpu.memory_space<vmem>>, vector<1x1x128x128xbf16>
    %84 = vector.shape_cast %83 : vector<1x1x128x128xbf16> to vector<128x128xbf16>
    %cst_53 = arith.constant dense<0.000000e+00> : vector<16x128xf32>
    %85 = tpu.matmul %78, %84, %cst_53 {dimension_numbers = #tpu.dot_dimension_numbers<[1], [0], [0], [1], [0, 0, 1, 1], [], []>} : vector<16x128xbf16>, vector<128x128xbf16>, vector<16x128xf32> -> vector<16x128xf32>
    %86 = arith.truncf %85 : vector<16x128xf32> to vector<16x128xbf16>
    %c0_54 = arith.constant 0 : index
    %c2_55 = arith.constant 2 : index
    %c0_56 = arith.constant 0 : index
    %c0_57 = arith.constant 0 : index
    %87 = vector.load %arg1[%c0_54, %c2_55, %c0_56, %c0_57] : memref<2x4x128x128xbf16, #tpu.memory_space<vmem>>, vector<1x1x128x128xbf16>
    %88 = vector.shape_cast %87 : vector<1x1x128x128xbf16> to vector<128x128xbf16>
    %cst_58 = arith.constant dense<0.000000e+00> : vector<16x128xf32>
    %89 = tpu.matmul %78, %88, %cst_58 {dimension_numbers = #tpu.dot_dimension_numbers<[1], [0], [0], [1], [0, 0, 1, 1], [], []>} : vector<16x128xbf16>, vector<128x128xbf16>, vector<16x128xf32> -> vector<16x128xf32>
    %90 = math.absf %89 : vector<16x128xf32>
    %91 = arith.truncf %90 : vector<16x128xf32> to vector<16x128xbf16>
    %c0_59 = arith.constant 0 : index
    %c3_60 = arith.constant 3 : index
    %c0_61 = arith.constant 0 : index
    %c0_62 = arith.constant 0 : index
    %92 = vector.load %arg1[%c0_59, %c3_60, %c0_61, %c0_62] : memref<2x4x128x128xbf16, #tpu.memory_space<vmem>>, vector<1x1x128x128xbf16>
    %93 = vector.shape_cast %92 : vector<1x1x128x128xbf16> to vector<128x128xbf16>
    %cst_63 = arith.constant dense<0.000000e+00> : vector<16x128xf32>
    %94 = tpu.matmul %78, %93, %cst_63 {dimension_numbers = #tpu.dot_dimension_numbers<[1], [0], [0], [1], [0, 0, 1, 1], [], []>} : vector<16x128xbf16>, vector<128x128xbf16>, vector<16x128xf32> -> vector<16x128xf32>
    %95 = math.absf %94 : vector<16x128xf32>
    %96 = arith.truncf %95 : vector<16x128xf32> to vector<16x128xbf16>
    %97 = vector.extract_strided_slice %8 {offsets = [0, 0, 0], sizes = [1, 16, 16], strides = [1, 1, 1]} : vector<5x16x16xbf16> to vector<1x16x16xbf16>
    %98 = vector.shape_cast %97 : vector<1x16x16xbf16> to vector<16x16xbf16>
    %cst_64 = arith.constant dense<0.000000e+00> : vector<16x128xf32>
    %99 = tpu.matmul %98, %78, %cst_64 {dimension_numbers = #tpu.dot_dimension_numbers<[1], [0], [0], [1], [0, 0, 1, 1], [], []>} : vector<16x16xbf16>, vector<16x128xbf16>, vector<16x128xf32> -> vector<16x128xf32>
    %100 = vector.extract_strided_slice %8 {offsets = [1, 0, 0], sizes = [1, 16, 16], strides = [1, 1, 1]} : vector<5x16x16xbf16> to vector<1x16x16xbf16>
    %101 = vector.shape_cast %100 : vector<1x16x16xbf16> to vector<16x16xbf16>
    %cst_65 = arith.constant dense<0.000000e+00> : vector<16x128xf32>
    %102 = tpu.matmul %101, %82, %cst_65 {dimension_numbers = #tpu.dot_dimension_numbers<[1], [0], [0], [1], [0, 0, 1, 1], [], []>} : vector<16x16xbf16>, vector<16x128xbf16>, vector<16x128xf32> -> vector<16x128xf32>
    %103 = arith.addf %99, %102 : vector<16x128xf32>
    %104 = vector.extract_strided_slice %8 {offsets = [2, 0, 0], sizes = [1, 16, 16], strides = [1, 1, 1]} : vector<5x16x16xbf16> to vector<1x16x16xbf16>
    %105 = vector.shape_cast %104 : vector<1x16x16xbf16> to vector<16x16xbf16>
    %cst_66 = arith.constant dense<0.000000e+00> : vector<16x128xf32>
    %106 = tpu.matmul %105, %86, %cst_66 {dimension_numbers = #tpu.dot_dimension_numbers<[1], [0], [0], [1], [0, 0, 1, 1], [], []>} : vector<16x16xbf16>, vector<16x128xbf16>, vector<16x128xf32> -> vector<16x128xf32>
    %107 = arith.addf %103, %106 : vector<16x128xf32>
    %108 = vector.extract_strided_slice %8 {offsets = [3, 0, 0], sizes = [1, 16, 16], strides = [1, 1, 1]} : vector<5x16x16xbf16> to vector<1x16x16xbf16>
    %109 = vector.shape_cast %108 : vector<1x16x16xbf16> to vector<16x16xbf16>
    %cst_67 = arith.constant dense<0.000000e+00> : vector<16x128xf32>
    %110 = tpu.matmul %109, %91, %cst_67 {dimension_numbers = #tpu.dot_dimension_numbers<[1], [0], [0], [1], [0, 0, 1, 1], [], []>} : vector<16x16xbf16>, vector<16x128xbf16>, vector<16x128xf32> -> vector<16x128xf32>
    %111 = arith.addf %107, %110 : vector<16x128xf32>
    %112 = vector.extract_strided_slice %8 {offsets = [4, 0, 0], sizes = [1, 16, 16], strides = [1, 1, 1]} : vector<5x16x16xbf16> to vector<1x16x16xbf16>
    %113 = vector.shape_cast %112 : vector<1x16x16xbf16> to vector<16x16xbf16>
    %cst_68 = arith.constant dense<0.000000e+00> : vector<16x128xf32>
    %114 = tpu.matmul %113, %96, %cst_68 {dimension_numbers = #tpu.dot_dimension_numbers<[1], [0], [0], [1], [0, 0, 1, 1], [], []>} : vector<16x16xbf16>, vector<16x128xbf16>, vector<16x128xf32> -> vector<16x128xf32>
    %115 = arith.addf %111, %114 : vector<16x128xf32>
    %116 = vector.broadcast %4 : vector<1x128xf32> to vector<16x128xf32>
    %117 = arith.mulf %115, %116 : vector<16x128xf32>
    %cst_69 = arith.constant dense<0.000000e+00> : vector<16xf32>
    %118 = vector.multi_reduction <add>, %117, %cst_69 [1] : vector<16x128xf32> to vector<16xf32>
    %119 = vector.shape_cast %118 : vector<16xf32> to vector<16x1xf32>
    %cst_70 = arith.constant 0.020833334 : f32
    %120 = vector.broadcast %cst_70 : f32 to vector<16x1xf32>
    %121 = arith.mulf %119, %120 : vector<16x1xf32>
    %122 = vector.broadcast %121 : vector<16x1xf32> to vector<16x128xf32>
    %123 = arith.subf %115, %122 : vector<16x128xf32>
    %124 = vector.broadcast %4 : vector<1x128xf32> to vector<16x128xf32>
    %125 = arith.mulf %123, %124 : vector<16x128xf32>
    %126 = arith.mulf %125, %125 : vector<16x128xf32>
    %cst_71 = arith.constant dense<0.000000e+00> : vector<16xf32>
    %127 = vector.multi_reduction <add>, %126, %cst_71 [1] : vector<16x128xf32> to vector<16xf32>
    %128 = vector.shape_cast %127 : vector<16xf32> to vector<16x1xf32>
    %cst_72 = arith.constant 0.020833334 : f32
    %129 = vector.broadcast %cst_72 : f32 to vector<16x1xf32>
    %130 = arith.mulf %128, %129 : vector<16x1xf32>
    %131 = vector.broadcast %121 : vector<16x1xf32> to vector<16x128xf32>
    %132 = arith.subf %115, %131 : vector<16x128xf32>
    %cst_73 = arith.constant 9.99999974E-6 : f32
    %133 = vector.broadcast %cst_73 : f32 to vector<16x1xf32>
    %134 = arith.addf %130, %133 : vector<16x1xf32>
    %135 = math.rsqrt %134 : vector<16x1xf32>
    %136 = vector.broadcast %135 : vector<16x1xf32> to vector<16x128xf32>
    %137 = arith.mulf %132, %136 : vector<16x128xf32>
    %138 = vector.extract_strided_slice %10 {offsets = [0, 0, 0], sizes = [1, 16, 8], strides = [1, 1, 1]} : vector<5x16x8xbf16> to vector<1x16x8xbf16>
    %139 = vector.shape_cast %138 : vector<1x16x8xbf16> to vector<16x8xbf16>
    %cst_74 = arith.constant dense<0.000000e+00> : vector<16x128xf32>
    %140 = tpu.matmul %139, %16, %cst_74 {dimension_numbers = #tpu.dot_dimension_numbers<[1], [0], [0], [1], [0, 0, 1, 1], [], []>} : vector<16x8xbf16>, vector<8x128xbf16>, vector<16x128xf32> -> vector<16x128xf32>
    %141 = vector.extract_strided_slice %10 {offsets = [1, 0, 0], sizes = [1, 16, 8], strides = [1, 1, 1]} : vector<5x16x8xbf16> to vector<1x16x8xbf16>
    %142 = vector.shape_cast %141 : vector<1x16x8xbf16> to vector<16x8xbf16>
    %cst_75 = arith.constant dense<0.000000e+00> : vector<16x128xf32>
    %143 = tpu.matmul %142, %20, %cst_75 {dimension_numbers = #tpu.dot_dimension_numbers<[1], [0], [0], [1], [0, 0, 1, 1], [], []>} : vector<16x8xbf16>, vector<8x128xbf16>, vector<16x128xf32> -> vector<16x128xf32>
    %144 = arith.addf %140, %143 : vector<16x128xf32>
    %145 = vector.extract_strided_slice %10 {offsets = [2, 0, 0], sizes = [1, 16, 8], strides = [1, 1, 1]} : vector<5x16x8xbf16> to vector<1x16x8xbf16>
    %146 = vector.shape_cast %145 : vector<1x16x8xbf16> to vector<16x8xbf16>
    %cst_76 = arith.constant dense<0.000000e+00> : vector<16x128xf32>
    %147 = tpu.matmul %146, %24, %cst_76 {dimension_numbers = #tpu.dot_dimension_numbers<[1], [0], [0], [1], [0, 0, 1, 1], [], []>} : vector<16x8xbf16>, vector<8x128xbf16>, vector<16x128xf32> -> vector<16x128xf32>
    %148 = arith.addf %144, %147 : vector<16x128xf32>
    %149 = vector.extract_strided_slice %10 {offsets = [3, 0, 0], sizes = [1, 16, 8], strides = [1, 1, 1]} : vector<5x16x8xbf16> to vector<1x16x8xbf16>
    %150 = vector.shape_cast %149 : vector<1x16x8xbf16> to vector<16x8xbf16>
    %cst_77 = arith.constant dense<0.000000e+00> : vector<16x128xf32>
    %151 = tpu.matmul %150, %29, %cst_77 {dimension_numbers = #tpu.dot_dimension_numbers<[1], [0], [0], [1], [0, 0, 1, 1], [], []>} : vector<16x8xbf16>, vector<8x128xbf16>, vector<16x128xf32> -> vector<16x128xf32>
    %152 = arith.addf %148, %151 : vector<16x128xf32>
    %153 = vector.extract_strided_slice %10 {offsets = [4, 0, 0], sizes = [1, 16, 8], strides = [1, 1, 1]} : vector<5x16x8xbf16> to vector<1x16x8xbf16>
    %154 = vector.shape_cast %153 : vector<1x16x8xbf16> to vector<16x8xbf16>
    %cst_78 = arith.constant dense<0.000000e+00> : vector<16x128xf32>
    %155 = tpu.matmul %154, %34, %cst_78 {dimension_numbers = #tpu.dot_dimension_numbers<[1], [0], [0], [1], [0, 0, 1, 1], [], []>} : vector<16x8xbf16>, vector<8x128xbf16>, vector<16x128xf32> -> vector<16x128xf32>
    %156 = arith.addf %152, %155 : vector<16x128xf32>
    %157 = vector.broadcast %11 : vector<16x1xf32> to vector<16x128xf32>
    %158 = arith.addf %156, %157 : vector<16x128xf32>
    %159 = arith.addf %137, %158 : vector<16x128xf32>
    %cst_79 = arith.constant 0.000000e+00 : f32
    %160 = vector.broadcast %cst_79 : f32 to vector<16x128xf32>
    %161 = arith.maximumf %159, %160 : vector<16x128xf32>
    %162 = vector.broadcast %4 : vector<1x128xf32> to vector<16x128xf32>
    %163 = arith.mulf %161, %162 : vector<16x128xf32>
    %164 = vector.shape_cast %163 : vector<16x128xf32> to vector<1x16x128xf32>
    %cst_80 = arith.constant dense<0.000000e+00> : vector<1xf32>
    %165 = vector.multi_reduction <add>, %164, %cst_80 [1, 2] : vector<1x16x128xf32> to vector<1xf32>
    %166 = vector.shape_cast %165 : vector<1xf32> to vector<1x1x1xf32>
    %167 = vector.extract %166[0, 0, 0] : f32 from vector<1x1x1xf32>
    %cst_81 = arith.constant 0.00130208337 : f32
    %168 = arith.mulf %167, %cst_81 : f32
    %169 = vector.broadcast %168 : f32 to vector<16x128xf32>
    %170 = arith.subf %161, %169 : vector<16x128xf32>
    %171 = vector.broadcast %4 : vector<1x128xf32> to vector<16x128xf32>
    %172 = arith.mulf %170, %171 : vector<16x128xf32>
    %173 = arith.mulf %172, %172 : vector<16x128xf32>
    %174 = vector.shape_cast %173 : vector<16x128xf32> to vector<1x16x128xf32>
    %cst_82 = arith.constant dense<0.000000e+00> : vector<1xf32>
    %175 = vector.multi_reduction <add>, %174, %cst_82 [1, 2] : vector<1x16x128xf32> to vector<1xf32>
    %176 = vector.shape_cast %175 : vector<1xf32> to vector<1x1x1xf32>
    %177 = vector.extract %176[0, 0, 0] : f32 from vector<1x1x1xf32>
    %cst_83 = arith.constant 0.00130208337 : f32
    %178 = arith.mulf %177, %cst_83 : f32
    %179 = vector.broadcast %168 : f32 to vector<16x128xf32>
    %180 = arith.subf %161, %179 : vector<16x128xf32>
    %cst_84 = arith.constant 9.99999974E-6 : f32
    %181 = arith.addf %178, %cst_84 : f32
    %182 = math.rsqrt %181 : f32
    %183 = vector.broadcast %182 : f32 to vector<16x128xf32>
    %184 = arith.mulf %180, %183 : vector<16x128xf32>
    %185 = vector.broadcast %12 : vector<16x1xf32> to vector<16x128xf32>
    %186 = arith.mulf %184, %185 : vector<16x128xf32>
    %187 = vector.broadcast %13 : vector<16x1xf32> to vector<16x128xf32>
    %188 = arith.addf %186, %187 : vector<16x128xf32>
    %cst_85 = arith.constant 0.000000e+00 : f32
    %189 = vector.broadcast %cst_85 : f32 to vector<16x128xf32>
    %190 = arith.maximumf %188, %189 : vector<16x128xf32>
    %c0_86 = arith.constant 0 : index
    %c0_87 = arith.constant 0 : index
    %c0_88 = arith.constant 0 : index
    %191 = vector.load %arg8[%c0_86, %c0_87, %c0_88] : memref<2x16x128xf32, #tpu.memory_space<vmem>>, vector<1x16x128xf32>
    %192 = vector.shape_cast %191 : vector<1x16x128xf32> to vector<16x128xf32>
    %193 = vector.shape_cast %190 : vector<16x128xf32> to vector<1x16x128xf32>
    tpu.vector_store %arg8[%c0_86, %c0_87, %c0_88], %193 {strides = array<i32>} : memref<2x16x128xf32, #tpu.memory_space<vmem>>, vector<1x16x128xf32>,
    %194 = arith.mulf %190, %190 : vector<16x128xf32>
    %cst_89 = arith.constant dense<0.000000e+00> : vector<128xf32>
    %195 = vector.multi_reduction <add>, %194, %cst_89 [0] : vector<16x128xf32> to vector<128xf32>
    %196 = vector.shape_cast %195 : vector<128xf32> to vector<1x128xf32>
    %cst_90 = arith.constant 0.000000e+00 : f32
    %197 = vector.broadcast %cst_90 : f32 to vector<1x128xf32>
    %198 = arith.cmpf ogt, %4, %197 : vector<1x128xf32>
    %cst_91 = arith.constant -1.000000e+00 : f32
    %199 = vector.broadcast %cst_91 : f32 to vector<1x128xf32>
    %200 = arith.select %198, %196, %199 : vector<1x128xi1>, vector<1x128xf32>
    %c0_92 = arith.constant 0 : index
    %c0_93 = arith.constant 0 : index
    %c0_94 = arith.constant 0 : index
    %201 = vector.load %arg9[%c0_92, %c0_93, %c0_94] : memref<2x1x128xf32, #tpu.memory_space<vmem>>, vector<1x1x128xf32>
    %202 = vector.shape_cast %201 : vector<1x1x128xf32> to vector<1x128xf32>
    %203 = vector.shape_cast %200 : vector<1x128xf32> to vector<1x1x128xf32>
    tpu.vector_store %arg9[%c0_92, %c0_93, %c0_94], %203 {strides = array<i32>} : memref<2x1x128xf32, #tpu.memory_space<vmem>>, vector<1x1x128xf32>,
    %c1_95 = arith.constant 1 : index
    %c0_96 = arith.constant 0 : index
    %c0_97 = arith.constant 0 : index
    %204 = vector.load %arg0[%c1_95, %c0_96, %c0_97] : memref<2x8x128xf32, #tpu.memory_space<vmem>>, vector<1x8x128xf32>
    %205 = vector.shape_cast %204 : vector<1x8x128xf32> to vector<8x128xf32>
    %206 = arith.truncf %205 : vector<8x128xf32> to vector<8x128xbf16>
    %c1_98 = arith.constant 1 : index
    %c0_99 = arith.constant 0 : index
    %c0_100 = arith.constant 0 : index
    %c0_101 = arith.constant 0 : index
    %207 = vector.load %arg1[%c1_98, %c0_99, %c0_100, %c0_101] : memref<2x4x128x128xbf16, #tpu.memory_space<vmem>>, vector<1x1x128x128xbf16>
    %208 = vector.shape_cast %207 : vector<1x1x128x128xbf16> to vector<128x128xbf16>
    %cst_102 = arith.constant dense<0.000000e+00> : vector<8x128xf32>
    %209 = tpu.matmul %206, %208, %cst_102 {dimension_numbers = #tpu.dot_dimension_numbers<[1], [0], [0], [1], [0, 0, 1, 1], [], []>} : vector<8x128xbf16>, vector<128x128xbf16>, vector<8x128xf32> -> vector<8x128xf32>
    %210 = arith.truncf %209 : vector<8x128xf32> to vector<8x128xbf16>
    %c1_103 = arith.constant 1 : index
    %c1_104 = arith.constant 1 : index
    %c0_105 = arith.constant 0 : index
    %c0_106 = arith.constant 0 : index
    %211 = vector.load %arg1[%c1_103, %c1_104, %c0_105, %c0_106] : memref<2x4x128x128xbf16, #tpu.memory_space<vmem>>, vector<1x1x128x128xbf16>
    %212 = vector.shape_cast %211 : vector<1x1x128x128xbf16> to vector<128x128xbf16>
    %cst_107 = arith.constant dense<0.000000e+00> : vector<8x128xf32>
    %213 = tpu.matmul %206, %212, %cst_107 {dimension_numbers = #tpu.dot_dimension_numbers<[1], [0], [0], [1], [0, 0, 1, 1], [], []>} : vector<8x128xbf16>, vector<128x128xbf16>, vector<8x128xf32> -> vector<8x128xf32>
    %214 = arith.truncf %213 : vector<8x128xf32> to vector<8x128xbf16>
    %c1_108 = arith.constant 1 : index
    %c2_109 = arith.constant 2 : index
    %c0_110 = arith.constant 0 : index
    %c0_111 = arith.constant 0 : index
    %215 = vector.load %arg1[%c1_108, %c2_109, %c0_110, %c0_111] : memref<2x4x128x128xbf16, #tpu.memory_space<vmem>>, vector<1x1x128x128xbf16>
    %216 = vector.shape_cast %215 : vector<1x1x128x128xbf16> to vector<128x128xbf16>
    %cst_112 = arith.constant dense<0.000000e+00> : vector<8x128xf32>
    %217 = tpu.matmul %206, %216, %cst_112 {dimension_numbers = #tpu.dot_dimension_numbers<[1], [0], [0], [1], [0, 0, 1, 1], [], []>} : vector<8x128xbf16>, vector<128x128xbf16>, vector<8x128xf32> -> vector<8x128xf32>
    %218 = math.absf %217 : vector<8x128xf32>
    %219 = arith.truncf %218 : vector<8x128xf32> to vector<8x128xbf16>
    %c1_113 = arith.constant 1 : index
    %c3_114 = arith.constant 3 : index
    %c0_115 = arith.constant 0 : index
    %c0_116 = arith.constant 0 : index
    %220 = vector.load %arg1[%c1_113, %c3_114, %c0_115, %c0_116] : memref<2x4x128x128xbf16, #tpu.memory_space<vmem>>, vector<1x1x128x128xbf16>
    %221 = vector.shape_cast %220 : vector<1x1x128x128xbf16> to vector<128x128xbf16>
    %cst_117 = arith.constant dense<0.000000e+00> : vector<8x128xf32>
    %222 = tpu.matmul %206, %221, %cst_117 {dimension_numbers = #tpu.dot_dimension_numbers<[1], [0], [0], [1], [0, 0, 1, 1], [], []>} : vector<8x128xbf16>, vector<128x128xbf16>, vector<8x128xf32> -> vector<8x128xf32>
    %223 = math.absf %222 : vector<8x128xf32>
    %224 = arith.truncf %223 : vector<8x128xf32> to vector<8x128xbf16>
    %225 = vector.extract_strided_slice %6 {offsets = [0, 0, 0], sizes = [1, 16, 8], strides = [1, 1, 1]} : vector<5x16x8xbf16> to vector<1x16x8xbf16>
    %226 = vector.shape_cast %225 : vector<1x16x8xbf16> to vector<16x8xbf16>
    %cst_118 = arith.constant dense<0.000000e+00> : vector<16x128xf32>
    %227 = tpu.matmul %226, %206, %cst_118 {dimension_numbers = #tpu.dot_dimension_numbers<[1], [0], [0], [1], [0, 0, 1, 1], [], []>} : vector<16x8xbf16>, vector<8x128xbf16>, vector<16x128xf32> -> vector<16x128xf32>
    %228 = vector.extract_strided_slice %6 {offsets = [1, 0, 0], sizes = [1, 16, 8], strides = [1, 1, 1]} : vector<5x16x8xbf16> to vector<1x16x8xbf16>
    %229 = vector.shape_cast %228 : vector<1x16x8xbf16> to vector<16x8xbf16>
    %cst_119 = arith.constant dense<0.000000e+00> : vector<16x128xf32>
    %230 = tpu.matmul %229, %210, %cst_119 {dimension_numbers = #tpu.dot_dimension_numbers<[1], [0], [0], [1], [0, 0, 1, 1], [], []>} : vector<16x8xbf16>, vector<8x128xbf16>, vector<16x128xf32> -> vector<16x128xf32>
    %231 = arith.addf %227, %230 : vector<16x128xf32>
    %232 = vector.extract_strided_slice %6 {offsets = [2, 0, 0], sizes = [1, 16, 8], strides = [1, 1, 1]} : vector<5x16x8xbf16> to vector<1x16x8xbf16>
    %233 = vector.shape_cast %232 : vector<1x16x8xbf16> to vector<16x8xbf16>
    %cst_120 = arith.constant dense<0.000000e+00> : vector<16x128xf32>
    %234 = tpu.matmul %233, %214, %cst_120 {dimension_numbers = #tpu.dot_dimension_numbers<[1], [0], [0], [1], [0, 0, 1, 1], [], []>} : vector<16x8xbf16>, vector<8x128xbf16>, vector<16x128xf32> -> vector<16x128xf32>
    %235 = arith.addf %231, %234 : vector<16x128xf32>
    %236 = vector.extract_strided_slice %6 {offsets = [3, 0, 0], sizes = [1, 16, 8], strides = [1, 1, 1]} : vector<5x16x8xbf16> to vector<1x16x8xbf16>
    %237 = vector.shape_cast %236 : vector<1x16x8xbf16> to vector<16x8xbf16>
    %cst_121 = arith.constant dense<0.000000e+00> : vector<16x128xf32>
    %238 = tpu.matmul %237, %219, %cst_121 {dimension_numbers = #tpu.dot_dimension_numbers<[1], [0], [0], [1], [0, 0, 1, 1], [], []>} : vector<16x8xbf16>, vector<8x128xbf16>, vector<16x128xf32> -> vector<16x128xf32>
    %239 = arith.addf %235, %238 : vector<16x128xf32>
    %240 = vector.extract_strided_slice %6 {offsets = [4, 0, 0], sizes = [1, 16, 8], strides = [1, 1, 1]} : vector<5x16x8xbf16> to vector<1x16x8xbf16>
    %241 = vector.shape_cast %240 : vector<1x16x8xbf16> to vector<16x8xbf16>
    %cst_122 = arith.constant dense<0.000000e+00> : vector<16x128xf32>
    %242 = tpu.matmul %241, %224, %cst_122 {dimension_numbers = #tpu.dot_dimension_numbers<[1], [0], [0], [1], [0, 0, 1, 1], [], []>} : vector<16x8xbf16>, vector<8x128xbf16>, vector<16x128xf32> -> vector<16x128xf32>
    %243 = arith.addf %239, %242 : vector<16x128xf32>
    %244 = vector.broadcast %4 : vector<1x128xf32> to vector<16x128xf32>
    %245 = arith.mulf %243, %244 : vector<16x128xf32>
    %cst_123 = arith.constant dense<0.000000e+00> : vector<16xf32>
    %246 = vector.multi_reduction <add>, %245, %cst_123 [1] : vector<16x128xf32> to vector<16xf32>
    %247 = vector.shape_cast %246 : vector<16xf32> to vector<16x1xf32>
    %cst_124 = arith.constant 0.020833334 : f32
    %248 = vector.broadcast %cst_124 : f32 to vector<16x1xf32>
    %249 = arith.mulf %247, %248 : vector<16x1xf32>
    %250 = vector.broadcast %249 : vector<16x1xf32> to vector<16x128xf32>
    %251 = arith.subf %243, %250 : vector<16x128xf32>
    %252 = vector.broadcast %4 : vector<1x128xf32> to vector<16x128xf32>
    %253 = arith.mulf %251, %252 : vector<16x128xf32>
    %254 = arith.mulf %253, %253 : vector<16x128xf32>
    %cst_125 = arith.constant dense<0.000000e+00> : vector<16xf32>
    %255 = vector.multi_reduction <add>, %254, %cst_125 [1] : vector<16x128xf32> to vector<16xf32>
    %256 = vector.shape_cast %255 : vector<16xf32> to vector<16x1xf32>
    %cst_126 = arith.constant 0.020833334 : f32
    %257 = vector.broadcast %cst_126 : f32 to vector<16x1xf32>
    %258 = arith.mulf %256, %257 : vector<16x1xf32>
    %259 = vector.broadcast %249 : vector<16x1xf32> to vector<16x128xf32>
    %260 = arith.subf %243, %259 : vector<16x128xf32>
    %cst_127 = arith.constant 9.99999974E-6 : f32
    %261 = vector.broadcast %cst_127 : f32 to vector<16x1xf32>
    %262 = arith.addf %258, %261 : vector<16x1xf32>
    %263 = math.rsqrt %262 : vector<16x1xf32>
    %264 = vector.broadcast %263 : vector<16x1xf32> to vector<16x128xf32>
    %265 = arith.mulf %260, %264 : vector<16x128xf32>
    %cst_128 = arith.constant 0.000000e+00 : f32
    %266 = vector.broadcast %cst_128 : f32 to vector<16x128xf32>
    %267 = arith.maximumf %265, %266 : vector<16x128xf32>
    %268 = arith.truncf %267 : vector<16x128xf32> to vector<16x128xbf16>
    %c1_129 = arith.constant 1 : index
    %c0_130 = arith.constant 0 : index
    %c0_131 = arith.constant 0 : index
    %c0_132 = arith.constant 0 : index
    %269 = vector.load %arg1[%c1_129, %c0_130, %c0_131, %c0_132] : memref<2x4x128x128xbf16, #tpu.memory_space<vmem>>, vector<1x1x128x128xbf16>
    %270 = vector.shape_cast %269 : vector<1x1x128x128xbf16> to vector<128x128xbf16>
    %cst_133 = arith.constant dense<0.000000e+00> : vector<16x128xf32>
    %271 = tpu.matmul %268, %270, %cst_133 {dimension_numbers = #tpu.dot_dimension_numbers<[1], [0], [0], [1], [0, 0, 1, 1], [], []>} : vector<16x128xbf16>, vector<128x128xbf16>, vector<16x128xf32> -> vector<16x128xf32>
    %272 = arith.truncf %271 : vector<16x128xf32> to vector<16x128xbf16>
    %c1_134 = arith.constant 1 : index
    %c1_135 = arith.constant 1 : index
    %c0_136 = arith.constant 0 : index
    %c0_137 = arith.constant 0 : index
    %273 = vector.load %arg1[%c1_134, %c1_135, %c0_136, %c0_137] : memref<2x4x128x128xbf16, #tpu.memory_space<vmem>>, vector<1x1x128x128xbf16>
    %274 = vector.shape_cast %273 : vector<1x1x128x128xbf16> to vector<128x128xbf16>
    %cst_138 = arith.constant dense<0.000000e+00> : vector<16x128xf32>
    %275 = tpu.matmul %268, %274, %cst_138 {dimension_numbers = #tpu.dot_dimension_numbers<[1], [0], [0], [1], [0, 0, 1, 1], [], []>} : vector<16x128xbf16>, vector<128x128xbf16>, vector<16x128xf32> -> vector<16x128xf32>
    %276 = arith.truncf %275 : vector<16x128xf32> to vector<16x128xbf16>
    %c1_139 = arith.constant 1 : index
    %c2_140 = arith.constant 2 : index
    %c0_141 = arith.constant 0 : index
    %c0_142 = arith.constant 0 : index
    %277 = vector.load %arg1[%c1_139, %c2_140, %c0_141, %c0_142] : memref<2x4x128x128xbf16, #tpu.memory_space<vmem>>, vector<1x1x128x128xbf16>
    %278 = vector.shape_cast %277 : vector<1x1x128x128xbf16> to vector<128x128xbf16>
    %cst_143 = arith.constant dense<0.000000e+00> : vector<16x128xf32>
    %279 = tpu.matmul %268, %278, %cst_143 {dimension_numbers = #tpu.dot_dimension_numbers<[1], [0], [0], [1], [0, 0, 1, 1], [], []>} : vector<16x128xbf16>, vector<128x128xbf16>, vector<16x128xf32> -> vector<16x128xf32>
    %280 = math.absf %279 : vector<16x128xf32>
    %281 = arith.truncf %280 : vector<16x128xf32> to vector<16x128xbf16>
    %c1_144 = arith.constant 1 : index
    %c3_145 = arith.constant 3 : index
    %c0_146 = arith.constant 0 : index
    %c0_147 = arith.constant 0 : index
    %282 = vector.load %arg1[%c1_144, %c3_145, %c0_146, %c0_147] : memref<2x4x128x128xbf16, #tpu.memory_space<vmem>>, vector<1x1x128x128xbf16>
    %283 = vector.shape_cast %282 : vector<1x1x128x128xbf16> to vector<128x128xbf16>
    %cst_148 = arith.constant dense<0.000000e+00> : vector<16x128xf32>
    %284 = tpu.matmul %268, %283, %cst_148 {dimension_numbers = #tpu.dot_dimension_numbers<[1], [0], [0], [1], [0, 0, 1, 1], [], []>} : vector<16x128xbf16>, vector<128x128xbf16>, vector<16x128xf32> -> vector<16x128xf32>
    %285 = math.absf %284 : vector<16x128xf32>
    %286 = arith.truncf %285 : vector<16x128xf32> to vector<16x128xbf16>
    %287 = vector.extract_strided_slice %8 {offsets = [0, 0, 0], sizes = [1, 16, 16], strides = [1, 1, 1]} : vector<5x16x16xbf16> to vector<1x16x16xbf16>
    %288 = vector.shape_cast %287 : vector<1x16x16xbf16> to vector<16x16xbf16>
    %cst_149 = arith.constant dense<0.000000e+00> : vector<16x128xf32>
    %289 = tpu.matmul %288, %268, %cst_149 {dimension_numbers = #tpu.dot_dimension_numbers<[1], [0], [0], [1], [0, 0, 1, 1], [], []>} : vector<16x16xbf16>, vector<16x128xbf16>, vector<16x128xf32> -> vector<16x128xf32>
    %290 = vector.extract_strided_slice %8 {offsets = [1, 0, 0], sizes = [1, 16, 16], strides = [1, 1, 1]} : vector<5x16x16xbf16> to vector<1x16x16xbf16>
    %291 = vector.shape_cast %290 : vector<1x16x16xbf16> to vector<16x16xbf16>
    %cst_150 = arith.constant dense<0.000000e+00> : vector<16x128xf32>
    %292 = tpu.matmul %291, %272, %cst_150 {dimension_numbers = #tpu.dot_dimension_numbers<[1], [0], [0], [1], [0, 0, 1, 1], [], []>} : vector<16x16xbf16>, vector<16x128xbf16>, vector<16x128xf32> -> vector<16x128xf32>
    %293 = arith.addf %289, %292 : vector<16x128xf32>
    %294 = vector.extract_strided_slice %8 {offsets = [2, 0, 0], sizes = [1, 16, 16], strides = [1, 1, 1]} : vector<5x16x16xbf16> to vector<1x16x16xbf16>
    %295 = vector.shape_cast %294 : vector<1x16x16xbf16> to vector<16x16xbf16>
    %cst_151 = arith.constant dense<0.000000e+00> : vector<16x128xf32>
    %296 = tpu.matmul %295, %276, %cst_151 {dimension_numbers = #tpu.dot_dimension_numbers<[1], [0], [0], [1], [0, 0, 1, 1], [], []>} : vector<16x16xbf16>, vector<16x128xbf16>, vector<16x128xf32> -> vector<16x128xf32>
    %297 = arith.addf %293, %296 : vector<16x128xf32>
    %298 = vector.extract_strided_slice %8 {offsets = [3, 0, 0], sizes = [1, 16, 16], strides = [1, 1, 1]} : vector<5x16x16xbf16> to vector<1x16x16xbf16>
    %299 = vector.shape_cast %298 : vector<1x16x16xbf16> to vector<16x16xbf16>
    %cst_152 = arith.constant dense<0.000000e+00> : vector<16x128xf32>
    %300 = tpu.matmul %299, %281, %cst_152 {dimension_numbers = #tpu.dot_dimension_numbers<[1], [0], [0], [1], [0, 0, 1, 1], [], []>} : vector<16x16xbf16>, vector<16x128xbf16>, vector<16x128xf32> -> vector<16x128xf32>
    %301 = arith.addf %297, %300 : vector<16x128xf32>
    %302 = vector.extract_strided_slice %8 {offsets = [4, 0, 0], sizes = [1, 16, 16], strides = [1, 1, 1]} : vector<5x16x16xbf16> to vector<1x16x16xbf16>
    %303 = vector.shape_cast %302 : vector<1x16x16xbf16> to vector<16x16xbf16>
    %cst_153 = arith.constant dense<0.000000e+00> : vector<16x128xf32>
    %304 = tpu.matmul %303, %286, %cst_153 {dimension_numbers = #tpu.dot_dimension_numbers<[1], [0], [0], [1], [0, 0, 1, 1], [], []>} : vector<16x16xbf16>, vector<16x128xbf16>, vector<16x128xf32> -> vector<16x128xf32>
    %305 = arith.addf %301, %304 : vector<16x128xf32>
    %306 = vector.broadcast %4 : vector<1x128xf32> to vector<16x128xf32>
    %307 = arith.mulf %305, %306 : vector<16x128xf32>
    %cst_154 = arith.constant dense<0.000000e+00> : vector<16xf32>
    %308 = vector.multi_reduction <add>, %307, %cst_154 [1] : vector<16x128xf32> to vector<16xf32>
    %309 = vector.shape_cast %308 : vector<16xf32> to vector<16x1xf32>
    %cst_155 = arith.constant 0.020833334 : f32
    %310 = vector.broadcast %cst_155 : f32 to vector<16x1xf32>
    %311 = arith.mulf %309, %310 : vector<16x1xf32>
    %312 = vector.broadcast %311 : vector<16x1xf32> to vector<16x128xf32>
    %313 = arith.subf %305, %312 : vector<16x128xf32>
    %314 = vector.broadcast %4 : vector<1x128xf32> to vector<16x128xf32>
    %315 = arith.mulf %313, %314 : vector<16x128xf32>
    %316 = arith.mulf %315, %315 : vector<16x128xf32>
    %cst_156 = arith.constant dense<0.000000e+00> : vector<16xf32>
    %317 = vector.multi_reduction <add>, %316, %cst_156 [1] : vector<16x128xf32> to vector<16xf32>
    %318 = vector.shape_cast %317 : vector<16xf32> to vector<16x1xf32>
    %cst_157 = arith.constant 0.020833334 : f32
    %319 = vector.broadcast %cst_157 : f32 to vector<16x1xf32>
    %320 = arith.mulf %318, %319 : vector<16x1xf32>
    %321 = vector.broadcast %311 : vector<16x1xf32> to vector<16x128xf32>
    %322 = arith.subf %305, %321 : vector<16x128xf32>
    %cst_158 = arith.constant 9.99999974E-6 : f32
    %323 = vector.broadcast %cst_158 : f32 to vector<16x1xf32>
    %324 = arith.addf %320, %323 : vector<16x1xf32>
    %325 = math.rsqrt %324 : vector<16x1xf32>
    %326 = vector.broadcast %325 : vector<16x1xf32> to vector<16x128xf32>
    %327 = arith.mulf %322, %326 : vector<16x128xf32>
    %328 = vector.extract_strided_slice %10 {offsets = [0, 0, 0], sizes = [1, 16, 8], strides = [1, 1, 1]} : vector<5x16x8xbf16> to vector<1x16x8xbf16>
    %329 = vector.shape_cast %328 : vector<1x16x8xbf16> to vector<16x8xbf16>
    %cst_159 = arith.constant dense<0.000000e+00> : vector<16x128xf32>
    %330 = tpu.matmul %329, %206, %cst_159 {dimension_numbers = #tpu.dot_dimension_numbers<[1], [0], [0], [1], [0, 0, 1, 1], [], []>} : vector<16x8xbf16>, vector<8x128xbf16>, vector<16x128xf32> -> vector<16x128xf32>
    %331 = vector.extract_strided_slice %10 {offsets = [1, 0, 0], sizes = [1, 16, 8], strides = [1, 1, 1]} : vector<5x16x8xbf16> to vector<1x16x8xbf16>
    %332 = vector.shape_cast %331 : vector<1x16x8xbf16> to vector<16x8xbf16>
    %cst_160 = arith.constant dense<0.000000e+00> : vector<16x128xf32>
    %333 = tpu.matmul %332, %210, %cst_160 {dimension_numbers = #tpu.dot_dimension_numbers<[1], [0], [0], [1], [0, 0, 1, 1], [], []>} : vector<16x8xbf16>, vector<8x128xbf16>, vector<16x128xf32> -> vector<16x128xf32>
    %334 = arith.addf %330, %333 : vector<16x128xf32>
    %335 = vector.extract_strided_slice %10 {offsets = [2, 0, 0], sizes = [1, 16, 8], strides = [1, 1, 1]} : vector<5x16x8xbf16> to vector<1x16x8xbf16>
    %336 = vector.shape_cast %335 : vector<1x16x8xbf16> to vector<16x8xbf16>
    %cst_161 = arith.constant dense<0.000000e+00> : vector<16x128xf32>
    %337 = tpu.matmul %336, %214, %cst_161 {dimension_numbers = #tpu.dot_dimension_numbers<[1], [0], [0], [1], [0, 0, 1, 1], [], []>} : vector<16x8xbf16>, vector<8x128xbf16>, vector<16x128xf32> -> vector<16x128xf32>
    %338 = arith.addf %334, %337 : vector<16x128xf32>
    %339 = vector.extract_strided_slice %10 {offsets = [3, 0, 0], sizes = [1, 16, 8], strides = [1, 1, 1]} : vector<5x16x8xbf16> to vector<1x16x8xbf16>
    %340 = vector.shape_cast %339 : vector<1x16x8xbf16> to vector<16x8xbf16>
    %cst_162 = arith.constant dense<0.000000e+00> : vector<16x128xf32>
    %341 = tpu.matmul %340, %219, %cst_162 {dimension_numbers = #tpu.dot_dimension_numbers<[1], [0], [0], [1], [0, 0, 1, 1], [], []>} : vector<16x8xbf16>, vector<8x128xbf16>, vector<16x128xf32> -> vector<16x128xf32>
    %342 = arith.addf %338, %341 : vector<16x128xf32>
    %343 = vector.extract_strided_slice %10 {offsets = [4, 0, 0], sizes = [1, 16, 8], strides = [1, 1, 1]} : vector<5x16x8xbf16> to vector<1x16x8xbf16>
    %344 = vector.shape_cast %343 : vector<1x16x8xbf16> to vector<16x8xbf16>
    %cst_163 = arith.constant dense<0.000000e+00> : vector<16x128xf32>
    %345 = tpu.matmul %344, %224, %cst_163 {dimension_numbers = #tpu.dot_dimension_numbers<[1], [0], [0], [1], [0, 0, 1, 1], [], []>} : vector<16x8xbf16>, vector<8x128xbf16>, vector<16x128xf32> -> vector<16x128xf32>
    %346 = arith.addf %342, %345 : vector<16x128xf32>
    %347 = vector.broadcast %11 : vector<16x1xf32> to vector<16x128xf32>
    %348 = arith.addf %346, %347 : vector<16x128xf32>
    %349 = arith.addf %327, %348 : vector<16x128xf32>
    %cst_164 = arith.constant 0.000000e+00 : f32
    %350 = vector.broadcast %cst_164 : f32 to vector<16x128xf32>
    %351 = arith.maximumf %349, %350 : vector<16x128xf32>
    %352 = vector.broadcast %4 : vector<1x128xf32> to vector<16x128xf32>
    %353 = arith.mulf %351, %352 : vector<16x128xf32>
    %354 = vector.shape_cast %353 : vector<16x128xf32> to vector<1x16x128xf32>
    %cst_165 = arith.constant dense<0.000000e+00> : vector<1xf32>
    %355 = vector.multi_reduction <add>, %354, %cst_165 [1, 2] : vector<1x16x128xf32> to vector<1xf32>
    %356 = vector.shape_cast %355 : vector<1xf32> to vector<1x1x1xf32>
    %357 = vector.extract %356[0, 0, 0] : f32 from vector<1x1x1xf32>
    %cst_166 = arith.constant 0.00130208337 : f32
    %358 = arith.mulf %357, %cst_166 : f32
    %359 = vector.broadcast %358 : f32 to vector<16x128xf32>
    %360 = arith.subf %351, %359 : vector<16x128xf32>
    %361 = vector.broadcast %4 : vector<1x128xf32> to vector<16x128xf32>
    %362 = arith.mulf %360, %361 : vector<16x128xf32>
    %363 = arith.mulf %362, %362 : vector<16x128xf32>
    %364 = vector.shape_cast %363 : vector<16x128xf32> to vector<1x16x128xf32>
    %cst_167 = arith.constant dense<0.000000e+00> : vector<1xf32>
    %365 = vector.multi_reduction <add>, %364, %cst_167 [1, 2] : vector<1x16x128xf32> to vector<1xf32>
    %366 = vector.shape_cast %365 : vector<1xf32> to vector<1x1x1xf32>
    %367 = vector.extract %366[0, 0, 0] : f32 from vector<1x1x1xf32>
    %cst_168 = arith.constant 0.00130208337 : f32
    %368 = arith.mulf %367, %cst_168 : f32
    %369 = vector.broadcast %358 : f32 to vector<16x128xf32>
    %370 = arith.subf %351, %369 : vector<16x128xf32>
    %cst_169 = arith.constant 9.99999974E-6 : f32
    %371 = arith.addf %368, %cst_169 : f32
    %372 = math.rsqrt %371 : f32
    %373 = vector.broadcast %372 : f32 to vector<16x128xf32>
    %374 = arith.mulf %370, %373 : vector<16x128xf32>
    %375 = vector.broadcast %12 : vector<16x1xf32> to vector<16x128xf32>
    %376 = arith.mulf %374, %375 : vector<16x128xf32>
    %377 = vector.broadcast %13 : vector<16x1xf32> to vector<16x128xf32>
    %378 = arith.addf %376, %377 : vector<16x128xf32>
    %cst_170 = arith.constant 0.000000e+00 : f32
    %379 = vector.broadcast %cst_170 : f32 to vector<16x128xf32>
    %380 = arith.maximumf %378, %379 : vector<16x128xf32>
    %c1_171 = arith.constant 1 : index
    %c0_172 = arith.constant 0 : index
    %c0_173 = arith.constant 0 : index
    %381 = vector.load %arg8[%c1_171, %c0_172, %c0_173] : memref<2x16x128xf32, #tpu.memory_space<vmem>>, vector<1x16x128xf32>
    %382 = vector.shape_cast %381 : vector<1x16x128xf32> to vector<16x128xf32>
    %383 = vector.shape_cast %380 : vector<16x128xf32> to vector<1x16x128xf32>
    tpu.vector_store %arg8[%c1_171, %c0_172, %c0_173], %383 {strides = array<i32>} : memref<2x16x128xf32, #tpu.memory_space<vmem>>, vector<1x16x128xf32>,
    %384 = arith.mulf %380, %380 : vector<16x128xf32>
    %cst_174 = arith.constant dense<0.000000e+00> : vector<128xf32>
    %385 = vector.multi_reduction <add>, %384, %cst_174 [0] : vector<16x128xf32> to vector<128xf32>
    %386 = vector.shape_cast %385 : vector<128xf32> to vector<1x128xf32>
    %cst_175 = arith.constant 0.000000e+00 : f32
    %387 = vector.broadcast %cst_175 : f32 to vector<1x128xf32>
    %388 = arith.cmpf ogt, %4, %387 : vector<1x128xf32>
    %cst_176 = arith.constant -1.000000e+00 : f32
    %389 = vector.broadcast %cst_176 : f32 to vector<1x128xf32>
    %390 = arith.select %388, %386, %389 : vector<1x128xi1>, vector<1x128xf32>
    %c1_177 = arith.constant 1 : index
    %c0_178 = arith.constant 0 : index
    %c0_179 = arith.constant 0 : index
    %391 = vector.load %arg9[%c1_177, %c0_178, %c0_179] : memref<2x1x128xf32, #tpu.memory_space<vmem>>, vector<1x1x128xf32>
    %392 = vector.shape_cast %391 : vector<1x1x128xf32> to vector<1x128xf32>
    %393 = vector.shape_cast %390 : vector<1x128xf32> to vector<1x1x128xf32>
    tpu.vector_store %arg9[%c1_177, %c0_178, %c0_179], %393 {strides = array<i32>} : memref<2x1x128xf32, #tpu.memory_space<vmem>>, vector<1x1x128xf32>,
    return
  }
}

</mosaic_0001>

<llo_original>
// kernel: mesh_conv_net_forward.2
$region0: #{mesh_conv_net_forward.2}
  #allocation0 [shape = 'u32[]', space=smem, size = 0x4, offset = 0x4, fixed_abs, tag = 'smem constant byte address 0x4 - core index']
  #allocation1 [shape = 'u32[72,128]{1,0:T(1,128)}', space=vmem, size = 0x9000, scoped, tag = 'internal scratch']
  %s0 = inlined_call_operand.vmem [shape: f32[2,5,128], index: 0, kind: input, shape index: {}]
  %s1 = inlined_call_operand.vmem [shape: bf16[2,4,128,128], index: 1, kind: input, shape index: {}]
  %s2 = inlined_call_operand.vmem [shape: f32[5,8,5], index: 2, kind: input, shape index: {}]
  %s3 = inlined_call_operand.vmem [shape: f32[5,8,8], index: 3, kind: input, shape index: {}]
  %s4 = inlined_call_operand.vmem [shape: f32[5,8,5], index: 4, kind: input, shape index: {}]
  %s5 = inlined_call_operand.vmem [shape: f32[8,1], index: 5, kind: input, shape index: {}]
  %s6 = inlined_call_operand.vmem [shape: f32[8,1], index: 6, kind: input, shape index: {}]
  %s7 = inlined_call_operand.vmem [shape: f32[8,1], index: 7, kind: input, shape index: {}]
  %s8 = inlined_call_operand.vmem [shape: f32[2,8,128], index: 8, kind: output, shape index: {0}]
  %s9 = inlined_call_operand.vmem [shape: f32[2,1,128], index: 9, kind: output, shape index: {1}]
  %10 = xla_tuple %s8, %s9
  %s11 = sld [smem:[#allocation0]]
  $region50: #{mesh_conv_net_forward.2} parent=0
    _
  %s13 = ssub.s32 1, %s11
  %s14 = scalar_select 0, %s13, %s11
  // Predicated region
  $region2: #{mesh_conv_net_forward.2} parent=0 // pred_check
    _
  $region3: #{mesh_conv_net_forward.2} parent=0 // pred_check_branch
    %16 = sbr.rel (0) target = $region5
  $region4: #{mesh_conv_net_forward.2} parent=0 // pred_region
    _
  $region5: #{mesh_conv_net_forward.2} parent=0 // pred_fallthru
    _
  // Predicated region
  $region6: #{mesh_conv_net_forward.2} parent=0 // pred_check
    _
  $region7: #{mesh_conv_net_forward.2} parent=0 // pred_check_branch
    %18 = sbr.rel (0) target = $region9
  $region8: #{mesh_conv_net_forward.2} parent=0 // pred_region
    _
  $region9: #{mesh_conv_net_forward.2} parent=0 // pred_fallthru
    _
  // Predicated region
  $region10: #{mesh_conv_net_forward.2} parent=0 // pred_check
    _
  $region11: #{mesh_conv_net_forward.2} parent=0 // pred_check_branch
    %20 = sbr.rel (0) target = $region13
  $region12: #{mesh_conv_net_forward.2} parent=0 // pred_region
    _
  $region13: #{mesh_conv_net_forward.2} parent=0 // pred_fallthru
    _
  // Predicated region
  $region14: #{mesh_conv_net_forward.2} parent=0 // pred_check
    _
  $region15: #{mesh_conv_net_forward.2} parent=0 // pred_check_branch
    %22 = sbr.rel (0) target = $region17
  $region16: #{mesh_conv_net_forward.2} parent=0 // pred_region
    _
  $region17: #{mesh_conv_net_forward.2} parent=0 // pred_fallthru
    _
  // Predicated region
  $region18: #{mesh_conv_net_forward.2} parent=0 // pred_check
    _
  $region19: #{mesh_conv_net_forward.2} parent=0 // pred_check_branch
    %24 = sbr.rel (0) target = $region21
  $region20: #{mesh_conv_net_forward.2} parent=0 // pred_region
    _
  $region21: #{mesh_conv_net_forward.2} parent=0 // pred_fallthru
    _
  // Predicated region
  $region22: #{mesh_conv_net_forward.2} parent=0 // pred_check
    _
  $region23: #{mesh_conv_net_forward.2} parent=0 // pred_check_branch
    %26 = sbr.rel (0) target = $region25
  $region24: #{mesh_conv_net_forward.2} parent=0 // pred_region
    _
  $region25: #{mesh_conv_net_forward.2} parent=0 // pred_fallthru
    _
  // Predicated region
  $region26: #{mesh_conv_net_forward.2} parent=0 // pred_check
    _
  $region27: #{mesh_conv_net_forward.2} parent=0 // pred_check_branch
    %28 = sbr.rel (0) target = $region29
  $region28: #{mesh_conv_net_forward.2} parent=0 // pred_region
    _
  $region29: #{mesh_conv_net_forward.2} parent=0 // pred_fallthru
    _
  // Predicated region
  $region30: #{mesh_conv_net_forward.2} parent=0 // pred_check
    _
  $region31: #{mesh_conv_net_forward.2} parent=0 // pred_check_branch
    %30 = sbr.rel (0) target = $region33
  $region32: #{mesh_conv_net_forward.2} parent=0 // pred_region
    _
  $region33: #{mesh_conv_net_forward.2} parent=0 // pred_fallthru
    _
  %v32 = vlaneseq
  %v33 = vand.u32 %v32, 127
  %vm34 = vcmp.lt.s32.totalorder %v33, 64
  %v35 = vsel %vm34, 1, 0
  %v36 = vcvt.s32.f32 %v35
  %v37 = vld [vmem:[%s2] sm:$0xff]
  %v38 = vld [vmem:[%s2 + $0x8] sm:$0xff]
  %v39 = vld [vmem:[%s2 + $0x10] sm:$0xff]
  %v40 = vld [vmem:[%s2 + $0x18] sm:$0xff]
  %v41 = vld [vmem:[%s2 + $0x20] sm:$0xff]
  %v42 = vpack.c.bf16 %v37, %v37
  %v43 = vpack.c.bf16 %v38, %v38
  %v44 = vpack.c.bf16 %v39, %v39
  %v45 = vpack.c.bf16 %v40, %v40
  %v46 = vpack.c.bf16 %v41, %v41
  %v47 = vld [vmem:[%s3] sm:$0xff]
  %v48 = vld [vmem:[%s3 + $0x8] sm:$0xff]
  %v49 = vld [vmem:[%s3 + $0x10] sm:$0xff]
  %v50 = vld [vmem:[%s3 + $0x18] sm:$0xff]
  %v51 = vld [vmem:[%s3 + $0x20] sm:$0xff]
  %v52 = vpack.c.bf16 %v47, %v47
  %v53 = vpack.c.bf16 %v48, %v48
  %v54 = vpack.c.bf16 %v49, %v49
  %v55 = vpack.c.bf16 %v50, %v50
  %v56 = vpack.c.bf16 %v51, %v51
  %v57 = vld [vmem:[%s4] sm:$0xff]
  %v58 = vld [vmem:[%s4 + $0x8] sm:$0xff]
  %v59 = vld [vmem:[%s4 + $0x10] sm:$0xff]
  %v60 = vld [vmem:[%s4 + $0x18] sm:$0xff]
  %v61 = vld [vmem:[%s4 + $0x20] sm:$0xff]
  %v62 = vpack.c.bf16 %v57, %v57
  %v63 = vpack.c.bf16 %v58, %v58
  %v64 = vpack.c.bf16 %v59, %v59
  %v65 = vpack.c.bf16 %v60, %v60
  %v66 = vpack.c.bf16 %v61, %v61
  %v67 = vld [vmem:[%s5] sm:$0xff]
  %v68 = vld [vmem:[%s6] sm:$0xff]
  %v69 = vld [vmem:[%s7] sm:$0xff]
  %v70 = vld [vmem:[%s0] sm:$0x1f]
  %v71 = vpack.c.bf16 %v70, %v70
  %v72 = vld [vmem:[%s1] sm:$0xf]
  %v73 = vld [vmem:[%s1 + $0x4] sm:$0xf]
  %v74 = vld [vmem:[%s1 + $0x8] sm:$0xf]
  %v75 = vld [vmem:[%s1 + $0xc] sm:$0xf]
  %v76 = vld [vmem:[%s1 + $0x10] sm:$0xf]
  %v77 = vld [vmem:[%s1 + $0x14] sm:$0xf]
  %v78 = vld [vmem:[%s1 + $0x18] sm:$0xf]
  %v79 = vld [vmem:[%s1 + $0x1c] sm:$0xf]
  %v80 = vld [vmem:[%s1 + $0x20] sm:$0xf]
  %v81 = vld [vmem:[%s1 + $0x24] sm:$0xf]
  %v82 = vld [vmem:[%s1 + $0x28] sm:$0xf]
  %v83 = vld [vmem:[%s1 + $0x2c] sm:$0xf]
  %v84 = vld [vmem:[%s1 + $0x30] sm:$0xf]
  %v85 = vld [vmem:[%s1 + $0x34] sm:$0xf]
  %v86 = vld [vmem:[%s1 + $0x38] sm:$0xf]
  %v87 = vld [vmem:[%s1 + $0x3c] sm:$0xf]
  %v104 = vunpack.c.l.b16 %v72
  %v105 = vunpack.c.l.b16 %v73
  %v106 = vunpack.c.l.b16 %v74
  %v107 = vunpack.c.l.b16 %v75
  %v108 = vunpack.c.l.b16 %v76
  %v109 = vunpack.c.l.b16 %v77
  %v110 = vunpack.c.l.b16 %v78
  %v111 = vunpack.c.l.b16 %v79
  %v112 = vunpack.c.l.b16 %v80
  %v113 = vunpack.c.l.b16 %v81
  %v114 = vunpack.c.l.b16 %v82
  %v115 = vunpack.c.l.b16 %v83
  %v116 = vunpack.c.l.b16 %v84
  %v117 = vunpack.c.l.b16 %v85
  %v118 = vunpack.c.l.b16 %v86
  %v119 = vunpack.c.l.b16 %v87
  %v120 = vpack.c.b16 %v105, %v104
  %v121 = vpack.c.b16 %v107, %v106
  %v122 = vpack.c.b16 %v109, %v108
  %v123 = vpack.c.b16 %v111, %v110
  %v124 = vpack.c.b16 %v113, %v112
  %v125 = vpack.c.b16 %v115, %v114
  %v126 = vpack.c.b16 %v117, %v116
  %v127 = vpack.c.b16 %v119, %v118
  %136 = vmatpush.bf16.msra.mxu0 %v127
  %137 = vmatpush.bf16.msra.mxu0 %v126
  %138 = vmatpush.bf16.msra.mxu0 %v125
  %139 = vmatpush.bf16.msra.mxu0 %v124
  %140 = vmatpush.bf16.msra.mxu0 %v123
  %141 = vmatpush.bf16.msra.mxu0 %v122
  %142 = vmatpush.bf16.msra.mxu0 %v121
  %143 = vmatpush.bf16.msra.mxu0 %v120
  %144 = vmatmul.bf16.gmra.mxu0 %v71
  %v145 = vpop.f32.mrf.mxu0
  %v146 = vadd.f32 0.0, %v145
  %v147 = vpop.f32.mrf.mxu0
  %148 = vdwg.mxu0
  %v149 = vpack.c.bf16 %v146, %v146
  %s150 = scalar_lea.vmem %s1, 64
  %v151 = vld [vmem:[%s150] sm:$0xf]
  %v152 = vld [vmem:[%s150 + $0x4] sm:$0xf]
  %v153 = vld [vmem:[%s150 + $0x8] sm:$0xf]
  %v154 = vld [vmem:[%s150 + $0xc] sm:$0xf]
  %v155 = vld [vmem:[%s150 + $0x10] sm:$0xf]
  %v156 = vld [vmem:[%s150 + $0x14] sm:$0xf]
  %v157 = vld [vmem:[%s150 + $0x18] sm:$0xf]
  %v158 = vld [vmem:[%s150 + $0x1c] sm:$0xf]
  %v159 = vld [vmem:[%s150 + $0x20] sm:$0xf]
  %v160 = vld [vmem:[%s150 + $0x24] sm:$0xf]
  %v161 = vld [vmem:[%s150 + $0x28] sm:$0xf]
  %v162 = vld [vmem:[%s150 + $0x2c] sm:$0xf]
  %v163 = vld [vmem:[%s150 + $0x30] sm:$0xf]
  %v164 = vld [vmem:[%s150 + $0x34] sm:$0xf]
  %v165 = vld [vmem:[%s150 + $0x38] sm:$0xf]
  %v166 = vld [vmem:[%s150 + $0x3c] sm:$0xf]
  %v183 = vunpack.c.l.b16 %v151
  %v184 = vunpack.c.l.b16 %v152
  %v185 = vunpack.c.l.b16 %v153
  %v186 = vunpack.c.l.b16 %v154
  %v187 = vunpack.c.l.b16 %v155
  %v188 = vunpack.c.l.b16 %v156
  %v189 = vunpack.c.l.b16 %v157
  %v190 = vunpack.c.l.b16 %v158
  %v191 = vunpack.c.l.b16 %v159
  %v192 = vunpack.c.l.b16 %v160
  %v193 = vunpack.c.l.b16 %v161
  %v194 = vunpack.c.l.b16 %v162
  %v195 = vunpack.c.l.b16 %v163
  %v196 = vunpack.c.l.b16 %v164
  %v197 = vunpack.c.l.b16 %v165
  %v198 = vunpack.c.l.b16 %v166
  %v199 = vpack.c.b16 %v184, %v183
  %v200 = vpack.c.b16 %v186, %v185
  %v201 = vpack.c.b16 %v188, %v187
  %v202 = vpack.c.b16 %v190, %v189
  %v203 = vpack.c.b16 %v192, %v191
  %v204 = vpack.c.b16 %v194, %v193
  %v205 = vpack.c.b16 %v196, %v195
  %v206 = vpack.c.b16 %v198, %v197
  %215 = vmatpush.bf16.msra.mxu0 %v206
  %216 = vmatpush.bf16.msra.mxu0 %v205
  %217 = vmatpush.bf16.msra.mxu0 %v204
  %218 = vmatpush.bf16.msra.mxu0 %v203
  %219 = vmatpush.bf16.msra.mxu0 %v202
  %220 = vmatpush.bf16.msra.mxu0 %v201
  %221 = vmatpush.bf16.msra.mxu0 %v200
  %222 = vmatpush.bf16.msra.mxu0 %v199
  %223 = vmatmul.bf16.gmra.mxu0 %v71
  %v224 = vpop.f32.mrf.mxu0
  %v225 = vadd.f32 0.0, %v224
  %v226 = vpop.f32.mrf.mxu0
  %227 = vdwg.mxu0
  %v228 = vpack.c.bf16 %v225, %v225
  %s229 = scalar_lea.vmem %s1, 128
  %v230 = vld [vmem:[%s229] sm:$0xf]
  %v231 = vld [vmem:[%s229 + $0x4] sm:$0xf]
  %v232 = vld [vmem:[%s229 + $0x8] sm:$0xf]
  %v233 = vld [vmem:[%s229 + $0xc] sm:$0xf]
  %v234 = vld [vmem:[%s229 + $0x10] sm:$0xf]
  %v235 = vld [vmem:[%s229 + $0x14] sm:$0xf]
  %v236 = vld [vmem:[%s229 + $0x18] sm:$0xf]
  %v237 = vld [vmem:[%s229 + $0x1c] sm:$0xf]
  %v238 = vld [vmem:[%s229 + $0x20] sm:$0xf]
  %v239 = vld [vmem:[%s229 + $0x24] sm:$0xf]
  %v240 = vld [vmem:[%s229 + $0x28] sm:$0xf]
  %v241 = vld [vmem:[%s229 + $0x2c] sm:$0xf]
  %v242 = vld [vmem:[%s229 + $0x30] sm:$0xf]
  %v243 = vld [vmem:[%s229 + $0x34] sm:$0xf]
  %v244 = vld [vmem:[%s229 + $0x38] sm:$0xf]
  %v245 = vld [vmem:[%s229 + $0x3c] sm:$0xf]
  %v262 = vunpack.c.l.b16 %v230
  %v263 = vunpack.c.l.b16 %v231
  %v264 = vunpack.c.l.b16 %v232
  %v265 = vunpack.c.l.b16 %v233
  %v266 = vunpack.c.l.b16 %v234
  %v267 = vunpack.c.l.b16 %v235
  %v268 = vunpack.c.l.b16 %v236
  %v269 = vunpack.c.l.b16 %v237
  %v270 = vunpack.c.l.b16 %v238
  %v271 = vunpack.c.l.b16 %v239
  %v272 = vunpack.c.l.b16 %v240
  %v273 = vunpack.c.l.b16 %v241
  %v274 = vunpack.c.l.b16 %v242
  %v275 = vunpack.c.l.b16 %v243
  %v276 = vunpack.c.l.b16 %v244
  %v277 = vunpack.c.l.b16 %v245
  %v278 = vpack.c.b16 %v263, %v262
  %v279 = vpack.c.b16 %v265, %v264
  %v280 = vpack.c.b16 %v267, %v266
  %v281 = vpack.c.b16 %v269, %v268
  %v282 = vpack.c.b16 %v271, %v270
  %v283 = vpack.c.b16 %v273, %v272
  %v284 = vpack.c.b16 %v275, %v274
  %v285 = vpack.c.b16 %v277, %v276
  %294 = vmatpush.bf16.msra.mxu0 %v285
  %295 = vmatpush.bf16.msra.mxu0 %v284
  %296 = vmatpush.bf16.msra.mxu0 %v283
  %297 = vmatpush.bf16.msra.mxu0 %v282
  %298 = vmatpush.bf16.msra.mxu0 %v281
  %299 = vmatpush.bf16.msra.mxu0 %v280
  %300 = vmatpush.bf16.msra.mxu0 %v279
  %301 = vmatpush.bf16.msra.mxu0 %v278
  %302 = vmatmul.bf16.gmra.mxu0 %v71
  %v303 = vpop.f32.mrf.mxu0
  %v304 = vadd.f32 0.0, %v303
  %v305 = vpop.f32.mrf.mxu0
  %306 = vdwg.mxu0
  %v307 = vand.u32 2147483647, %v304
  %v308 = vpack.c.bf16 %v307, %v307
  %s309 = scalar_lea.vmem %s1, 192
  %v310 = vld [vmem:[%s309] sm:$0xf]
  %v311 = vld [vmem:[%s309 + $0x4] sm:$0xf]
  %v312 = vld [vmem:[%s309 + $0x8] sm:$0xf]
  %v313 = vld [vmem:[%s309 + $0xc] sm:$0xf]
  %v314 = vld [vmem:[%s309 + $0x10] sm:$0xf]
  %v315 = vld [vmem:[%s309 + $0x14] sm:$0xf]
  %v316 = vld [vmem:[%s309 + $0x18] sm:$0xf]
  %v317 = vld [vmem:[%s309 + $0x1c] sm:$0xf]
  %v318 = vld [vmem:[%s309 + $0x20] sm:$0xf]
  %v319 = vld [vmem:[%s309 + $0x24] sm:$0xf]
  %v320 = vld [vmem:[%s309 + $0x28] sm:$0xf]
  %v321 = vld [vmem:[%s309 + $0x2c] sm:$0xf]
  %v322 = vld [vmem:[%s309 + $0x30] sm:$0xf]
  %v323 = vld [vmem:[%s309 + $0x34] sm:$0xf]
  %v324 = vld [vmem:[%s309 + $0x38] sm:$0xf]
  %v325 = vld [vmem:[%s309 + $0x3c] sm:$0xf]
  %v342 = vunpack.c.l.b16 %v310
  %v343 = vunpack.c.l.b16 %v311
  %v344 = vunpack.c.l.b16 %v312
  %v345 = vunpack.c.l.b16 %v313
  %v346 = vunpack.c.l.b16 %v314
  %v347 = vunpack.c.l.b16 %v315
  %v348 = vunpack.c.l.b16 %v316
  %v349 = vunpack.c.l.b16 %v317
  %v350 = vunpack.c.l.b16 %v318
  %v351 = vunpack.c.l.b16 %v319
  %v352 = vunpack.c.l.b16 %v320
  %v353 = vunpack.c.l.b16 %v321
  %v354 = vunpack.c.l.b16 %v322
  %v355 = vunpack.c.l.b16 %v323
  %v356 = vunpack.c.l.b16 %v324
  %v357 = vunpack.c.l.b16 %v325
  %v358 = vpack.c.b16 %v343, %v342
  %v359 = vpack.c.b16 %v345, %v344
  %v360 = vpack.c.b16 %v347, %v346
  %v361 = vpack.c.b16 %v349, %v348
  %v362 = vpack.c.b16 %v351, %v350
  %v363 = vpack.c.b16 %v353, %v352
  %v364 = vpack.c.b16 %v355, %v354
  %v365 = vpack.c.b16 %v357, %v356
  %374 = vmatpush.bf16.msra.mxu0 %v365
  %375 = vmatpush.bf16.msra.mxu0 %v364
  %376 = vmatpush.bf16.msra.mxu0 %v363
  %377 = vmatpush.bf16.msra.mxu0 %v362
  %378 = vmatpush.bf16.msra.mxu0 %v361
  %379 = vmatpush.bf16.msra.mxu0 %v360
  %380 = vmatpush.bf16.msra.mxu0 %v359
  %381 = vmatpush.bf16.msra.mxu0 %v358
  %382 = vmatmul.bf16.gmra.mxu0 %v71
  %v383 = vpop.f32.mrf.mxu0
  %v384 = vadd.f32 0.0, %v383
  %v385 = vpop.f32.mrf.mxu0
  %386 = vdwg.mxu0
  %v387 = vand.u32 2147483647, %v384
  %v388 = vpack.c.bf16 %v387, %v387
  %vm389 = vcmask 39936
  %v391 = vsel %vm389, %v43, 0
  %vm393 = vcmask 1041408
  %vm394 = vcmask 1042432
  %v395 = vsel %vm393, 4294967295, 65535
  %v396 = vsel %vm394, %v395, 0
  %v398 = vand.u32 %v149, %v396
  %400 = vmatpush.bf16.msra.mxu0 0
  %401 = vmatpush.bf16.msra.mxu0 0
  %402 = vmatpush.bf16.msra.mxu0 0
  %403 = vmatpush.bf16.msra.mxu0 0
  %404 = vmatpush.bf16.msra.mxu0 0
  %405 = vmatpush.bf16.msra.mxu0 0
  %406 = vmatpush.bf16.msra.mxu0 0
  %407 = vmatpush.bf16.msra.mxu0 %v398
  %408 = vmatmul.bf16.gmra.mxu0 %v391
  %v409 = vpop.f32.mrf.mxu0
  %v410 = vadd.f32 0.0, %v409
  %v411 = vpop.f32.mrf.mxu0
  %412 = vdwg.mxu0
  %v414 = vsel %vm389, %v42, 0
  %v417 = vand.u32 %v71, %v396
  %419 = vmatpush.bf16.msra.mxu0 0
  %420 = vmatpush.bf16.msra.mxu0 0
  %421 = vmatpush.bf16.msra.mxu0 0
  %422 = vmatpush.bf16.msra.mxu0 0
  %423 = vmatpush.bf16.msra.mxu0 0
  %424 = vmatpush.bf16.msra.mxu0 0
  %425 = vmatpush.bf16.msra.mxu0 0
  %426 = vmatpush.bf16.msra.mxu0 %v417
  %427 = vmatmul.bf16.gmra.mxu0 %v414
  %v428 = vpop.f32.mrf.mxu0
  %v429 = vadd.f32 %v410, %v428
  %v430 = vpop.f32.mrf.mxu0
  %431 = vdwg.mxu0
  %v433 = vsel %vm389, %v44, 0
  %v436 = vand.u32 %v228, %v396
  %438 = vmatpush.bf16.msra.mxu0 0
  %439 = vmatpush.bf16.msra.mxu0 0
  %440 = vmatpush.bf16.msra.mxu0 0
  %441 = vmatpush.bf16.msra.mxu0 0
  %442 = vmatpush.bf16.msra.mxu0 0
  %443 = vmatpush.bf16.msra.mxu0 0
  %444 = vmatpush.bf16.msra.mxu0 0
  %445 = vmatpush.bf16.msra.mxu0 %v436
  %446 = vmatmul.bf16.gmra.mxu0 %v433
  %v447 = vpop.f32.mrf.mxu0
  %v448 = vadd.f32 0.0, %v447
  %v449 = vpop.f32.mrf.mxu0
  %450 = vdwg.mxu0
  %v451 = vadd.f32 %v429, %v448
  %v453 = vsel %vm389, %v45, 0
  %v456 = vand.u32 %v308, %v396
  %458 = vmatpush.bf16.msra.mxu0 0
  %459 = vmatpush.bf16.msra.mxu0 0
  %460 = vmatpush.bf16.msra.mxu0 0
  %461 = vmatpush.bf16.msra.mxu0 0
  %462 = vmatpush.bf16.msra.mxu0 0
  %463 = vmatpush.bf16.msra.mxu0 0
  %464 = vmatpush.bf16.msra.mxu0 0
  %465 = vmatpush.bf16.msra.mxu0 %v456
  %466 = vmatmul.bf16.gmra.mxu0 %v453
  %v467 = vpop.f32.mrf.mxu0
  %v468 = vadd.f32 0.0, %v467
  %v469 = vpop.f32.mrf.mxu0
  %470 = vdwg.mxu0
  %v471 = vadd.f32 %v451, %v468
  %v473 = vsel %vm389, %v46, 0
  %v476 = vand.u32 %v388, %v396
  %478 = vmatpush.bf16.msra.mxu0 0
  %479 = vmatpush.bf16.msra.mxu0 0
  %480 = vmatpush.bf16.msra.mxu0 0
  %481 = vmatpush.bf16.msra.mxu0 0
  %482 = vmatpush.bf16.msra.mxu0 0
  %483 = vmatpush.bf16.msra.mxu0 0
  %484 = vmatpush.bf16.msra.mxu0 0
  %485 = vmatpush.bf16.msra.mxu0 %v476
  %486 = vmatmul.bf16.gmra.mxu0 %v473
  %v487 = vpop.f32.mrf.mxu0
  %v488 = vadd.f32 0.0, %v487
  %v489 = vpop.f32.mrf.mxu0
  %490 = vdwg.mxu0
  %v491 = vadd.f32 %v471, %v488
  %v492 = vmul.f32 %v491, %v36
  %493 = vadd.xlane.f32.xlu0 %v492
  %v494 = vpop.xlane.xlu0 %493
  %v495 = vmul.f32 %v494, 0.015625
  %v496 = vsub.f32 %v491, %v495
  %v497 = vmul.f32 %v496, %v36
  %v498 = vmul.f32 %v497, %v497
  %499 = vadd.xlane.f32.xlu0 %v498
  %v500 = vpop.xlane.xlu0 %499
  %v501 = vmul.f32 %v500, 0.015625
  %v502 = vadd.f32 %v501, 1e-05
  %v503 = vrsqrt.pop %v502
  %v504 = vmul.f32 %v503, %v502
  %v505 = vmul.f32 %v504, %v503
  %v506 = vmul.f32 0.5, %v505
  %v507 = vsub.f32 1.5, %v506
  %v508 = vmul.f32 %v503, %v507
  %vm509 = vweird.f32 %v502
  %vm510 = vweird.f32 %v503
  %vm511 = vmor %vm509, %vm510
  %v512 = vsel %vm511, %v503, %v508
  %v513 = vmul.f32 %v496, %v512
  %v514 = vmax.f32 %v513, 0.0
  %v515 = vpack.c.bf16 %v514, %v514
  %516 = vmatpush.bf16.msra.mxu0 %v127
  %517 = vmatpush.bf16.msra.mxu0 %v126
  %518 = vmatpush.bf16.msra.mxu0 %v125
  %519 = vmatpush.bf16.msra.mxu0 %v124
  %520 = vmatpush.bf16.msra.mxu0 %v123
  %521 = vmatpush.bf16.msra.mxu0 %v122
  %522 = vmatpush.bf16.msra.mxu0 %v121
  %523 = vmatpush.bf16.msra.mxu0 %v120
  %524 = vmatmul.bf16.gmra.mxu0 %v515
  %v525 = vpop.f32.mrf.mxu0
  %v526 = vadd.f32 0.0, %v525
  %v527 = vpop.f32.mrf.mxu0
  %528 = vdwg.mxu0
  %v529 = vpack.c.bf16 %v526, %v526
  %530 = vmatpush.bf16.msra.mxu0 %v206
  %531 = vmatpush.bf16.msra.mxu0 %v205
  %532 = vmatpush.bf16.msra.mxu0 %v204
  %533 = vmatpush.bf16.msra.mxu0 %v203
  %534 = vmatpush.bf16.msra.mxu0 %v202
  %535 = vmatpush.bf16.msra.mxu0 %v201
  %536 = vmatpush.bf16.msra.mxu0 %v200
  %537 = vmatpush.bf16.msra.mxu0 %v199
  %538 = vmatmul.bf16.gmra.mxu0 %v515
  %v539 = vpop.f32.mrf.mxu0
  %v540 = vadd.f32 0.0, %v539
  %v541 = vpop.f32.mrf.mxu0
  %542 = vdwg.mxu0
  %v543 = vpack.c.bf16 %v540, %v540
  %544 = vmatpush.bf16.msra.mxu0 %v285
  %545 = vmatpush.bf16.msra.mxu0 %v284
  %546 = vmatpush.bf16.msra.mxu0 %v283
  %547 = vmatpush.bf16.msra.mxu0 %v282
  %548 = vmatpush.bf16.msra.mxu0 %v281
  %549 = vmatpush.bf16.msra.mxu0 %v280
  %550 = vmatpush.bf16.msra.mxu0 %v279
  %551 = vmatpush.bf16.msra.mxu0 %v278
  %552 = vmatmul.bf16.gmra.mxu0 %v515
  %v553 = vpop.f32.mrf.mxu0
  %v554 = vadd.f32 0.0, %v553
  %v555 = vpop.f32.mrf.mxu0
  %556 = vdwg.mxu0
  %v557 = vand.u32 2147483647, %v554
  %v558 = vpack.c.bf16 %v557, %v557
  %559 = vmatpush.bf16.msra.mxu0 %v365
  %560 = vmatpush.bf16.msra.mxu0 %v364
  %561 = vmatpush.bf16.msra.mxu0 %v363
  %562 = vmatpush.bf16.msra.mxu0 %v362
  %563 = vmatpush.bf16.msra.mxu0 %v361
  %564 = vmatpush.bf16.msra.mxu0 %v360
  %565 = vmatpush.bf16.msra.mxu0 %v359
  %566 = vmatpush.bf16.msra.mxu0 %v358
  %567 = vmatmul.bf16.gmra.mxu0 %v515
  %v568 = vpop.f32.mrf.mxu0
  %v569 = vadd.f32 0.0, %v568
  %v570 = vpop.f32.mrf.mxu0
  %571 = vdwg.mxu0
  %v572 = vand.u32 2147483647, %v569
  %v573 = vpack.c.bf16 %v572, %v572
  %vm574 = vcmask 64512
  %v576 = vsel %vm574, %v53, 0
  %vm578 = vcmask 1043456
  %v580 = vsel %vm578, %v529, 0
  %582 = vmatpush.bf16.msra.mxu0 0
  %583 = vmatpush.bf16.msra.mxu0 0
  %584 = vmatpush.bf16.msra.mxu0 0
  %585 = vmatpush.bf16.msra.mxu0 0
  %586 = vmatpush.bf16.msra.mxu0 0
  %587 = vmatpush.bf16.msra.mxu0 0
  %588 = vmatpush.bf16.msra.mxu0 0
  %589 = vmatpush.bf16.msra.mxu0 %v580
  %590 = vmatmul.bf16.gmra.mxu0 %v576
  %v591 = vpop.f32.mrf.mxu0
  %v592 = vadd.f32 0.0, %v591
  %v593 = vpop.f32.mrf.mxu0
  %594 = vdwg.mxu0
  %v596 = vsel %vm574, %v52, 0
  %v599 = vsel %vm578, %v515, 0
  %601 = vmatpush.bf16.msra.mxu0 0
  %602 = vmatpush.bf16.msra.mxu0 0
  %603 = vmatpush.bf16.msra.mxu0 0
  %604 = vmatpush.bf16.msra.mxu0 0
  %605 = vmatpush.bf16.msra.mxu0 0
  %606 = vmatpush.bf16.msra.mxu0 0
  %607 = vmatpush.bf16.msra.mxu0 0
  %608 = vmatpush.bf16.msra.mxu0 %v599
  %609 = vmatmul.bf16.gmra.mxu0 %v596
  %v610 = vpop.f32.mrf.mxu0
  %v611 = vadd.f32 %v592, %v610
  %v612 = vpop.f32.mrf.mxu0
  %613 = vdwg.mxu0
  %v615 = vsel %vm574, %v54, 0
  %v618 = vsel %vm578, %v543, 0
  %620 = vmatpush.bf16.msra.mxu0 0
  %621 = vmatpush.bf16.msra.mxu0 0
  %622 = vmatpush.bf16.msra.mxu0 0
  %623 = vmatpush.bf16.msra.mxu0 0
  %624 = vmatpush.bf16.msra.mxu0 0
  %625 = vmatpush.bf16.msra.mxu0 0
  %626 = vmatpush.bf16.msra.mxu0 0
  %627 = vmatpush.bf16.msra.mxu0 %v618
  %628 = vmatmul.bf16.gmra.mxu0 %v615
  %v629 = vpop.f32.mrf.mxu0
  %v630 = vadd.f32 0.0, %v629
  %v631 = vpop.f32.mrf.mxu0
  %632 = vdwg.mxu0
  %v633 = vadd.f32 %v611, %v630
  %v635 = vsel %vm574, %v55, 0
  %v638 = vsel %vm578, %v558, 0
  %640 = vmatpush.bf16.msra.mxu0 0
  %641 = vmatpush.bf16.msra.mxu0 0
  %642 = vmatpush.bf16.msra.mxu0 0
  %643 = vmatpush.bf16.msra.mxu0 0
  %644 = vmatpush.bf16.msra.mxu0 0
  %645 = vmatpush.bf16.msra.mxu0 0
  %646 = vmatpush.bf16.msra.mxu0 0
  %647 = vmatpush.bf16.msra.mxu0 %v638
  %648 = vmatmul.bf16.gmra.mxu0 %v635
  %v649 = vpop.f32.mrf.mxu0
  %v650 = vadd.f32 0.0, %v649
  %v651 = vpop.f32.mrf.mxu0
  %652 = vdwg.mxu0
  %v653 = vadd.f32 %v633, %v650
  %v655 = vsel %vm574, %v56, 0
  %v658 = vsel %vm578, %v573, 0
  %660 = vmatpush.bf16.msra.mxu0 0
  %661 = vmatpush.bf16.msra.mxu0 0
  %662 = vmatpush.bf16.msra.mxu0 0
  %663 = vmatpush.bf16.msra.mxu0 0
  %664 = vmatpush.bf16.msra.mxu0 0
  %665 = vmatpush.bf16.msra.mxu0 0
  %666 = vmatpush.bf16.msra.mxu0 0
  %667 = vmatpush.bf16.msra.mxu0 %v658
  %668 = vmatmul.bf16.gmra.mxu0 %v655
  %v669 = vpop.f32.mrf.mxu0
  %v670 = vadd.f32 0.0, %v669
  %v671 = vpop.f32.mrf.mxu0
  %672 = vdwg.mxu0
  %v673 = vadd.f32 %v653, %v670
  %v674 = vmul.f32 %v673, %v36
  %675 = vadd.xlane.f32.xlu0 %v674
  %v676 = vpop.xlane.xlu0 %675
  %v677 = vmul.f32 %v676, 0.015625
  %v678 = vsub.f32 %v673, %v677
  %v679 = vmul.f32 %v678, %v36
  %v680 = vmul.f32 %v679, %v679
  %681 = vadd.xlane.f32.xlu0 %v680
  %v682 = vpop.xlane.xlu0 %681
  %v683 = vmul.f32 %v682, 0.015625
  %v684 = vadd.f32 %v683, 1e-05
  %v685 = vrsqrt.pop %v684
  %v686 = vmul.f32 %v685, %v684
  %v687 = vmul.f32 %v686, %v685
  %v688 = vmul.f32 0.5, %v687
  %v689 = vsub.f32 1.5, %v688
  %v690 = vmul.f32 %v685, %v689
  %vm691 = vweird.f32 %v684
  %vm692 = vweird.f32 %v685
  %vm693 = vmor %vm691, %vm692
  %v694 = vsel %vm693, %v685, %v690
  %v695 = vmul.f32 %v678, %v694
  %v697 = vsel %vm389, %v63, 0
  %699 = vmatpush.bf16.msra.mxu0 0
  %700 = vmatpush.bf16.msra.mxu0 0
  %701 = vmatpush.bf16.msra.mxu0 0
  %702 = vmatpush.bf16.msra.mxu0 0
  %703 = vmatpush.bf16.msra.mxu0 0
  %704 = vmatpush.bf16.msra.mxu0 0
  %705 = vmatpush.bf16.msra.mxu0 0
  %706 = vmatpush.bf16.msra.mxu0 %v398
  %707 = vmatmul.bf16.gmra.mxu0 %v697
  %v708 = vpop.f32.mrf.mxu0
  %v709 = vadd.f32 0.0, %v708
  %v710 = vpop.f32.mrf.mxu0
  %711 = vdwg.mxu0
  %v713 = vsel %vm389, %v62, 0
  %715 = vmatpush.bf16.msra.mxu0 0
  %716 = vmatpush.bf16.msra.mxu0 0
  %717 = vmatpush.bf16.msra.mxu0 0
  %718 = vmatpush.bf16.msra.mxu0 0
  %719 = vmatpush.bf16.msra.mxu0 0
  %720 = vmatpush.bf16.msra.mxu0 0
  %721 = vmatpush.bf16.msra.mxu0 0
  %722 = vmatpush.bf16.msra.mxu0 %v417
  %723 = vmatmul.bf16.gmra.mxu0 %v713
  %v724 = vpop.f32.mrf.mxu0
  %v725 = vadd.f32 %v709, %v724
  %v726 = vpop.f32.mrf.mxu0
  %727 = vdwg.mxu0
  %v729 = vsel %vm389, %v64, 0
  %731 = vmatpush.bf16.msra.mxu0 0
  %732 = vmatpush.bf16.msra.mxu0 0
  %733 = vmatpush.bf16.msra.mxu0 0
  %734 = vmatpush.bf16.msra.mxu0 0
  %735 = vmatpush.bf16.msra.mxu0 0
  %736 = vmatpush.bf16.msra.mxu0 0
  %737 = vmatpush.bf16.msra.mxu0 0
  %738 = vmatpush.bf16.msra.mxu0 %v436
  %739 = vmatmul.bf16.gmra.mxu0 %v729
  %v740 = vpop.f32.mrf.mxu0
  %v741 = vadd.f32 0.0, %v740
  %v742 = vpop.f32.mrf.mxu0
  %743 = vdwg.mxu0
  %v744 = vadd.f32 %v725, %v741
  %v746 = vsel %vm389, %v65, 0
  %748 = vmatpush.bf16.msra.mxu0 0
  %749 = vmatpush.bf16.msra.mxu0 0
  %750 = vmatpush.bf16.msra.mxu0 0
  %751 = vmatpush.bf16.msra.mxu0 0
  %752 = vmatpush.bf16.msra.mxu0 0
  %753 = vmatpush.bf16.msra.mxu0 0
  %754 = vmatpush.bf16.msra.mxu0 0
  %755 = vmatpush.bf16.msra.mxu0 %v456
  %756 = vmatmul.bf16.gmra.mxu0 %v746
  %v757 = vpop.f32.mrf.mxu0
  %v758 = vadd.f32 0.0, %v757
  %v759 = vpop.f32.mrf.mxu0
  %760 = vdwg.mxu0
  %v761 = vadd.f32 %v744, %v758
  %v763 = vsel %vm389, %v66, 0
  %765 = vmatpush.bf16.msra.mxu0 0
  %766 = vmatpush.bf16.msra.mxu0 0
  %767 = vmatpush.bf16.msra.mxu0 0
  %768 = vmatpush.bf16.msra.mxu0 0
  %769 = vmatpush.bf16.msra.mxu0 0
  %770 = vmatpush.bf16.msra.mxu0 0
  %771 = vmatpush.bf16.msra.mxu0 0
  %772 = vmatpush.bf16.msra.mxu0 %v476
  %773 = vmatmul.bf16.gmra.mxu0 %v763
  %v774 = vpop.f32.mrf.mxu0
  %v775 = vadd.f32 0.0, %v774
  %v776 = vpop.f32.mrf.mxu0
  %777 = vdwg.mxu0
  %v778 = vadd.f32 %v761, %v775
  %780 = vset.pattern.permute.xlu0 0
  %781 = vperm.xlu0 %780, %v67
  %v782 = vpop.permute.xlu0 %781
  %v784 = vadd.f32 %v778, %v782
  %v785 = vadd.f32 %v695, %v784
  %v786 = vmax.f32 %v785, 0.0
  %v787 = vmul.f32 %v786, %v36
  %788 = vadd.xlane.f32.xlu0 %v787
  %v789 = vpop.xlane.xlu0 %788
  %v790 = vrot.slane %v789, 4
  %v791 = vadd.f32 %v789, %v790
  %v792 = vrot.slane %v791, 2
  %v793 = vadd.f32 %v791, %v792
  %v794 = vrot.slane %v793, 1
  %v795 = vadd.f32 %v793, %v794
  %s796 = vtos %v795
  %s797 = smul.f32 %s796, 0.001953125
  %v798 = vstv %s797
  %v799 = vsub.f32 %v786, %v798
  %v800 = vmul.f32 %v799, %v36
  %v801 = vmul.f32 %v800, %v800
  %802 = vadd.xlane.f32.xlu0 %v801
  %v803 = vpop.xlane.xlu0 %802
  %v804 = vrot.slane %v803, 4
  %v805 = vadd.f32 %v803, %v804
  %v806 = vrot.slane %v805, 2
  %v807 = vadd.f32 %v805, %v806
  %v808 = vrot.slane %v807, 1
  %v809 = vadd.f32 %v807, %v808
  %s810 = vtos %v809
  %s811 = smul.f32 %s810, 0.001953125
  %s812 = sadd.f32 %s811, 1e-05
  %v813 = vstv %s812
  %v814 = vrsqrt.pop %v813
  %v815 = vmul.f32 %v814, %v813
  %v816 = vmul.f32 %v815, %v814
  %v817 = vmul.f32 0.5, %v816
  %v818 = vsub.f32 1.5, %v817
  %v819 = vmul.f32 %v814, %v818
  %vm820 = vweird.f32 %v813
  %vm821 = vweird.f32 %v814
  %vm822 = vmor %vm820, %vm821
  %v823 = vsel %vm822, %v814, %v819
  %s824 = vtos %v823
  %v825 = vstv %s824
  %v826 = vmul.f32 %v799, %v825
  %828 = vset.pattern.permute.xlu0 0
  %829 = vperm.xlu0 %828, %v68
  %v830 = vpop.permute.xlu0 %829
  %v832 = vmul.f32 %v826, %v830
  %834 = vset.pattern.permute.xlu0 0
  %835 = vperm.xlu0 %834, %v69
  %v836 = vpop.permute.xlu0 %835
  %v838 = vadd.f32 %v832, %v836
  %v839 = vmax.f32 %v838, 0.0
  %840 = vst [vmem:[%s8] sm:$0xff] %v839
  %v841 = vmul.f32 %v839, %v839
  %v842 = vrot.slane %v841, 4
  %v843 = vadd.f32 %v841, %v842
  %v844 = vrot.slane %v843, 2
  %v845 = vadd.f32 %v843, %v844
  %v846 = vrot.slane %v845, 1
  %v847 = vadd.f32 %v845, %v846
  %vm848 = vcmp.gt.f32.partialorder %v36, 0.0
  %v849 = vsel %vm848, %v847, -1.0
  %850 = vst [vmem:[%s9] sm:$0x1] %v849
  %s851 = scalar_lea.vmem %s0, 8
  %v852 = vld [vmem:[%s851] sm:$0x1f]
  %v853 = vpack.c.bf16 %v852, %v852
  %s854 = scalar_lea.vmem %s1, 256
  %v855 = vld [vmem:[%s854] sm:$0xf]
  %v856 = vld [vmem:[%s854 + $0x4] sm:$0xf]
  %v857 = vld [vmem:[%s854 + $0x8] sm:$0xf]
  %v858 = vld [vmem:[%s854 + $0xc] sm:$0xf]
  %v859 = vld [vmem:[%s854 + $0x10] sm:$0xf]
  %v860 = vld [vmem:[%s854 + $0x14] sm:$0xf]
  %v861 = vld [vmem:[%s854 + $0x18] sm:$0xf]
  %v862 = vld [vmem:[%s854 + $0x1c] sm:$0xf]
  %v863 = vld [vmem:[%s854 + $0x20] sm:$0xf]
  %v864 = vld [vmem:[%s854 + $0x24] sm:$0xf]
  %v865 = vld [vmem:[%s854 + $0x28] sm:$0xf]
  %v866 = vld [vmem:[%s854 + $0x2c] sm:$0xf]
  %v867 = vld [vmem:[%s854 + $0x30] sm:$0xf]
  %v868 = vld [vmem:[%s854 + $0x34] sm:$0xf]
  %v869 = vld [vmem:[%s854 + $0x38] sm:$0xf]
  %v870 = vld [vmem:[%s854 + $0x3c] sm:$0xf]
  %v887 = vunpack.c.l.b16 %v855
  %v888 = vunpack.c.l.b16 %v856
  %v889 = vunpack.c.l.b16 %v857
  %v890 = vunpack.c.l.b16 %v858
  %v891 = vunpack.c.l.b16 %v859
  %v892 = vunpack.c.l.b16 %v860
  %v893 = vunpack.c.l.b16 %v861
  %v894 = vunpack.c.l.b16 %v862
  %v895 = vunpack.c.l.b16 %v863
  %v896 = vunpack.c.l.b16 %v864
  %v897 = vunpack.c.l.b16 %v865
  %v898 = vunpack.c.l.b16 %v866
  %v899 = vunpack.c.l.b16 %v867
  %v900 = vunpack.c.l.b16 %v868
  %v901 = vunpack.c.l.b16 %v869
  %v902 = vunpack.c.l.b16 %v870
  %v903 = vpack.c.b16 %v888, %v887
  %v904 = vpack.c.b16 %v890, %v889
  %v905 = vpack.c.b16 %v892, %v891
  %v906 = vpack.c.b16 %v894, %v893
  %v907 = vpack.c.b16 %v896, %v895
  %v908 = vpack.c.b16 %v898, %v897
  %v909 = vpack.c.b16 %v900, %v899
  %v910 = vpack.c.b16 %v902, %v901
  %919 = vmatpush.bf16.msra.mxu0 %v910
  %920 = vmatpush.bf16.msra.mxu0 %v909
  %921 = vmatpush.bf16.msra.mxu0 %v908
  %922 = vmatpush.bf16.msra.mxu0 %v907
  %923 = vmatpush.bf16.msra.mxu0 %v906
  %924 = vmatpush.bf16.msra.mxu0 %v905
  %925 = vmatpush.bf16.msra.mxu0 %v904
  %926 = vmatpush.bf16.msra.mxu0 %v903
  %927 = vmatmul.bf16.gmra.mxu0 %v853
  %v928 = vpop.f32.mrf.mxu0
  %v929 = vadd.f32 0.0, %v928
  %v930 = vpop.f32.mrf.mxu0
  %931 = vdwg.mxu0
  %v932 = vpack.c.bf16 %v929, %v929
  %s933 = scalar_lea.vmem %s1, 320
  %v934 = vld [vmem:[%s933] sm:$0xf]
  %v935 = vld [vmem:[%s933 + $0x4] sm:$0xf]
  %v936 = vld [vmem:[%s933 + $0x8] sm:$0xf]
  %v937 = vld [vmem:[%s933 + $0xc] sm:$0xf]
  %v938 = vld [vmem:[%s933 + $0x10] sm:$0xf]
  %v939 = vld [vmem:[%s933 + $0x14] sm:$0xf]
  %v940 = vld [vmem:[%s933 + $0x18] sm:$0xf]
  %v941 = vld [vmem:[%s933 + $0x1c] sm:$0xf]
  %v942 = vld [vmem:[%s933 + $0x20] sm:$0xf]
  %v943 = vld [vmem:[%s933 + $0x24] sm:$0xf]
  %v944 = vld [vmem:[%s933 + $0x28] sm:$0xf]
  %v945 = vld [vmem:[%s933 + $0x2c] sm:$0xf]
  %v946 = vld [vmem:[%s933 + $0x30] sm:$0xf]
  %v947 = vld [vmem:[%s933 + $0x34] sm:$0xf]
  %v948 = vld [vmem:[%s933 + $0x38] sm:$0xf]
  %v949 = vld [vmem:[%s933 + $0x3c] sm:$0xf]
  %v966 = vunpack.c.l.b16 %v934
  %v967 = vunpack.c.l.b16 %v935
  %v968 = vunpack.c.l.b16 %v936
  %v969 = vunpack.c.l.b16 %v937
  %v970 = vunpack.c.l.b16 %v938
  %v971 = vunpack.c.l.b16 %v939
  %v972 = vunpack.c.l.b16 %v940
  %v973 = vunpack.c.l.b16 %v941
  %v974 = vunpack.c.l.b16 %v942
  %v975 = vunpack.c.l.b16 %v943
  %v976 = vunpack.c.l.b16 %v944
  %v977 = vunpack.c.l.b16 %v945
  %v978 = vunpack.c.l.b16 %v946
  %v979 = vunpack.c.l.b16 %v947
  %v980 = vunpack.c.l.b16 %v948
  %v981 = vunpack.c.l.b16 %v949
  %v982 = vpack.c.b16 %v967, %v966
  %v983 = vpack.c.b16 %v969, %v968
  %v984 = vpack.c.b16 %v971, %v970
  %v985 = vpack.c.b16 %v973, %v972
  %v986 = vpack.c.b16 %v975, %v974
  %v987 = vpack.c.b16 %v977, %v976
  %v988 = vpack.c.b16 %v979, %v978
  %v989 = vpack.c.b16 %v981, %v980
  %998 = vmatpush.bf16.msra.mxu0 %v989
  %999 = vmatpush.bf16.msra.mxu0 %v988
  %1000 = vmatpush.bf16.msra.mxu0 %v987
  %1001 = vmatpush.bf16.msra.mxu0 %v986
  %1002 = vmatpush.bf16.msra.mxu0 %v985
  %1003 = vmatpush.bf16.msra.mxu0 %v984
  %1004 = vmatpush.bf16.msra.mxu0 %v983
  %1005 = vmatpush.bf16.msra.mxu0 %v982
  %1006 = vmatmul.bf16.gmra.mxu0 %v853
  %v1007 = vpop.f32.mrf.mxu0
  %v1008 = vadd.f32 0.0, %v1007
  %v1009 = vpop.f32.mrf.mxu0
  %1010 = vdwg.mxu0
  %v1011 = vpack.c.bf16 %v1008, %v1008
  %s1012 = scalar_lea.vmem %s1, 384
  %v1013 = vld [vmem:[%s1012] sm:$0xf]
  %v1014 = vld [vmem:[%s1012 + $0x4] sm:$0xf]
  %v1015 = vld [vmem:[%s1012 + $0x8] sm:$0xf]
  %v1016 = vld [vmem:[%s1012 + $0xc] sm:$0xf]
  %v1017 = vld [vmem:[%s1012 + $0x10] sm:$0xf]
  %v1018 = vld [vmem:[%s1012 + $0x14] sm:$0xf]
  %v1019 = vld [vmem:[%s1012 + $0x18] sm:$0xf]
  %v1020 = vld [vmem:[%s1012 + $0x1c] sm:$0xf]
  %v1021 = vld [vmem:[%s1012 + $0x20] sm:$0xf]
  %v1022 = vld [vmem:[%s1012 + $0x24] sm:$0xf]
  %v1023 = vld [vmem:[%s1012 + $0x28] sm:$0xf]
  %v1024 = vld [vmem:[%s1012 + $0x2c] sm:$0xf]
  %v1025 = vld [vmem:[%s1012 + $0x30] sm:$0xf]
  %v1026 = vld [vmem:[%s1012 + $0x34] sm:$0xf]
  %v1027 = vld [vmem:[%s1012 + $0x38] sm:$0xf]
  %v1028 = vld [vmem:[%s1012 + $0x3c] sm:$0xf]
  %v1045 = vunpack.c.l.b16 %v1013
  %v1046 = vunpack.c.l.b16 %v1014
  %v1047 = vunpack.c.l.b16 %v1015
  %v1048 = vunpack.c.l.b16 %v1016
  %v1049 = vunpack.c.l.b16 %v1017
  %v1050 = vunpack.c.l.b16 %v1018
  %v1051 = vunpack.c.l.b16 %v1019
  %v1052 = vunpack.c.l.b16 %v1020
  %v1053 = vunpack.c.l.b16 %v1021
  %v1054 = vunpack.c.l.b16 %v1022
  %v1055 = vunpack.c.l.b16 %v1023
  %v1056 = vunpack.c.l.b16 %v1024
  %v1057 = vunpack.c.l.b16 %v1025
  %v1058 = vunpack.c.l.b16 %v1026
  %v1059 = vunpack.c.l.b16 %v1027
  %v1060 = vunpack.c.l.b16 %v1028
  %v1061 = vpack.c.b16 %v1046, %v1045
  %v1062 = vpack.c.b16 %v1048, %v1047
  %v1063 = vpack.c.b16 %v1050, %v1049
  %v1064 = vpack.c.b16 %v1052, %v1051
  %v1065 = vpack.c.b16 %v1054, %v1053
  %v1066 = vpack.c.b16 %v1056, %v1055
  %v1067 = vpack.c.b16 %v1058, %v1057
  %v1068 = vpack.c.b16 %v1060, %v1059
  %1077 = vmatpush.bf16.msra.mxu0 %v1068
  %1078 = vmatpush.bf16.msra.mxu0 %v1067
  %1079 = vmatpush.bf16.msra.mxu0 %v1066
  %1080 = vmatpush.bf16.msra.mxu0 %v1065
  %1081 = vmatpush.bf16.msra.mxu0 %v1064
  %1082 = vmatpush.bf16.msra.mxu0 %v1063
  %1083 = vmatpush.bf16.msra.mxu0 %v1062
  %1084 = vmatpush.bf16.msra.mxu0 %v1061
  %1085 = vmatmul.bf16.gmra.mxu0 %v853
  %v1086 = vpop.f32.mrf.mxu0
  %v1087 = vadd.f32 0.0, %v1086
  %v1088 = vpop.f32.mrf.mxu0
  %1089 = vdwg.mxu0
  %v1090 = vand.u32 2147483647, %v1087
  %v1091 = vpack.c.bf16 %v1090, %v1090
  %s1092 = scalar_lea.vmem %s1, 448
  %v1093 = vld [vmem:[%s1092] sm:$0xf]
  %v1094 = vld [vmem:[%s1092 + $0x4] sm:$0xf]
  %v1095 = vld [vmem:[%s1092 + $0x8] sm:$0xf]
  %v1096 = vld [vmem:[%s1092 + $0xc] sm:$0xf]
  %v1097 = vld [vmem:[%s1092 + $0x10] sm:$0xf]
  %v1098 = vld [vmem:[%s1092 + $0x14] sm:$0xf]
  %v1099 = vld [vmem:[%s1092 + $0x18] sm:$0xf]
  %v1100 = vld [vmem:[%s1092 + $0x1c] sm:$0xf]
  %v1101 = vld [vmem:[%s1092 + $0x20] sm:$0xf]
  %v1102 = vld [vmem:[%s1092 + $0x24] sm:$0xf]
  %v1103 = vld [vmem:[%s1092 + $0x28] sm:$0xf]
  %v1104 = vld [vmem:[%s1092 + $0x2c] sm:$0xf]
  %v1105 = vld [vmem:[%s1092 + $0x30] sm:$0xf]
  %v1106 = vld [vmem:[%s1092 + $0x34] sm:$0xf]
  %v1107 = vld [vmem:[%s1092 + $0x38] sm:$0xf]
  %v1108 = vld [vmem:[%s1092 + $0x3c] sm:$0xf]
  %v1125 = vunpack.c.l.b16 %v1093
  %v1126 = vunpack.c.l.b16 %v1094
  %v1127 = vunpack.c.l.b16 %v1095
  %v1128 = vunpack.c.l.b16 %v1096
  %v1129 = vunpack.c.l.b16 %v1097
  %v1130 = vunpack.c.l.b16 %v1098
  %v1131 = vunpack.c.l.b16 %v1099
  %v1132 = vunpack.c.l.b16 %v1100
  %v1133 = vunpack.c.l.b16 %v1101
  %v1134 = vunpack.c.l.b16 %v1102
  %v1135 = vunpack.c.l.b16 %v1103
  %v1136 = vunpack.c.l.b16 %v1104
  %v1137 = vunpack.c.l.b16 %v1105
  %v1138 = vunpack.c.l.b16 %v1106
  %v1139 = vunpack.c.l.b16 %v1107
  %v1140 = vunpack.c.l.b16 %v1108
  %v1141 = vpack.c.b16 %v1126, %v1125
  %v1142 = vpack.c.b16 %v1128, %v1127
  %v1143 = vpack.c.b16 %v1130, %v1129
  %v1144 = vpack.c.b16 %v1132, %v1131
  %v1145 = vpack.c.b16 %v1134, %v1133
  %v1146 = vpack.c.b16 %v1136, %v1135
  %v1147 = vpack.c.b16 %v1138, %v1137
  %v1148 = vpack.c.b16 %v1140, %v1139
  %1157 = vmatpush.bf16.msra.mxu0 %v1148
  %1158 = vmatpush.bf16.msra.mxu0 %v1147
  %1159 = vmatpush.bf16.msra.mxu0 %v1146
  %1160 = vmatpush.bf16.msra.mxu0 %v1145
  %1161 = vmatpush.bf16.msra.mxu0 %v1144
  %1162 = vmatpush.bf16.msra.mxu0 %v1143
  %1163 = vmatpush.bf16.msra.mxu0 %v1142
  %1164 = vmatpush.bf16.msra.mxu0 %v1141
  %1165 = vmatmul.bf16.gmra.mxu0 %v853
  %v1166 = vpop.f32.mrf.mxu0
  %v1167 = vadd.f32 0.0, %v1166
  %v1168 = vpop.f32.mrf.mxu0
  %1169 = vdwg.mxu0
  %v1170 = vand.u32 2147483647, %v1167
  %v1171 = vpack.c.bf16 %v1170, %v1170
  %v1173 = vand.u32 %v932, %v396
  %1175 = vmatpush.bf16.msra.mxu0 0
  %1176 = vmatpush.bf16.msra.mxu0 0
  %1177 = vmatpush.bf16.msra.mxu0 0
  %1178 = vmatpush.bf16.msra.mxu0 0
  %1179 = vmatpush.bf16.msra.mxu0 0
  %1180 = vmatpush.bf16.msra.mxu0 0
  %1181 = vmatpush.bf16.msra.mxu0 0
  %1182 = vmatpush.bf16.msra.mxu0 %v1173
  %1183 = vmatmul.bf16.gmra.mxu0 %v391
  %v1184 = vpop.f32.mrf.mxu0
  %v1185 = vadd.f32 0.0, %v1184
  %v1186 = vpop.f32.mrf.mxu0
  %1187 = vdwg.mxu0
  %v1189 = vand.u32 %v853, %v396
  %1191 = vmatpush.bf16.msra.mxu0 0
  %1192 = vmatpush.bf16.msra.mxu0 0
  %1193 = vmatpush.bf16.msra.mxu0 0
  %1194 = vmatpush.bf16.msra.mxu0 0
  %1195 = vmatpush.bf16.msra.mxu0 0
  %1196 = vmatpush.bf16.msra.mxu0 0
  %1197 = vmatpush.bf16.msra.mxu0 0
  %1198 = vmatpush.bf16.msra.mxu0 %v1189
  %1199 = vmatmul.bf16.gmra.mxu0 %v414
  %v1200 = vpop.f32.mrf.mxu0
  %v1201 = vadd.f32 %v1185, %v1200
  %v1202 = vpop.f32.mrf.mxu0
  %1203 = vdwg.mxu0
  %v1205 = vand.u32 %v1011, %v396
  %1207 = vmatpush.bf16.msra.mxu0 0
  %1208 = vmatpush.bf16.msra.mxu0 0
  %1209 = vmatpush.bf16.msra.mxu0 0
  %1210 = vmatpush.bf16.msra.mxu0 0
  %1211 = vmatpush.bf16.msra.mxu0 0
  %1212 = vmatpush.bf16.msra.mxu0 0
  %1213 = vmatpush.bf16.msra.mxu0 0
  %1214 = vmatpush.bf16.msra.mxu0 %v1205
  %1215 = vmatmul.bf16.gmra.mxu0 %v433
  %v1216 = vpop.f32.mrf.mxu0
  %v1217 = vadd.f32 0.0, %v1216
  %v1218 = vpop.f32.mrf.mxu0
  %1219 = vdwg.mxu0
  %v1220 = vadd.f32 %v1201, %v1217
  %v1222 = vand.u32 %v1091, %v396
  %1224 = vmatpush.bf16.msra.mxu0 0
  %1225 = vmatpush.bf16.msra.mxu0 0
  %1226 = vmatpush.bf16.msra.mxu0 0
  %1227 = vmatpush.bf16.msra.mxu0 0
  %1228 = vmatpush.bf16.msra.mxu0 0
  %1229 = vmatpush.bf16.msra.mxu0 0
  %1230 = vmatpush.bf16.msra.mxu0 0
  %1231 = vmatpush.bf16.msra.mxu0 %v1222
  %1232 = vmatmul.bf16.gmra.mxu0 %v453
  %v1233 = vpop.f32.mrf.mxu0
  %v1234 = vadd.f32 0.0, %v1233
  %v1235 = vpop.f32.mrf.mxu0
  %1236 = vdwg.mxu0
  %v1237 = vadd.f32 %v1220, %v1234
  %v1239 = vand.u32 %v1171, %v396
  %1241 = vmatpush.bf16.msra.mxu0 0
  %1242 = vmatpush.bf16.msra.mxu0 0
  %1243 = vmatpush.bf16.msra.mxu0 0
  %1244 = vmatpush.bf16.msra.mxu0 0
  %1245 = vmatpush.bf16.msra.mxu0 0
  %1246 = vmatpush.bf16.msra.mxu0 0
  %1247 = vmatpush.bf16.msra.mxu0 0
  %1248 = vmatpush.bf16.msra.mxu0 %v1239
  %1249 = vmatmul.bf16.gmra.mxu0 %v473
  %v1250 = vpop.f32.mrf.mxu0
  %v1251 = vadd.f32 0.0, %v1250
  %v1252 = vpop.f32.mrf.mxu0
  %1253 = vdwg.mxu0
  %v1254 = vadd.f32 %v1237, %v1251
  %v1255 = vmul.f32 %v1254, %v36
  %1256 = vadd.xlane.f32.xlu0 %v1255
  %v1257 = vpop.xlane.xlu0 %1256
  %v1258 = vmul.f32 %v1257, 0.015625
  %v1259 = vsub.f32 %v1254, %v1258
  %v1260 = vmul.f32 %v1259, %v36
  %v1261 = vmul.f32 %v1260, %v1260
  %1262 = vadd.xlane.f32.xlu0 %v1261
  %v1263 = vpop.xlane.xlu0 %1262
  %v1264 = vmul.f32 %v1263, 0.015625
  %v1265 = vadd.f32 %v1264, 1e-05
  %v1266 = vrsqrt.pop %v1265
  %v1267 = vmul.f32 %v1266, %v1265
  %v1268 = vmul.f32 %v1267, %v1266
  %v1269 = vmul.f32 0.5, %v1268
  %v1270 = vsub.f32 1.5, %v1269
  %v1271 = vmul.f32 %v1266, %v1270
  %vm1272 = vweird.f32 %v1265
  %vm1273 = vweird.f32 %v1266
  %vm1274 = vmor %vm1272, %vm1273
  %v1275 = vsel %vm1274, %v1266, %v1271
  %v1276 = vmul.f32 %v1259, %v1275
  %v1277 = vmax.f32 %v1276, 0.0
  %v1278 = vpack.c.bf16 %v1277, %v1277
  %1279 = vmatpush.bf16.msra.mxu0 %v910
  %1280 = vmatpush.bf16.msra.mxu0 %v909
  %1281 = vmatpush.bf16.msra.mxu0 %v908
  %1282 = vmatpush.bf16.msra.mxu0 %v907
  %1283 = vmatpush.bf16.msra.mxu0 %v906
  %1284 = vmatpush.bf16.msra.mxu0 %v905
  %1285 = vmatpush.bf16.msra.mxu0 %v904
  %1286 = vmatpush.bf16.msra.mxu0 %v903
  %1287 = vmatmul.bf16.gmra.mxu0 %v1278
  %v1288 = vpop.f32.mrf.mxu0
  %v1289 = vadd.f32 0.0, %v1288
  %v1290 = vpop.f32.mrf.mxu0
  %1291 = vdwg.mxu0
  %v1292 = vpack.c.bf16 %v1289, %v1289
  %1293 = vmatpush.bf16.msra.mxu0 %v989
  %1294 = vmatpush.bf16.msra.mxu0 %v988
  %1295 = vmatpush.bf16.msra.mxu0 %v987
  %1296 = vmatpush.bf16.msra.mxu0 %v986
  %1297 = vmatpush.bf16.msra.mxu0 %v985
  %1298 = vmatpush.bf16.msra.mxu0 %v984
  %1299 = vmatpush.bf16.msra.mxu0 %v983
  %1300 = vmatpush.bf16.msra.mxu0 %v982
  %1301 = vmatmul.bf16.gmra.mxu0 %v1278
  %v1302 = vpop.f32.mrf.mxu0
  %v1303 = vadd.f32 0.0, %v1302
  %v1304 = vpop.f32.mrf.mxu0
  %1305 = vdwg.mxu0
  %v1306 = vpack.c.bf16 %v1303, %v1303
  %1307 = vmatpush.bf16.msra.mxu0 %v1068
  %1308 = vmatpush.bf16.msra.mxu0 %v1067
  %1309 = vmatpush.bf16.msra.mxu0 %v1066
  %1310 = vmatpush.bf16.msra.mxu0 %v1065
  %1311 = vmatpush.bf16.msra.mxu0 %v1064
  %1312 = vmatpush.bf16.msra.mxu0 %v1063
  %1313 = vmatpush.bf16.msra.mxu0 %v1062
  %1314 = vmatpush.bf16.msra.mxu0 %v1061
  %1315 = vmatmul.bf16.gmra.mxu0 %v1278
  %v1316 = vpop.f32.mrf.mxu0
  %v1317 = vadd.f32 0.0, %v1316
  %v1318 = vpop.f32.mrf.mxu0
  %1319 = vdwg.mxu0
  %v1320 = vand.u32 2147483647, %v1317
  %v1321 = vpack.c.bf16 %v1320, %v1320
  %1322 = vmatpush.bf16.msra.mxu0 %v1148
  %1323 = vmatpush.bf16.msra.mxu0 %v1147
  %1324 = vmatpush.bf16.msra.mxu0 %v1146
  %1325 = vmatpush.bf16.msra.mxu0 %v1145
  %1326 = vmatpush.bf16.msra.mxu0 %v1144
  %1327 = vmatpush.bf16.msra.mxu0 %v1143
  %1328 = vmatpush.bf16.msra.mxu0 %v1142
  %1329 = vmatpush.bf16.msra.mxu0 %v1141
  %1330 = vmatmul.bf16.gmra.mxu0 %v1278
  %v1331 = vpop.f32.mrf.mxu0
  %v1332 = vadd.f32 0.0, %v1331
  %v1333 = vpop.f32.mrf.mxu0
  %1334 = vdwg.mxu0
  %v1335 = vand.u32 2147483647, %v1332
  %v1336 = vpack.c.bf16 %v1335, %v1335
  %v1338 = vsel %vm578, %v1292, 0
  %1340 = vmatpush.bf16.msra.mxu0 0
  %1341 = vmatpush.bf16.msra.mxu0 0
  %1342 = vmatpush.bf16.msra.mxu0 0
  %1343 = vmatpush.bf16.msra.mxu0 0
  %1344 = vmatpush.bf16.msra.mxu0 0
  %1345 = vmatpush.bf16.msra.mxu0 0
  %1346 = vmatpush.bf16.msra.mxu0 0
  %1347 = vmatpush.bf16.msra.mxu0 %v1338
  %1348 = vmatmul.bf16.gmra.mxu0 %v576
  %v1349 = vpop.f32.mrf.mxu0
  %v1350 = vadd.f32 0.0, %v1349
  %v1351 = vpop.f32.mrf.mxu0
  %1352 = vdwg.mxu0
  %v1354 = vsel %vm578, %v1278, 0
  %1356 = vmatpush.bf16.msra.mxu0 0
  %1357 = vmatpush.bf16.msra.mxu0 0
  %1358 = vmatpush.bf16.msra.mxu0 0
  %1359 = vmatpush.bf16.msra.mxu0 0
  %1360 = vmatpush.bf16.msra.mxu0 0
  %1361 = vmatpush.bf16.msra.mxu0 0
  %1362 = vmatpush.bf16.msra.mxu0 0
  %1363 = vmatpush.bf16.msra.mxu0 %v1354
  %1364 = vmatmul.bf16.gmra.mxu0 %v596
  %v1365 = vpop.f32.mrf.mxu0
  %v1366 = vadd.f32 %v1350, %v1365
  %v1367 = vpop.f32.mrf.mxu0
  %1368 = vdwg.mxu0
  %v1370 = vsel %vm578, %v1306, 0
  %1372 = vmatpush.bf16.msra.mxu0 0
  %1373 = vmatpush.bf16.msra.mxu0 0
  %1374 = vmatpush.bf16.msra.mxu0 0
  %1375 = vmatpush.bf16.msra.mxu0 0
  %1376 = vmatpush.bf16.msra.mxu0 0
  %1377 = vmatpush.bf16.msra.mxu0 0
  %1378 = vmatpush.bf16.msra.mxu0 0
  %1379 = vmatpush.bf16.msra.mxu0 %v1370
  %1380 = vmatmul.bf16.gmra.mxu0 %v615
  %v1381 = vpop.f32.mrf.mxu0
  %v1382 = vadd.f32 0.0, %v1381
  %v1383 = vpop.f32.mrf.mxu0
  %1384 = vdwg.mxu0
  %v1385 = vadd.f32 %v1366, %v1382
  %v1387 = vsel %vm578, %v1321, 0
  %1389 = vmatpush.bf16.msra.mxu0 0
  %1390 = vmatpush.bf16.msra.mxu0 0
  %1391 = vmatpush.bf16.msra.mxu0 0
  %1392 = vmatpush.bf16.msra.mxu0 0
  %1393 = vmatpush.bf16.msra.mxu0 0
  %1394 = vmatpush.bf16.msra.mxu0 0
  %1395 = vmatpush.bf16.msra.mxu0 0
  %1396 = vmatpush.bf16.msra.mxu0 %v1387
  %1397 = vmatmul.bf16.gmra.mxu0 %v635
  %v1398 = vpop.f32.mrf.mxu0
  %v1399 = vadd.f32 0.0, %v1398
  %v1400 = vpop.f32.mrf.mxu0
  %1401 = vdwg.mxu0
  %v1402 = vadd.f32 %v1385, %v1399
  %v1404 = vsel %vm578, %v1336, 0
  %1406 = vmatpush.bf16.msra.mxu0 0
  %1407 = vmatpush.bf16.msra.mxu0 0
  %1408 = vmatpush.bf16.msra.mxu0 0
  %1409 = vmatpush.bf16.msra.mxu0 0
  %1410 = vmatpush.bf16.msra.mxu0 0
  %1411 = vmatpush.bf16.msra.mxu0 0
  %1412 = vmatpush.bf16.msra.mxu0 0
  %1413 = vmatpush.bf16.msra.mxu0 %v1404
  %1414 = vmatmul.bf16.gmra.mxu0 %v655
  %v1415 = vpop.f32.mrf.mxu0
  %v1416 = vadd.f32 0.0, %v1415
  %v1417 = vpop.f32.mrf.mxu0
  %1418 = vdwg.mxu0
  %v1419 = vadd.f32 %v1402, %v1416
  %v1420 = vmul.f32 %v1419, %v36
  %1421 = vadd.xlane.f32.xlu0 %v1420
  %v1422 = vpop.xlane.xlu0 %1421
  %v1423 = vmul.f32 %v1422, 0.015625
  %v1424 = vsub.f32 %v1419, %v1423
  %v1425 = vmul.f32 %v1424, %v36
  %v1426 = vmul.f32 %v1425, %v1425
  %1427 = vadd.xlane.f32.xlu0 %v1426
  %v1428 = vpop.xlane.xlu0 %1427
  %v1429 = vmul.f32 %v1428, 0.015625
  %v1430 = vadd.f32 %v1429, 1e-05
  %v1431 = vrsqrt.pop %v1430
  %v1432 = vmul.f32 %v1431, %v1430
  %v1433 = vmul.f32 %v1432, %v1431
  %v1434 = vmul.f32 0.5, %v1433
  %v1435 = vsub.f32 1.5, %v1434
  %v1436 = vmul.f32 %v1431, %v1435
  %vm1437 = vweird.f32 %v1430
  %vm1438 = vweird.f32 %v1431
  %vm1439 = vmor %vm1437, %vm1438
  %v1440 = vsel %vm1439, %v1431, %v1436
  %v1441 = vmul.f32 %v1424, %v1440
  %1442 = vmatpush.bf16.msra.mxu0 0
  %1443 = vmatpush.bf16.msra.mxu0 0
  %1444 = vmatpush.bf16.msra.mxu0 0
  %1445 = vmatpush.bf16.msra.mxu0 0
  %1446 = vmatpush.bf16.msra.mxu0 0
  %1447 = vmatpush.bf16.msra.mxu0 0
  %1448 = vmatpush.bf16.msra.mxu0 0
  %1449 = vmatpush.bf16.msra.mxu0 %v1173
  %1450 = vmatmul.bf16.gmra.mxu0 %v697
  %v1451 = vpop.f32.mrf.mxu0
  %v1452 = vadd.f32 0.0, %v1451
  %v1453 = vpop.f32.mrf.mxu0
  %1454 = vdwg.mxu0
  %1455 = vmatpush.bf16.msra.mxu0 0
  %1456 = vmatpush.bf16.msra.mxu0 0
  %1457 = vmatpush.bf16.msra.mxu0 0
  %1458 = vmatpush.bf16.msra.mxu0 0
  %1459 = vmatpush.bf16.msra.mxu0 0
  %1460 = vmatpush.bf16.msra.mxu0 0
  %1461 = vmatpush.bf16.msra.mxu0 0
  %1462 = vmatpush.bf16.msra.mxu0 %v1189
  %1463 = vmatmul.bf16.gmra.mxu0 %v713
  %v1464 = vpop.f32.mrf.mxu0
  %v1465 = vadd.f32 %v1452, %v1464
  %v1466 = vpop.f32.mrf.mxu0
  %1467 = vdwg.mxu0
  %1468 = vmatpush.bf16.msra.mxu0 0
  %1469 = vmatpush.bf16.msra.mxu0 0
  %1470 = vmatpush.bf16.msra.mxu0 0
  %1471 = vmatpush.bf16.msra.mxu0 0
  %1472 = vmatpush.bf16.msra.mxu0 0
  %1473 = vmatpush.bf16.msra.mxu0 0
  %1474 = vmatpush.bf16.msra.mxu0 0
  %1475 = vmatpush.bf16.msra.mxu0 %v1205
  %1476 = vmatmul.bf16.gmra.mxu0 %v729
  %v1477 = vpop.f32.mrf.mxu0
  %v1478 = vadd.f32 0.0, %v1477
  %v1479 = vpop.f32.mrf.mxu0
  %1480 = vdwg.mxu0
  %v1481 = vadd.f32 %v1465, %v1478
  %1482 = vmatpush.bf16.msra.mxu0 0
  %1483 = vmatpush.bf16.msra.mxu0 0
  %1484 = vmatpush.bf16.msra.mxu0 0
  %1485 = vmatpush.bf16.msra.mxu0 0
  %1486 = vmatpush.bf16.msra.mxu0 0
  %1487 = vmatpush.bf16.msra.mxu0 0
  %1488 = vmatpush.bf16.msra.mxu0 0
  %1489 = vmatpush.bf16.msra.mxu0 %v1222
  %1490 = vmatmul.bf16.gmra.mxu0 %v746
  %v1491 = vpop.f32.mrf.mxu0
  %v1492 = vadd.f32 0.0, %v1491
  %v1493 = vpop.f32.mrf.mxu0
  %1494 = vdwg.mxu0
  %v1495 = vadd.f32 %v1481, %v1492
  %1496 = vmatpush.bf16.msra.mxu0 0
  %1497 = vmatpush.bf16.msra.mxu0 0
  %1498 = vmatpush.bf16.msra.mxu0 0
  %1499 = vmatpush.bf16.msra.mxu0 0
  %1500 = vmatpush.bf16.msra.mxu0 0
  %1501 = vmatpush.bf16.msra.mxu0 0
  %1502 = vmatpush.bf16.msra.mxu0 0
  %1503 = vmatpush.bf16.msra.mxu0 %v1239
  %1504 = vmatmul.bf16.gmra.mxu0 %v763
  %v1505 = vpop.f32.mrf.mxu0
  %v1506 = vadd.f32 0.0, %v1505
  %v1507 = vpop.f32.mrf.mxu0
  %1508 = vdwg.mxu0
  %v1509 = vadd.f32 %v1495, %v1506
  %v1510 = vadd.f32 %v1509, %v782
  %v1511 = vadd.f32 %v1441, %v1510
  %v1512 = vmax.f32 %v1511, 0.0
  %v1513 = vmul.f32 %v1512, %v36
  %1514 = vadd.xlane.f32.xlu0 %v1513
  %v1515 = vpop.xlane.xlu0 %1514
  %v1516 = vrot.slane %v1515, 4
  %v1517 = vadd.f32 %v1515, %v1516
  %v1518 = vrot.slane %v1517, 2
  %v1519 = vadd.f32 %v1517, %v1518
  %v1520 = vrot.slane %v1519, 1
  %v1521 = vadd.f32 %v1519, %v1520
  %s1522 = vtos %v1521
  %s1523 = smul.f32 %s1522, 0.001953125
  %v1524 = vstv %s1523
  %v1525 = vsub.f32 %v1512, %v1524
  %v1526 = vmul.f32 %v1525, %v36
  %v1527 = vmul.f32 %v1526, %v1526
  %1528 = vadd.xlane.f32.xlu0 %v1527
  %v1529 = vpop.xlane.xlu0 %1528
  %v1530 = vrot.slane %v1529, 4
  %v1531 = vadd.f32 %v1529, %v1530
  %v1532 = vrot.slane %v1531, 2
  %v1533 = vadd.f32 %v1531, %v1532
  %v1534 = vrot.slane %v1533, 1
  %v1535 = vadd.f32 %v1533, %v1534
  %s1536 = vtos %v1535
  %s1537 = smul.f32 %s1536, 0.001953125
  %s1538 = sadd.f32 %s1537, 1e-05
  %v1539 = vstv %s1538
  %v1540 = vrsqrt.pop %v1539
  %v1541 = vmul.f32 %v1540, %v1539
  %v1542 = vmul.f32 %v1541, %v1540
  %v1543 = vmul.f32 0.5, %v1542
  %v1544 = vsub.f32 1.5, %v1543
  %v1545 = vmul.f32 %v1540, %v1544
  %vm1546 = vweird.f32 %v1539
  %vm1547 = vweird.f32 %v1540
  %vm1548 = vmor %vm1546, %vm1547
  %v1549 = vsel %vm1548, %v1540, %v1545
  %s1550 = vtos %v1549
  %v1551 = vstv %s1550
  %v1552 = vmul.f32 %v1525, %v1551
  %v1553 = vmul.f32 %v1552, %v830
  %v1554 = vadd.f32 %v1553, %v836
  %v1555 = vmax.f32 %v1554, 0.0
  %s1556 = scalar_lea.vmem %s8, 8
  %1557 = vst [vmem:[%s1556] sm:$0xff] %v1555
  %v1558 = vmul.f32 %v1555, %v1555
  %v1559 = vrot.slane %v1558, 4
  %v1560 = vadd.f32 %v1558, %v1559
  %v1561 = vrot.slane %v1560, 2
  %v1562 = vadd.f32 %v1560, %v1561
  %v1563 = vrot.slane %v1562, 1
  %v1564 = vadd.f32 %v1562, %v1563
  %v1565 = vsel %vm848, %v1564, -1.0
  %s1566 = scalar_lea.vmem %s9, 1
  %1567 = vst [vmem:[%s1566] sm:$0x1] %v1565
  // Predicated region
  $region34: #{mesh_conv_net_forward.2} parent=0 // pred_check
    _
  $region35: #{mesh_conv_net_forward.2} parent=0 // pred_check_branch
    %1569 = sbr.rel (0) target = $region37
  $region36: #{mesh_conv_net_forward.2} parent=0 // pred_region
    _
  $region37: #{mesh_conv_net_forward.2} parent=0 // pred_fallthru
    _
  // Predicated region
  $region38: #{mesh_conv_net_forward.2} parent=0 // pred_check
    _
  $region39: #{mesh_conv_net_forward.2} parent=0 // pred_check_branch
    %1571 = sbr.rel (0) target = $region41
  $region40: #{mesh_conv_net_forward.2} parent=0 // pred_region
    _
  $region41: #{mesh_conv_net_forward.2} parent=0 // pred_fallthru
    _
  // Predicated region
  $region42: #{mesh_conv_net_forward.2} parent=0 // pred_check
    _
  $region43: #{mesh_conv_net_forward.2} parent=0 // pred_check_branch
    %1573 = sbr.rel (0) target = $region45
  $region44: #{mesh_conv_net_forward.2} parent=0 // pred_region
    _
  $region45: #{mesh_conv_net_forward.2} parent=0 // pred_fallthru
    _
  // Predicated region
  $region46: #{mesh_conv_net_forward.2} parent=0 // pred_check
    _
  $region47: #{mesh_conv_net_forward.2} parent=0 // pred_check_branch
    %1575 = sbr.rel (0) target = $region49
  $region48: #{mesh_conv_net_forward.2} parent=0 // pred_region
    _
  $region49: #{mesh_conv_net_forward.2} parent=0 // pred_fallthru
    _

// kernel: mesh_conv_net_forward.3
$region0: #{mesh_conv_net_forward.3}
  #allocation0 [shape = 'u32[]', space=smem, size = 0x4, offset = 0x4, fixed_abs, tag = 'smem constant byte address 0x4 - core index']
  #allocation1 [shape = 'u32[72,128]{1,0:T(1,128)}', space=vmem, size = 0x9000, scoped, tag = 'internal scratch']
  %s0 = inlined_call_operand.vmem [shape: f32[2,8,128], index: 0, kind: input, shape index: {}]
  %s1 = inlined_call_operand.vmem [shape: bf16[2,4,128,128], index: 1, kind: input, shape index: {}]
  %s2 = inlined_call_operand.vmem [shape: f32[5,16,8], index: 2, kind: input, shape index: {}]
  %s3 = inlined_call_operand.vmem [shape: f32[5,16,16], index: 3, kind: input, shape index: {}]
  %s4 = inlined_call_operand.vmem [shape: f32[5,16,8], index: 4, kind: input, shape index: {}]
  %s5 = inlined_call_operand.vmem [shape: f32[16,1], index: 5, kind: input, shape index: {}]
  %s6 = inlined_call_operand.vmem [shape: f32[16,1], index: 6, kind: input, shape index: {}]
  %s7 = inlined_call_operand.vmem [shape: f32[16,1], index: 7, kind: input, shape index: {}]
  %s8 = inlined_call_operand.vmem [shape: f32[2,16,128], index: 8, kind: output, shape index: {0}]
  %s9 = inlined_call_operand.vmem [shape: f32[2,1,128], index: 9, kind: output, shape index: {1}]
  %10 = xla_tuple %s8, %s9
  %s11 = sld [smem:[#allocation0]]
  $region50: #{mesh_conv_net_forward.3} parent=0
    _
  %s13 = ssub.s32 1, %s11
  %s14 = scalar_select 0, %s13, %s11
  // Predicated region
  $region2: #{mesh_conv_net_forward.3} parent=0 // pred_check
    _
  $region3: #{mesh_conv_net_forward.3} parent=0 // pred_check_branch
    %16 = sbr.rel (0) target = $region5
  $region4: #{mesh_conv_net_forward.3} parent=0 // pred_region
    _
  $region5: #{mesh_conv_net_forward.3} parent=0 // pred_fallthru
    _
  // Predicated region
  $region6: #{mesh_conv_net_forward.3} parent=0 // pred_check
    _
  $region7: #{mesh_conv_net_forward.3} parent=0 // pred_check_branch
    %18 = sbr.rel (0) target = $region9
  $region8: #{mesh_conv_net_forward.3} parent=0 // pred_region
    _
  $region9: #{mesh_conv_net_forward.3} parent=0 // pred_fallthru
    _
  // Predicated region
  $region10: #{mesh_conv_net_forward.3} parent=0 // pred_check
    _
  $region11: #{mesh_conv_net_forward.3} parent=0 // pred_check_branch
    %20 = sbr.rel (0) target = $region13
  $region12: #{mesh_conv_net_forward.3} parent=0 // pred_region
    _
  $region13: #{mesh_conv_net_forward.3} parent=0 // pred_fallthru
    _
  // Predicated region
  $region14: #{mesh_conv_net_forward.3} parent=0 // pred_check
    _
  $region15: #{mesh_conv_net_forward.3} parent=0 // pred_check_branch
    %22 = sbr.rel (0) target = $region17
  $region16: #{mesh_conv_net_forward.3} parent=0 // pred_region
    _
  $region17: #{mesh_conv_net_forward.3} parent=0 // pred_fallthru
    _
  // Predicated region
  $region18: #{mesh_conv_net_forward.3} parent=0 // pred_check
    _
  $region19: #{mesh_conv_net_forward.3} parent=0 // pred_check_branch
    %24 = sbr.rel (0) target = $region21
  $region20: #{mesh_conv_net_forward.3} parent=0 // pred_region
    _
  $region21: #{mesh_conv_net_forward.3} parent=0 // pred_fallthru
    _
  // Predicated region
  $region22: #{mesh_conv_net_forward.3} parent=0 // pred_check
    _
  $region23: #{mesh_conv_net_forward.3} parent=0 // pred_check_branch
    %26 = sbr.rel (0) target = $region25
  $region24: #{mesh_conv_net_forward.3} parent=0 // pred_region
    _
  $region25: #{mesh_conv_net_forward.3} parent=0 // pred_fallthru
    _
  // Predicated region
  $region26: #{mesh_conv_net_forward.3} parent=0 // pred_check
    _
  $region27: #{mesh_conv_net_forward.3} parent=0 // pred_check_branch
    %28 = sbr.rel (0) target = $region29
  $region28: #{mesh_conv_net_forward.3} parent=0 // pred_region
    _
  $region29: #{mesh_conv_net_forward.3} parent=0 // pred_fallthru
    _
  // Predicated region
  $region30: #{mesh_conv_net_forward.3} parent=0 // pred_check
    _
  $region31: #{mesh_conv_net_forward.3} parent=0 // pred_check_branch
    %30 = sbr.rel (0) target = $region33
  $region32: #{mesh_conv_net_forward.3} parent=0 // pred_region
    _
  $region33: #{mesh_conv_net_forward.3} parent=0 // pred_fallthru
    _
  %v32 = vlaneseq
  %v33 = vand.u32 %v32, 127
  %vm34 = vcmp.lt.s32.totalorder %v33, 48
  %v35 = vsel %vm34, 1, 0
  %v36 = vcvt.s32.f32 %v35
  %v37 = vld [vmem:[%s2] sm:$0xff]
  %v38 = vld [vmem:[%s2 + $0x8] sm:$0xff]
  %v39 = vld [vmem:[%s2 + $0x10] sm:$0xff]
  %v40 = vld [vmem:[%s2 + $0x18] sm:$0xff]
  %v41 = vld [vmem:[%s2 + $0x20] sm:$0xff]
  %v42 = vld [vmem:[%s2 + $0x28] sm:$0xff]
  %v43 = vld [vmem:[%s2 + $0x30] sm:$0xff]
  %v44 = vld [vmem:[%s2 + $0x38] sm:$0xff]
  %v45 = vld [vmem:[%s2 + $0x40] sm:$0xff]
  %v46 = vld [vmem:[%s2 + $0x48] sm:$0xff]
  %v47 = vpack.c.bf16 %v37, %v37
  %v48 = vpack.c.bf16 %v38, %v38
  %v49 = vpack.c.bf16 %v39, %v39
  %v50 = vpack.c.bf16 %v40, %v40
  %v51 = vpack.c.bf16 %v41, %v41
  %v52 = vpack.c.bf16 %v42, %v42
  %v53 = vpack.c.bf16 %v43, %v43
  %v54 = vpack.c.bf16 %v44, %v44
  %v55 = vpack.c.bf16 %v45, %v45
  %v56 = vpack.c.bf16 %v46, %v46
  %v57 = vld [vmem:[%s3] sm:$0xff]
  %v58 = vld [vmem:[%s3 + $0x8] sm:$0xff]
  %v59 = vld [vmem:[%s3 + $0x10] sm:$0xff]
  %v60 = vld [vmem:[%s3 + $0x18] sm:$0xff]
  %v61 = vld [vmem:[%s3 + $0x20] sm:$0xff]
  %v62 = vld [vmem:[%s3 + $0x28] sm:$0xff]
  %v63 = vld [vmem:[%s3 + $0x30] sm:$0xff]
  %v64 = vld [vmem:[%s3 + $0x38] sm:$0xff]
  %v65 = vld [vmem:[%s3 + $0x40] sm:$0xff]
  %v66 = vld [vmem:[%s3 + $0x48] sm:$0xff]
  %v67 = vpack.c.bf16 %v57, %v57
  %v68 = vpack.c.bf16 %v58, %v58
  %v69 = vpack.c.bf16 %v59, %v59
  %v70 = vpack.c.bf16 %v60, %v60
  %v71 = vpack.c.bf16 %v61, %v61
  %v72 = vpack.c.bf16 %v62, %v62
  %v73 = vpack.c.bf16 %v63, %v63
  %v74 = vpack.c.bf16 %v64, %v64
  %v75 = vpack.c.bf16 %v65, %v65
  %v76 = vpack.c.bf16 %v66, %v66
  %v77 = vld [vmem:[%s4] sm:$0xff]
  %v78 = vld [vmem:[%s4 + $0x8] sm:$0xff]
  %v79 = vld [vmem:[%s4 + $0x10] sm:$0xff]
  %v80 = vld [vmem:[%s4 + $0x18] sm:$0xff]
  %v81 = vld [vmem:[%s4 + $0x20] sm:$0xff]
  %v82 = vld [vmem:[%s4 + $0x28] sm:$0xff]
  %v83 = vld [vmem:[%s4 + $0x30] sm:$0xff]
  %v84 = vld [vmem:[%s4 + $0x38] sm:$0xff]
  %v85 = vld [vmem:[%s4 + $0x40] sm:$0xff]
  %v86 = vld [vmem:[%s4 + $0x48] sm:$0xff]
  %v87 = vpack.c.bf16 %v77, %v77
  %v88 = vpack.c.bf16 %v78, %v78
  %v89 = vpack.c.bf16 %v79, %v79
  %v90 = vpack.c.bf16 %v80, %v80
  %v91 = vpack.c.bf16 %v81, %v81
  %v92 = vpack.c.bf16 %v82, %v82
  %v93 = vpack.c.bf16 %v83, %v83
  %v94 = vpack.c.bf16 %v84, %v84
  %v95 = vpack.c.bf16 %v85, %v85
  %v96 = vpack.c.bf16 %v86, %v86
  %v97 = vld [vmem:[%s5] sm:$0xff]
  %v98 = vld [vmem:[%s5 + $0x8] sm:$0xff]
  %v99 = vld [vmem:[%s6] sm:$0xff]
  %v100 = vld [vmem:[%s6 + $0x8] sm:$0xff]
  %v101 = vld [vmem:[%s7] sm:$0xff]
  %v102 = vld [vmem:[%s7 + $0x8] sm:$0xff]
  %v103 = vld [vmem:[%s0] sm:$0xff]
  %v104 = vpack.c.bf16 %v103, %v103
  %v105 = vld [vmem:[%s1] sm:$0xf]
  %v106 = vld [vmem:[%s1 + $0x4] sm:$0xf]
  %v107 = vld [vmem:[%s1 + $0x8] sm:$0xf]
  %v108 = vld [vmem:[%s1 + $0xc] sm:$0xf]
  %v109 = vld [vmem:[%s1 + $0x10] sm:$0xf]
  %v110 = vld [vmem:[%s1 + $0x14] sm:$0xf]
  %v111 = vld [vmem:[%s1 + $0x18] sm:$0xf]
  %v112 = vld [vmem:[%s1 + $0x1c] sm:$0xf]
  %v113 = vld [vmem:[%s1 + $0x20] sm:$0xf]
  %v114 = vld [vmem:[%s1 + $0x24] sm:$0xf]
  %v115 = vld [vmem:[%s1 + $0x28] sm:$0xf]
  %v116 = vld [vmem:[%s1 + $0x2c] sm:$0xf]
  %v117 = vld [vmem:[%s1 + $0x30] sm:$0xf]
  %v118 = vld [vmem:[%s1 + $0x34] sm:$0xf]
  %v119 = vld [vmem:[%s1 + $0x38] sm:$0xf]
  %v120 = vld [vmem:[%s1 + $0x3c] sm:$0xf]
  %v137 = vunpack.c.l.b16 %v105
  %v138 = vunpack.c.l.b16 %v106
  %v139 = vunpack.c.l.b16 %v107
  %v140 = vunpack.c.l.b16 %v108
  %v141 = vunpack.c.l.b16 %v109
  %v142 = vunpack.c.l.b16 %v110
  %v143 = vunpack.c.l.b16 %v111
  %v144 = vunpack.c.l.b16 %v112
  %v145 = vunpack.c.l.b16 %v113
  %v146 = vunpack.c.l.b16 %v114
  %v147 = vunpack.c.l.b16 %v115
  %v148 = vunpack.c.l.b16 %v116
  %v149 = vunpack.c.l.b16 %v117
  %v150 = vunpack.c.l.b16 %v118
  %v151 = vunpack.c.l.b16 %v119
  %v152 = vunpack.c.l.b16 %v120
  %v153 = vpack.c.b16 %v138, %v137
  %v154 = vpack.c.b16 %v140, %v139
  %v155 = vpack.c.b16 %v142, %v141
  %v156 = vpack.c.b16 %v144, %v143
  %v157 = vpack.c.b16 %v146, %v145
  %v158 = vpack.c.b16 %v148, %v147
  %v159 = vpack.c.b16 %v150, %v149
  %v160 = vpack.c.b16 %v152, %v151
  %169 = vmatpush.bf16.msra.mxu0 %v160
  %170 = vmatpush.bf16.msra.mxu0 %v159
  %171 = vmatpush.bf16.msra.mxu0 %v158
  %172 = vmatpush.bf16.msra.mxu0 %v157
  %173 = vmatpush.bf16.msra.mxu0 %v156
  %174 = vmatpush.bf16.msra.mxu0 %v155
  %175 = vmatpush.bf16.msra.mxu0 %v154
  %176 = vmatpush.bf16.msra.mxu0 %v153
  %177 = vmatmul.bf16.gmra.mxu0 %v104
  %v178 = vpop.f32.mrf.mxu0
  %v179 = vadd.f32 0.0, %v178
  %v180 = vpop.f32.mrf.mxu0
  %181 = vdwg.mxu0
  %v182 = vpack.c.bf16 %v179, %v179
  %s183 = scalar_lea.vmem %s1, 64
  %v184 = vld [vmem:[%s183] sm:$0xf]
  %v185 = vld [vmem:[%s183 + $0x4] sm:$0xf]
  %v186 = vld [vmem:[%s183 + $0x8] sm:$0xf]
  %v187 = vld [vmem:[%s183 + $0xc] sm:$0xf]
  %v188 = vld [vmem:[%s183 + $0x10] sm:$0xf]
  %v189 = vld [vmem:[%s183 + $0x14] sm:$0xf]
  %v190 = vld [vmem:[%s183 + $0x18] sm:$0xf]
  %v191 = vld [vmem:[%s183 + $0x1c] sm:$0xf]
  %v192 = vld [vmem:[%s183 + $0x20] sm:$0xf]
  %v193 = vld [vmem:[%s183 + $0x24] sm:$0xf]
  %v194 = vld [vmem:[%s183 + $0x28] sm:$0xf]
  %v195 = vld [vmem:[%s183 + $0x2c] sm:$0xf]
  %v196 = vld [vmem:[%s183 + $0x30] sm:$0xf]
  %v197 = vld [vmem:[%s183 + $0x34] sm:$0xf]
  %v198 = vld [vmem:[%s183 + $0x38] sm:$0xf]
  %v199 = vld [vmem:[%s183 + $0x3c] sm:$0xf]
  %v216 = vunpack.c.l.b16 %v184
  %v217 = vunpack.c.l.b16 %v185
  %v218 = vunpack.c.l.b16 %v186
  %v219 = vunpack.c.l.b16 %v187
  %v220 = vunpack.c.l.b16 %v188
  %v221 = vunpack.c.l.b16 %v189
  %v222 = vunpack.c.l.b16 %v190
  %v223 = vunpack.c.l.b16 %v191
  %v224 = vunpack.c.l.b16 %v192
  %v225 = vunpack.c.l.b16 %v193
  %v226 = vunpack.c.l.b16 %v194
  %v227 = vunpack.c.l.b16 %v195
  %v228 = vunpack.c.l.b16 %v196
  %v229 = vunpack.c.l.b16 %v197
  %v230 = vunpack.c.l.b16 %v198
  %v231 = vunpack.c.l.b16 %v199
  %v232 = vpack.c.b16 %v217, %v216
  %v233 = vpack.c.b16 %v219, %v218
  %v234 = vpack.c.b16 %v221, %v220
  %v235 = vpack.c.b16 %v223, %v222
  %v236 = vpack.c.b16 %v225, %v224
  %v237 = vpack.c.b16 %v227, %v226
  %v238 = vpack.c.b16 %v229, %v228
  %v239 = vpack.c.b16 %v231, %v230
  %248 = vmatpush.bf16.msra.mxu0 %v239
  %249 = vmatpush.bf16.msra.mxu0 %v238
  %250 = vmatpush.bf16.msra.mxu0 %v237
  %251 = vmatpush.bf16.msra.mxu0 %v236
  %252 = vmatpush.bf16.msra.mxu0 %v235
  %253 = vmatpush.bf16.msra.mxu0 %v234
  %254 = vmatpush.bf16.msra.mxu0 %v233
  %255 = vmatpush.bf16.msra.mxu0 %v232
  %256 = vmatmul.bf16.gmra.mxu0 %v104
  %v257 = vpop.f32.mrf.mxu0
  %v258 = vadd.f32 0.0, %v257
  %v259 = vpop.f32.mrf.mxu0
  %260 = vdwg.mxu0
  %v261 = vpack.c.bf16 %v258, %v258
  %s262 = scalar_lea.vmem %s1, 128
  %v263 = vld [vmem:[%s262] sm:$0xf]
  %v264 = vld [vmem:[%s262 + $0x4] sm:$0xf]
  %v265 = vld [vmem:[%s262 + $0x8] sm:$0xf]
  %v266 = vld [vmem:[%s262 + $0xc] sm:$0xf]
  %v267 = vld [vmem:[%s262 + $0x10] sm:$0xf]
  %v268 = vld [vmem:[%s262 + $0x14] sm:$0xf]
  %v269 = vld [vmem:[%s262 + $0x18] sm:$0xf]
  %v270 = vld [vmem:[%s262 + $0x1c] sm:$0xf]
  %v271 = vld [vmem:[%s262 + $0x20] sm:$0xf]
  %v272 = vld [vmem:[%s262 + $0x24] sm:$0xf]
  %v273 = vld [vmem:[%s262 + $0x28] sm:$0xf]
  %v274 = vld [vmem:[%s262 + $0x2c] sm:$0xf]
  %v275 = vld [vmem:[%s262 + $0x30] sm:$0xf]
  %v276 = vld [vmem:[%s262 + $0x34] sm:$0xf]
  %v277 = vld [vmem:[%s262 + $0x38] sm:$0xf]
  %v278 = vld [vmem:[%s262 + $0x3c] sm:$0xf]
  %v295 = vunpack.c.l.b16 %v263
  %v296 = vunpack.c.l.b16 %v264
  %v297 = vunpack.c.l.b16 %v265
  %v298 = vunpack.c.l.b16 %v266
  %v299 = vunpack.c.l.b16 %v267
  %v300 = vunpack.c.l.b16 %v268
  %v301 = vunpack.c.l.b16 %v269
  %v302 = vunpack.c.l.b16 %v270
  %v303 = vunpack.c.l.b16 %v271
  %v304 = vunpack.c.l.b16 %v272
  %v305 = vunpack.c.l.b16 %v273
  %v306 = vunpack.c.l.b16 %v274
  %v307 = vunpack.c.l.b16 %v275
  %v308 = vunpack.c.l.b16 %v276
  %v309 = vunpack.c.l.b16 %v277
  %v310 = vunpack.c.l.b16 %v278
  %v311 = vpack.c.b16 %v296, %v295
  %v312 = vpack.c.b16 %v298, %v297
  %v313 = vpack.c.b16 %v300, %v299
  %v314 = vpack.c.b16 %v302, %v301
  %v315 = vpack.c.b16 %v304, %v303
  %v316 = vpack.c.b16 %v306, %v305
  %v317 = vpack.c.b16 %v308, %v307
  %v318 = vpack.c.b16 %v310, %v309
  %327 = vmatpush.bf16.msra.mxu0 %v318
  %328 = vmatpush.bf16.msra.mxu0 %v317
  %329 = vmatpush.bf16.msra.mxu0 %v316
  %330 = vmatpush.bf16.msra.mxu0 %v315
  %331 = vmatpush.bf16.msra.mxu0 %v314
  %332 = vmatpush.bf16.msra.mxu0 %v313
  %333 = vmatpush.bf16.msra.mxu0 %v312
  %334 = vmatpush.bf16.msra.mxu0 %v311
  %335 = vmatmul.bf16.gmra.mxu0 %v104
  %v336 = vpop.f32.mrf.mxu0
  %v337 = vadd.f32 0.0, %v336
  %v338 = vpop.f32.mrf.mxu0
  %339 = vdwg.mxu0
  %v340 = vand.u32 2147483647, %v337
  %v341 = vpack.c.bf16 %v340, %v340
  %s342 = scalar_lea.vmem %s1, 192
  %v343 = vld [vmem:[%s342] sm:$0xf]
  %v344 = vld [vmem:[%s342 + $0x4] sm:$0xf]
  %v345 = vld [vmem:[%s342 + $0x8] sm:$0xf]
  %v346 = vld [vmem:[%s342 + $0xc] sm:$0xf]
  %v347 = vld [vmem:[%s342 + $0x10] sm:$0xf]
  %v348 = vld [vmem:[%s342 + $0x14] sm:$0xf]
  %v349 = vld [vmem:[%s342 + $0x18] sm:$0xf]
  %v350 = vld [vmem:[%s342 + $0x1c] sm:$0xf]
  %v351 = vld [vmem:[%s342 + $0x20] sm:$0xf]
  %v352 = vld [vmem:[%s342 + $0x24] sm:$0xf]
  %v353 = vld [vmem:[%s342 + $0x28] sm:$0xf]
  %v354 = vld [vmem:[%s342 + $0x2c] sm:$0xf]
  %v355 = vld [vmem:[%s342 + $0x30] sm:$0xf]
  %v356 = vld [vmem:[%s342 + $0x34] sm:$0xf]
  %v357 = vld [vmem:[%s342 + $0x38] sm:$0xf]
  %v358 = vld [vmem:[%s342 + $0x3c] sm:$0xf]
  %v375 = vunpack.c.l.b16 %v343
  %v376 = vunpack.c.l.b16 %v344
  %v377 = vunpack.c.l.b16 %v345
  %v378 = vunpack.c.l.b16 %v346
  %v379 = vunpack.c.l.b16 %v347
  %v380 = vunpack.c.l.b16 %v348
  %v381 = vunpack.c.l.b16 %v349
  %v382 = vunpack.c.l.b16 %v350
  %v383 = vunpack.c.l.b16 %v351
  %v384 = vunpack.c.l.b16 %v352
  %v385 = vunpack.c.l.b16 %v353
  %v386 = vunpack.c.l.b16 %v354
  %v387 = vunpack.c.l.b16 %v355
  %v388 = vunpack.c.l.b16 %v356
  %v389 = vunpack.c.l.b16 %v357
  %v390 = vunpack.c.l.b16 %v358
  %v391 = vpack.c.b16 %v376, %v375
  %v392 = vpack.c.b16 %v378, %v377
  %v393 = vpack.c.b16 %v380, %v379
  %v394 = vpack.c.b16 %v382, %v381
  %v395 = vpack.c.b16 %v384, %v383
  %v396 = vpack.c.b16 %v386, %v385
  %v397 = vpack.c.b16 %v388, %v387
  %v398 = vpack.c.b16 %v390, %v389
  %407 = vmatpush.bf16.msra.mxu0 %v398
  %408 = vmatpush.bf16.msra.mxu0 %v397
  %409 = vmatpush.bf16.msra.mxu0 %v396
  %410 = vmatpush.bf16.msra.mxu0 %v395
  %411 = vmatpush.bf16.msra.mxu0 %v394
  %412 = vmatpush.bf16.msra.mxu0 %v393
  %413 = vmatpush.bf16.msra.mxu0 %v392
  %414 = vmatpush.bf16.msra.mxu0 %v391
  %415 = vmatmul.bf16.gmra.mxu0 %v104
  %v416 = vpop.f32.mrf.mxu0
  %v417 = vadd.f32 0.0, %v416
  %v418 = vpop.f32.mrf.mxu0
  %419 = vdwg.mxu0
  %v420 = vand.u32 2147483647, %v417
  %v421 = vpack.c.bf16 %v420, %v420
  %v424 = vunpack.c.l.b16 %v49
  %v425 = vunpack.c.l.b16 %v50
  %v426 = vpack.c.b16 %v425, %v424
  %vm427 = vcmask 64512
  %v429 = vsel %vm427, %v426, 0
  %vm431 = vcmask 1043456
  %v433 = vsel %vm431, %v182, 0
  %435 = vmatpush.bf16.msra.mxu0 0
  %436 = vmatpush.bf16.msra.mxu0 0
  %437 = vmatpush.bf16.msra.mxu0 0
  %438 = vmatpush.bf16.msra.mxu0 0
  %439 = vmatpush.bf16.msra.mxu0 0
  %440 = vmatpush.bf16.msra.mxu0 0
  %441 = vmatpush.bf16.msra.mxu0 0
  %442 = vmatpush.bf16.msra.mxu0 %v433
  %443 = vmatmul.bf16.gmra.mxu0 %v429
  %v444 = vpop.f32.mrf.mxu0
  %v445 = vadd.f32 0.0, %v444
  %v446 = vpop.f32.mrf.mxu0
  %v447 = vadd.f32 0.0, %v446
  %448 = vdwg.mxu0
  %v451 = vunpack.c.l.b16 %v47
  %v452 = vunpack.c.l.b16 %v48
  %v453 = vpack.c.b16 %v452, %v451
  %v455 = vsel %vm427, %v453, 0
  %v458 = vsel %vm431, %v104, 0
  %460 = vmatpush.bf16.msra.mxu0 0
  %461 = vmatpush.bf16.msra.mxu0 0
  %462 = vmatpush.bf16.msra.mxu0 0
  %463 = vmatpush.bf16.msra.mxu0 0
  %464 = vmatpush.bf16.msra.mxu0 0
  %465 = vmatpush.bf16.msra.mxu0 0
  %466 = vmatpush.bf16.msra.mxu0 0
  %467 = vmatpush.bf16.msra.mxu0 %v458
  %468 = vmatmul.bf16.gmra.mxu0 %v455
  %v469 = vpop.f32.mrf.mxu0
  %v470 = vadd.f32 %v445, %v469
  %v471 = vpop.f32.mrf.mxu0
  %v472 = vadd.f32 %v447, %v471
  %473 = vdwg.mxu0
  %v476 = vunpack.c.l.b16 %v51
  %v477 = vunpack.c.l.b16 %v52
  %v478 = vpack.c.b16 %v477, %v476
  %v480 = vsel %vm427, %v478, 0
  %v483 = vsel %vm431, %v261, 0
  %485 = vmatpush.bf16.msra.mxu0 0
  %486 = vmatpush.bf16.msra.mxu0 0
  %487 = vmatpush.bf16.msra.mxu0 0
  %488 = vmatpush.bf16.msra.mxu0 0
  %489 = vmatpush.bf16.msra.mxu0 0
  %490 = vmatpush.bf16.msra.mxu0 0
  %491 = vmatpush.bf16.msra.mxu0 0
  %492 = vmatpush.bf16.msra.mxu0 %v483
  %493 = vmatmul.bf16.gmra.mxu0 %v480
  %v494 = vpop.f32.mrf.mxu0
  %v495 = vadd.f32 0.0, %v494
  %v496 = vpop.f32.mrf.mxu0
  %v497 = vadd.f32 0.0, %v496
  %498 = vdwg.mxu0
  %v499 = vadd.f32 %v470, %v495
  %v500 = vadd.f32 %v472, %v497
  %v503 = vunpack.c.l.b16 %v53
  %v504 = vunpack.c.l.b16 %v54
  %v505 = vpack.c.b16 %v504, %v503
  %v507 = vsel %vm427, %v505, 0
  %v510 = vsel %vm431, %v341, 0
  %512 = vmatpush.bf16.msra.mxu0 0
  %513 = vmatpush.bf16.msra.mxu0 0
  %514 = vmatpush.bf16.msra.mxu0 0
  %515 = vmatpush.bf16.msra.mxu0 0
  %516 = vmatpush.bf16.msra.mxu0 0
  %517 = vmatpush.bf16.msra.mxu0 0
  %518 = vmatpush.bf16.msra.mxu0 0
  %519 = vmatpush.bf16.msra.mxu0 %v510
  %520 = vmatmul.bf16.gmra.mxu0 %v507
  %v521 = vpop.f32.mrf.mxu0
  %v522 = vadd.f32 0.0, %v521
  %v523 = vpop.f32.mrf.mxu0
  %v524 = vadd.f32 0.0, %v523
  %525 = vdwg.mxu0
  %v526 = vadd.f32 %v499, %v522
  %v527 = vadd.f32 %v500, %v524
  %v530 = vunpack.c.l.b16 %v55
  %v531 = vunpack.c.l.b16 %v56
  %v532 = vpack.c.b16 %v531, %v530
  %v534 = vsel %vm427, %v532, 0
  %v537 = vsel %vm431, %v421, 0
  %539 = vmatpush.bf16.msra.mxu0 0
  %540 = vmatpush.bf16.msra.mxu0 0
  %541 = vmatpush.bf16.msra.mxu0 0
  %542 = vmatpush.bf16.msra.mxu0 0
  %543 = vmatpush.bf16.msra.mxu0 0
  %544 = vmatpush.bf16.msra.mxu0 0
  %545 = vmatpush.bf16.msra.mxu0 0
  %546 = vmatpush.bf16.msra.mxu0 %v537
  %547 = vmatmul.bf16.gmra.mxu0 %v534
  %v548 = vpop.f32.mrf.mxu0
  %v549 = vadd.f32 0.0, %v548
  %v550 = vpop.f32.mrf.mxu0
  %v551 = vadd.f32 0.0, %v550
  %552 = vdwg.mxu0
  %v553 = vadd.f32 %v526, %v549
  %v554 = vadd.f32 %v527, %v551
  %v555 = vmul.f32 %v553, %v36
  %v556 = vmul.f32 %v554, %v36
  %557 = vadd.xlane.f32.xlu0 %v555
  %v558 = vpop.xlane.xlu0 %557
  %559 = vadd.xlane.f32.xlu0 %v556
  %v560 = vpop.xlane.xlu0 %559
  %v561 = vmul.f32 %v558, 0.020833334
  %v562 = vmul.f32 %v560, 0.020833334
  %v563 = vsub.f32 %v553, %v561
  %v564 = vsub.f32 %v554, %v562
  %v565 = vmul.f32 %v563, %v36
  %v566 = vmul.f32 %v564, %v36
  %v567 = vmul.f32 %v565, %v565
  %v568 = vmul.f32 %v566, %v566
  %569 = vadd.xlane.f32.xlu0 %v567
  %v570 = vpop.xlane.xlu0 %569
  %571 = vadd.xlane.f32.xlu0 %v568
  %v572 = vpop.xlane.xlu0 %571
  %v573 = vmul.f32 %v570, 0.020833334
  %v574 = vmul.f32 %v572, 0.020833334
  %v575 = vadd.f32 %v573, 1e-05
  %v576 = vadd.f32 %v574, 1e-05
  %v577 = vrsqrt.pop %v575
  %v578 = vmul.f32 %v577, %v575
  %v579 = vmul.f32 %v578, %v577
  %v580 = vmul.f32 0.5, %v579
  %v581 = vsub.f32 1.5, %v580
  %v582 = vmul.f32 %v577, %v581
  %vm583 = vweird.f32 %v575
  %vm584 = vweird.f32 %v577
  %vm585 = vmor %vm583, %vm584
  %v586 = vsel %vm585, %v577, %v582
  %v587 = vrsqrt.pop %v576
  %v588 = vmul.f32 %v587, %v576
  %v589 = vmul.f32 %v588, %v587
  %v590 = vmul.f32 0.5, %v589
  %v591 = vsub.f32 1.5, %v590
  %v592 = vmul.f32 %v587, %v591
  %vm593 = vweird.f32 %v576
  %vm594 = vweird.f32 %v587
  %vm595 = vmor %vm593, %vm594
  %v596 = vsel %vm595, %v587, %v592
  %v597 = vmul.f32 %v563, %v586
  %v598 = vmul.f32 %v564, %v596
  %v599 = vmax.f32 %v597, 0.0
  %v600 = vmax.f32 %v598, 0.0
  %v601 = vpack.c.bf16 %v600, %v599
  %602 = vmatpush.bf16.msra.mxu0 %v160
  %603 = vmatpush.bf16.msra.mxu0 %v159
  %604 = vmatpush.bf16.msra.mxu0 %v158
  %605 = vmatpush.bf16.msra.mxu0 %v157
  %606 = vmatpush.bf16.msra.mxu0 %v156
  %607 = vmatpush.bf16.msra.mxu0 %v155
  %608 = vmatpush.bf16.msra.mxu0 %v154
  %609 = vmatpush.bf16.msra.mxu0 %v153
  %610 = vmatmul.bf16.gmra.mxu0 %v601
  %v611 = vpop.f32.mrf.mxu0
  %v612 = vadd.f32 0.0, %v611
  %v613 = vpop.f32.mrf.mxu0
  %v614 = vadd.f32 0.0, %v613
  %615 = vdwg.mxu0
  %v616 = vpack.c.bf16 %v614, %v612
  %617 = vmatpush.bf16.msra.mxu0 %v239
  %618 = vmatpush.bf16.msra.mxu0 %v238
  %619 = vmatpush.bf16.msra.mxu0 %v237
  %620 = vmatpush.bf16.msra.mxu0 %v236
  %621 = vmatpush.bf16.msra.mxu0 %v235
  %622 = vmatpush.bf16.msra.mxu0 %v234
  %623 = vmatpush.bf16.msra.mxu0 %v233
  %624 = vmatpush.bf16.msra.mxu0 %v232
  %625 = vmatmul.bf16.gmra.mxu0 %v601
  %v626 = vpop.f32.mrf.mxu0
  %v627 = vadd.f32 0.0, %v626
  %v628 = vpop.f32.mrf.mxu0
  %v629 = vadd.f32 0.0, %v628
  %630 = vdwg.mxu0
  %v631 = vpack.c.bf16 %v629, %v627
  %632 = vmatpush.bf16.msra.mxu0 %v318
  %633 = vmatpush.bf16.msra.mxu0 %v317
  %634 = vmatpush.bf16.msra.mxu0 %v316
  %635 = vmatpush.bf16.msra.mxu0 %v315
  %636 = vmatpush.bf16.msra.mxu0 %v314
  %637 = vmatpush.bf16.msra.mxu0 %v313
  %638 = vmatpush.bf16.msra.mxu0 %v312
  %639 = vmatpush.bf16.msra.mxu0 %v311
  %640 = vmatmul.bf16.gmra.mxu0 %v601
  %v641 = vpop.f32.mrf.mxu0
  %v642 = vadd.f32 0.0, %v641
  %v643 = vpop.f32.mrf.mxu0
  %v644 = vadd.f32 0.0, %v643
  %645 = vdwg.mxu0
  %v646 = vand.u32 2147483647, %v642
  %v647 = vand.u32 2147483647, %v644
  %v648 = vpack.c.bf16 %v647, %v646
  %649 = vmatpush.bf16.msra.mxu0 %v398
  %650 = vmatpush.bf16.msra.mxu0 %v397
  %651 = vmatpush.bf16.msra.mxu0 %v396
  %652 = vmatpush.bf16.msra.mxu0 %v395
  %653 = vmatpush.bf16.msra.mxu0 %v394
  %654 = vmatpush.bf16.msra.mxu0 %v393
  %655 = vmatpush.bf16.msra.mxu0 %v392
  %656 = vmatpush.bf16.msra.mxu0 %v391
  %657 = vmatmul.bf16.gmra.mxu0 %v601
  %v658 = vpop.f32.mrf.mxu0
  %v659 = vadd.f32 0.0, %v658
  %v660 = vpop.f32.mrf.mxu0
  %v661 = vadd.f32 0.0, %v660
  %662 = vdwg.mxu0
  %v663 = vand.u32 2147483647, %v659
  %v664 = vand.u32 2147483647, %v661
  %v665 = vpack.c.bf16 %v664, %v663
  %v668 = vunpack.c.l.b16 %v69
  %v669 = vunpack.c.l.b16 %v70
  %v670 = vpack.c.b16 %v669, %v668
  %vm671 = vcmask 130048
  %v673 = vsel %vm671, %v670, 0
  %675 = vmatpush.bf16.msra.mxu0 0
  %676 = vmatpush.bf16.msra.mxu0 0
  %677 = vmatpush.bf16.msra.mxu0 0
  %678 = vmatpush.bf16.msra.mxu0 0
  %679 = vmatpush.bf16.msra.mxu0 0
  %680 = vmatpush.bf16.msra.mxu0 0
  %681 = vmatpush.bf16.msra.mxu0 0
  %682 = vmatpush.bf16.msra.mxu0 %v616
  %683 = vmatmul.bf16.gmra.mxu0 %v673
  %v684 = vpop.f32.mrf.mxu0
  %v685 = vadd.f32 0.0, %v684
  %v686 = vpop.f32.mrf.mxu0
  %v687 = vadd.f32 0.0, %v686
  %688 = vdwg.mxu0
  %v691 = vunpack.c.l.b16 %v67
  %v692 = vunpack.c.l.b16 %v68
  %v693 = vpack.c.b16 %v692, %v691
  %v695 = vsel %vm671, %v693, 0
  %697 = vmatpush.bf16.msra.mxu0 0
  %698 = vmatpush.bf16.msra.mxu0 0
  %699 = vmatpush.bf16.msra.mxu0 0
  %700 = vmatpush.bf16.msra.mxu0 0
  %701 = vmatpush.bf16.msra.mxu0 0
  %702 = vmatpush.bf16.msra.mxu0 0
  %703 = vmatpush.bf16.msra.mxu0 0
  %704 = vmatpush.bf16.msra.mxu0 %v601
  %705 = vmatmul.bf16.gmra.mxu0 %v695
  %v706 = vpop.f32.mrf.mxu0
  %v707 = vadd.f32 %v685, %v706
  %v708 = vpop.f32.mrf.mxu0
  %v709 = vadd.f32 %v687, %v708
  %710 = vdwg.mxu0
  %v713 = vunpack.c.l.b16 %v71
  %v714 = vunpack.c.l.b16 %v72
  %v715 = vpack.c.b16 %v714, %v713
  %v717 = vsel %vm671, %v715, 0
  %719 = vmatpush.bf16.msra.mxu0 0
  %720 = vmatpush.bf16.msra.mxu0 0
  %721 = vmatpush.bf16.msra.mxu0 0
  %722 = vmatpush.bf16.msra.mxu0 0
  %723 = vmatpush.bf16.msra.mxu0 0
  %724 = vmatpush.bf16.msra.mxu0 0
  %725 = vmatpush.bf16.msra.mxu0 0
  %726 = vmatpush.bf16.msra.mxu0 %v631
  %727 = vmatmul.bf16.gmra.mxu0 %v717
  %v728 = vpop.f32.mrf.mxu0
  %v729 = vadd.f32 0.0, %v728
  %v730 = vpop.f32.mrf.mxu0
  %v731 = vadd.f32 0.0, %v730
  %732 = vdwg.mxu0
  %v733 = vadd.f32 %v707, %v729
  %v734 = vadd.f32 %v709, %v731
  %v737 = vunpack.c.l.b16 %v73
  %v738 = vunpack.c.l.b16 %v74
  %v739 = vpack.c.b16 %v738, %v737
  %v741 = vsel %vm671, %v739, 0
  %743 = vmatpush.bf16.msra.mxu0 0
  %744 = vmatpush.bf16.msra.mxu0 0
  %745 = vmatpush.bf16.msra.mxu0 0
  %746 = vmatpush.bf16.msra.mxu0 0
  %747 = vmatpush.bf16.msra.mxu0 0
  %748 = vmatpush.bf16.msra.mxu0 0
  %749 = vmatpush.bf16.msra.mxu0 0
  %750 = vmatpush.bf16.msra.mxu0 %v648
  %751 = vmatmul.bf16.gmra.mxu0 %v741
  %v752 = vpop.f32.mrf.mxu0
  %v753 = vadd.f32 0.0, %v752
  %v754 = vpop.f32.mrf.mxu0
  %v755 = vadd.f32 0.0, %v754
  %756 = vdwg.mxu0
  %v757 = vadd.f32 %v733, %v753
  %v758 = vadd.f32 %v734, %v755
  %v761 = vunpack.c.l.b16 %v75
  %v762 = vunpack.c.l.b16 %v76
  %v763 = vpack.c.b16 %v762, %v761
  %v765 = vsel %vm671, %v763, 0
  %767 = vmatpush.bf16.msra.mxu0 0
  %768 = vmatpush.bf16.msra.mxu0 0
  %769 = vmatpush.bf16.msra.mxu0 0
  %770 = vmatpush.bf16.msra.mxu0 0
  %771 = vmatpush.bf16.msra.mxu0 0
  %772 = vmatpush.bf16.msra.mxu0 0
  %773 = vmatpush.bf16.msra.mxu0 0
  %774 = vmatpush.bf16.msra.mxu0 %v665
  %775 = vmatmul.bf16.gmra.mxu0 %v765
  %v776 = vpop.f32.mrf.mxu0
  %v777 = vadd.f32 0.0, %v776
  %v778 = vpop.f32.mrf.mxu0
  %v779 = vadd.f32 0.0, %v778
  %780 = vdwg.mxu0
  %v781 = vadd.f32 %v757, %v777
  %v782 = vadd.f32 %v758, %v779
  %v783 = vmul.f32 %v781, %v36
  %v784 = vmul.f32 %v782, %v36
  %785 = vadd.xlane.f32.xlu0 %v783
  %v786 = vpop.xlane.xlu0 %785
  %787 = vadd.xlane.f32.xlu0 %v784
  %v788 = vpop.xlane.xlu0 %787
  %v789 = vmul.f32 %v786, 0.020833334
  %v790 = vmul.f32 %v788, 0.020833334
  %v791 = vsub.f32 %v781, %v789
  %v792 = vsub.f32 %v782, %v790
  %v793 = vmul.f32 %v791, %v36
  %v794 = vmul.f32 %v792, %v36
  %v795 = vmul.f32 %v793, %v793
  %v796 = vmul.f32 %v794, %v794
  %797 = vadd.xlane.f32.xlu0 %v795
  %v798 = vpop.xlane.xlu0 %797
  %799 = vadd.xlane.f32.xlu0 %v796
  %v800 = vpop.xlane.xlu0 %799
  %v801 = vmul.f32 %v798, 0.020833334
  %v802 = vmul.f32 %v800, 0.020833334
  %v803 = vadd.f32 %v801, 1e-05
  %v804 = vadd.f32 %v802, 1e-05
  %v805 = vrsqrt.pop %v803
  %v806 = vmul.f32 %v805, %v803
  %v807 = vmul.f32 %v806, %v805
  %v808 = vmul.f32 0.5, %v807
  %v809 = vsub.f32 1.5, %v808
  %v810 = vmul.f32 %v805, %v809
  %vm811 = vweird.f32 %v803
  %vm812 = vweird.f32 %v805
  %vm813 = vmor %vm811, %vm812
  %v814 = vsel %vm813, %v805, %v810
  %v815 = vrsqrt.pop %v804
  %v816 = vmul.f32 %v815, %v804
  %v817 = vmul.f32 %v816, %v815
  %v818 = vmul.f32 0.5, %v817
  %v819 = vsub.f32 1.5, %v818
  %v820 = vmul.f32 %v815, %v819
  %vm821 = vweird.f32 %v804
  %vm822 = vweird.f32 %v815
  %vm823 = vmor %vm821, %vm822
  %v824 = vsel %vm823, %v815, %v820
  %v825 = vmul.f32 %v791, %v814
  %v826 = vmul.f32 %v792, %v824
  %v829 = vunpack.c.l.b16 %v89
  %v830 = vunpack.c.l.b16 %v90
  %v831 = vpack.c.b16 %v830, %v829
  %v833 = vsel %vm427, %v831, 0
  %835 = vmatpush.bf16.msra.mxu0 0
  %836 = vmatpush.bf16.msra.mxu0 0
  %837 = vmatpush.bf16.msra.mxu0 0
  %838 = vmatpush.bf16.msra.mxu0 0
  %839 = vmatpush.bf16.msra.mxu0 0
  %840 = vmatpush.bf16.msra.mxu0 0
  %841 = vmatpush.bf16.msra.mxu0 0
  %842 = vmatpush.bf16.msra.mxu0 %v433
  %843 = vmatmul.bf16.gmra.mxu0 %v833
  %v844 = vpop.f32.mrf.mxu0
  %v845 = vadd.f32 0.0, %v844
  %v846 = vpop.f32.mrf.mxu0
  %v847 = vadd.f32 0.0, %v846
  %848 = vdwg.mxu0
  %v851 = vunpack.c.l.b16 %v87
  %v852 = vunpack.c.l.b16 %v88
  %v853 = vpack.c.b16 %v852, %v851
  %v855 = vsel %vm427, %v853, 0
  %857 = vmatpush.bf16.msra.mxu0 0
  %858 = vmatpush.bf16.msra.mxu0 0
  %859 = vmatpush.bf16.msra.mxu0 0
  %860 = vmatpush.bf16.msra.mxu0 0
  %861 = vmatpush.bf16.msra.mxu0 0
  %862 = vmatpush.bf16.msra.mxu0 0
  %863 = vmatpush.bf16.msra.mxu0 0
  %864 = vmatpush.bf16.msra.mxu0 %v458
  %865 = vmatmul.bf16.gmra.mxu0 %v855
  %v866 = vpop.f32.mrf.mxu0
  %v867 = vadd.f32 %v845, %v866
  %v868 = vpop.f32.mrf.mxu0
  %v869 = vadd.f32 %v847, %v868
  %870 = vdwg.mxu0
  %v873 = vunpack.c.l.b16 %v91
  %v874 = vunpack.c.l.b16 %v92
  %v875 = vpack.c.b16 %v874, %v873
  %v877 = vsel %vm427, %v875, 0
  %879 = vmatpush.bf16.msra.mxu0 0
  %880 = vmatpush.bf16.msra.mxu0 0
  %881 = vmatpush.bf16.msra.mxu0 0
  %882 = vmatpush.bf16.msra.mxu0 0
  %883 = vmatpush.bf16.msra.mxu0 0
  %884 = vmatpush.bf16.msra.mxu0 0
  %885 = vmatpush.bf16.msra.mxu0 0
  %886 = vmatpush.bf16.msra.mxu0 %v483
  %887 = vmatmul.bf16.gmra.mxu0 %v877
  %v888 = vpop.f32.mrf.mxu0
  %v889 = vadd.f32 0.0, %v888
  %v890 = vpop.f32.mrf.mxu0
  %v891 = vadd.f32 0.0, %v890
  %892 = vdwg.mxu0
  %v893 = vadd.f32 %v867, %v889
  %v894 = vadd.f32 %v869, %v891
  %v897 = vunpack.c.l.b16 %v93
  %v898 = vunpack.c.l.b16 %v94
  %v899 = vpack.c.b16 %v898, %v897
  %v901 = vsel %vm427, %v899, 0
  %903 = vmatpush.bf16.msra.mxu0 0
  %904 = vmatpush.bf16.msra.mxu0 0
  %905 = vmatpush.bf16.msra.mxu0 0
  %906 = vmatpush.bf16.msra.mxu0 0
  %907 = vmatpush.bf16.msra.mxu0 0
  %908 = vmatpush.bf16.msra.mxu0 0
  %909 = vmatpush.bf16.msra.mxu0 0
  %910 = vmatpush.bf16.msra.mxu0 %v510
  %911 = vmatmul.bf16.gmra.mxu0 %v901
  %v912 = vpop.f32.mrf.mxu0
  %v913 = vadd.f32 0.0, %v912
  %v914 = vpop.f32.mrf.mxu0
  %v915 = vadd.f32 0.0, %v914
  %916 = vdwg.mxu0
  %v917 = vadd.f32 %v893, %v913
  %v918 = vadd.f32 %v894, %v915
  %v921 = vunpack.c.l.b16 %v95
  %v922 = vunpack.c.l.b16 %v96
  %v923 = vpack.c.b16 %v922, %v921
  %v925 = vsel %vm427, %v923, 0
  %927 = vmatpush.bf16.msra.mxu0 0
  %928 = vmatpush.bf16.msra.mxu0 0
  %929 = vmatpush.bf16.msra.mxu0 0
  %930 = vmatpush.bf16.msra.mxu0 0
  %931 = vmatpush.bf16.msra.mxu0 0
  %932 = vmatpush.bf16.msra.mxu0 0
  %933 = vmatpush.bf16.msra.mxu0 0
  %934 = vmatpush.bf16.msra.mxu0 %v537
  %935 = vmatmul.bf16.gmra.mxu0 %v925
  %v936 = vpop.f32.mrf.mxu0
  %v937 = vadd.f32 0.0, %v936
  %v938 = vpop.f32.mrf.mxu0
  %v939 = vadd.f32 0.0, %v938
  %940 = vdwg.mxu0
  %v941 = vadd.f32 %v917, %v937
  %v942 = vadd.f32 %v918, %v939
  %944 = vset.pattern.permute.xlu0 0
  %945 = vperm.xlu0 %944, %v97
  %v946 = vpop.permute.xlu0 %945
  %949 = vset.pattern.permute.xlu0 0
  %950 = vperm.xlu0 %949, %v98
  %v951 = vpop.permute.xlu0 %950
  %v953 = vadd.f32 %v941, %v946
  %v954 = vadd.f32 %v942, %v951
  %v955 = vadd.f32 %v825, %v953
  %v956 = vadd.f32 %v826, %v954
  %v957 = vmax.f32 %v955, 0.0
  %v958 = vmax.f32 %v956, 0.0
  %v959 = vmul.f32 %v957, %v36
  %v960 = vmul.f32 %v958, %v36
  %v961 = vadd.f32 %v959, %v960
  %962 = vadd.xlane.f32.xlu0 %v961
  %v963 = vpop.xlane.xlu0 %962
  %v964 = vrot.slane %v963, 4
  %v965 = vadd.f32 %v963, %v964
  %v966 = vrot.slane %v965, 2
  %v967 = vadd.f32 %v965, %v966
  %v968 = vrot.slane %v967, 1
  %v969 = vadd.f32 %v967, %v968
  %s970 = vtos %v969
  %s971 = smul.f32 %s970, 0.0013020834
  %v972 = vstv %s971
  %v973 = vsub.f32 %v957, %v972
  %v974 = vsub.f32 %v958, %v972
  %v975 = vmul.f32 %v973, %v36
  %v976 = vmul.f32 %v974, %v36
  %v977 = vmul.f32 %v975, %v975
  %v978 = vmul.f32 %v976, %v976
  %v979 = vadd.f32 %v977, %v978
  %980 = vadd.xlane.f32.xlu0 %v979
  %v981 = vpop.xlane.xlu0 %980
  %v982 = vrot.slane %v981, 4
  %v983 = vadd.f32 %v981, %v982
  %v984 = vrot.slane %v983, 2
  %v985 = vadd.f32 %v983, %v984
  %v986 = vrot.slane %v985, 1
  %v987 = vadd.f32 %v985, %v986
  %s988 = vtos %v987
  %s989 = smul.f32 %s988, 0.0013020834
  %s990 = sadd.f32 %s989, 1e-05
  %v991 = vstv %s990
  %v992 = vrsqrt.pop %v991
  %v993 = vmul.f32 %v992, %v991
  %v994 = vmul.f32 %v993, %v992
  %v995 = vmul.f32 0.5, %v994
  %v996 = vsub.f32 1.5, %v995
  %v997 = vmul.f32 %v992, %v996
  %vm998 = vweird.f32 %v991
  %vm999 = vweird.f32 %v992
  %vm1000 = vmor %vm998, %vm999
  %v1001 = vsel %vm1000, %v992, %v997
  %s1002 = vtos %v1001
  %v1003 = vstv %s1002
  %v1004 = vmul.f32 %v973, %v1003
  %v1005 = vmul.f32 %v974, %v1003
  %1007 = vset.pattern.permute.xlu0 0
  %1008 = vperm.xlu0 %1007, %v99
  %v1009 = vpop.permute.xlu0 %1008
  %1012 = vset.pattern.permute.xlu0 0
  %1013 = vperm.xlu0 %1012, %v100
  %v1014 = vpop.permute.xlu0 %1013
  %v1016 = vmul.f32 %v1004, %v1009
  %v1017 = vmul.f32 %v1005, %v1014
  %1019 = vset.pattern.permute.xlu0 0
  %1020 = vperm.xlu0 %1019, %v101
  %v1021 = vpop.permute.xlu0 %1020
  %1024 = vset.pattern.permute.xlu0 0
  %1025 = vperm.xlu0 %1024, %v102
  %v1026 = vpop.permute.xlu0 %1025
  %v1028 = vadd.f32 %v1016, %v1021
  %v1029 = vadd.f32 %v1017, %v1026
  %v1030 = vmax.f32 %v1028, 0.0
  %v1031 = vmax.f32 %v1029, 0.0
  %1032 = vst [vmem:[%s8] sm:$0xff] %v1030
  %1033 = vst [vmem:[%s8 + $0x8] sm:$0xff] %v1031
  %v1034 = vmul.f32 %v1030, %v1030
  %v1035 = vmul.f32 %v1031, %v1031
  %v1036 = vadd.f32 %v1034, %v1035
  %v1037 = vrot.slane %v1036, 4
  %v1038 = vadd.f32 %v1036, %v1037
  %v1039 = vrot.slane %v1038, 2
  %v1040 = vadd.f32 %v1038, %v1039
  %v1041 = vrot.slane %v1040, 1
  %v1042 = vadd.f32 %v1040, %v1041
  %vm1043 = vcmp.gt.f32.partialorder %v36, 0.0
  %v1044 = vsel %vm1043, %v1042, -1.0
  %1045 = vst [vmem:[%s9] sm:$0x1] %v1044
  %s1046 = scalar_lea.vmem %s0, 8
  %v1047 = vld [vmem:[%s1046] sm:$0xff]
  %v1048 = vpack.c.bf16 %v1047, %v1047
  %s1049 = scalar_lea.vmem %s1, 256
  %v1050 = vld [vmem:[%s1049] sm:$0xf]
  %v1051 = vld [vmem:[%s1049 + $0x4] sm:$0xf]
  %v1052 = vld [vmem:[%s1049 + $0x8] sm:$0xf]
  %v1053 = vld [vmem:[%s1049 + $0xc] sm:$0xf]
  %v1054 = vld [vmem:[%s1049 + $0x10] sm:$0xf]
  %v1055 = vld [vmem:[%s1049 + $0x14] sm:$0xf]
  %v1056 = vld [vmem:[%s1049 + $0x18] sm:$0xf]
  %v1057 = vld [vmem:[%s1049 + $0x1c] sm:$0xf]
  %v1058 = vld [vmem:[%s1049 + $0x20] sm:$0xf]
  %v1059 = vld [vmem:[%s1049 + $0x24] sm:$0xf]
  %v1060 = vld [vmem:[%s1049 + $0x28] sm:$0xf]
  %v1061 = vld [vmem:[%s1049 + $0x2c] sm:$0xf]
  %v1062 = vld [vmem:[%s1049 + $0x30] sm:$0xf]
  %v1063 = vld [vmem:[%s1049 + $0x34] sm:$0xf]
  %v1064 = vld [vmem:[%s1049 + $0x38] sm:$0xf]
  %v1065 = vld [vmem:[%s1049 + $0x3c] sm:$0xf]
  %v1082 = vunpack.c.l.b16 %v1050
  %v1083 = vunpack.c.l.b16 %v1051
  %v1084 = vunpack.c.l.b16 %v1052
  %v1085 = vunpack.c.l.b16 %v1053
  %v1086 = vunpack.c.l.b16 %v1054
  %v1087 = vunpack.c.l.b16 %v1055
  %v1088 = vunpack.c.l.b16 %v1056
  %v1089 = vunpack.c.l.b16 %v1057
  %v1090 = vunpack.c.l.b16 %v1058
  %v1091 = vunpack.c.l.b16 %v1059
  %v1092 = vunpack.c.l.b16 %v1060
  %v1093 = vunpack.c.l.b16 %v1061
  %v1094 = vunpack.c.l.b16 %v1062
  %v1095 = vunpack.c.l.b16 %v1063
  %v1096 = vunpack.c.l.b16 %v1064
  %v1097 = vunpack.c.l.b16 %v1065
  %v1098 = vpack.c.b16 %v1083, %v1082
  %v1099 = vpack.c.b16 %v1085, %v1084
  %v1100 = vpack.c.b16 %v1087, %v1086
  %v1101 = vpack.c.b16 %v1089, %v1088
  %v1102 = vpack.c.b16 %v1091, %v1090
  %v1103 = vpack.c.b16 %v1093, %v1092
  %v1104 = vpack.c.b16 %v1095, %v1094
  %v1105 = vpack.c.b16 %v1097, %v1096
  %1114 = vmatpush.bf16.msra.mxu0 %v1105
  %1115 = vmatpush.bf16.msra.mxu0 %v1104
  %1116 = vmatpush.bf16.msra.mxu0 %v1103
  %1117 = vmatpush.bf16.msra.mxu0 %v1102
  %1118 = vmatpush.bf16.msra.mxu0 %v1101
  %1119 = vmatpush.bf16.msra.mxu0 %v1100
  %1120 = vmatpush.bf16.msra.mxu0 %v1099
  %1121 = vmatpush.bf16.msra.mxu0 %v1098
  %1122 = vmatmul.bf16.gmra.mxu0 %v1048
  %v1123 = vpop.f32.mrf.mxu0
  %v1124 = vadd.f32 0.0, %v1123
  %v1125 = vpop.f32.mrf.mxu0
  %1126 = vdwg.mxu0
  %v1127 = vpack.c.bf16 %v1124, %v1124
  %s1128 = scalar_lea.vmem %s1, 320
  %v1129 = vld [vmem:[%s1128] sm:$0xf]
  %v1130 = vld [vmem:[%s1128 + $0x4] sm:$0xf]
  %v1131 = vld [vmem:[%s1128 + $0x8] sm:$0xf]
  %v1132 = vld [vmem:[%s1128 + $0xc] sm:$0xf]
  %v1133 = vld [vmem:[%s1128 + $0x10] sm:$0xf]
  %v1134 = vld [vmem:[%s1128 + $0x14] sm:$0xf]
  %v1135 = vld [vmem:[%s1128 + $0x18] sm:$0xf]
  %v1136 = vld [vmem:[%s1128 + $0x1c] sm:$0xf]
  %v1137 = vld [vmem:[%s1128 + $0x20] sm:$0xf]
  %v1138 = vld [vmem:[%s1128 + $0x24] sm:$0xf]
  %v1139 = vld [vmem:[%s1128 + $0x28] sm:$0xf]
  %v1140 = vld [vmem:[%s1128 + $0x2c] sm:$0xf]
  %v1141 = vld [vmem:[%s1128 + $0x30] sm:$0xf]
  %v1142 = vld [vmem:[%s1128 + $0x34] sm:$0xf]
  %v1143 = vld [vmem:[%s1128 + $0x38] sm:$0xf]
  %v1144 = vld [vmem:[%s1128 + $0x3c] sm:$0xf]
  %v1161 = vunpack.c.l.b16 %v1129
  %v1162 = vunpack.c.l.b16 %v1130
  %v1163 = vunpack.c.l.b16 %v1131
  %v1164 = vunpack.c.l.b16 %v1132
  %v1165 = vunpack.c.l.b16 %v1133
  %v1166 = vunpack.c.l.b16 %v1134
  %v1167 = vunpack.c.l.b16 %v1135
  %v1168 = vunpack.c.l.b16 %v1136
  %v1169 = vunpack.c.l.b16 %v1137
  %v1170 = vunpack.c.l.b16 %v1138
  %v1171 = vunpack.c.l.b16 %v1139
  %v1172 = vunpack.c.l.b16 %v1140
  %v1173 = vunpack.c.l.b16 %v1141
  %v1174 = vunpack.c.l.b16 %v1142
  %v1175 = vunpack.c.l.b16 %v1143
  %v1176 = vunpack.c.l.b16 %v1144
  %v1177 = vpack.c.b16 %v1162, %v1161
  %v1178 = vpack.c.b16 %v1164, %v1163
  %v1179 = vpack.c.b16 %v1166, %v1165
  %v1180 = vpack.c.b16 %v1168, %v1167
  %v1181 = vpack.c.b16 %v1170, %v1169
  %v1182 = vpack.c.b16 %v1172, %v1171
  %v1183 = vpack.c.b16 %v1174, %v1173
  %v1184 = vpack.c.b16 %v1176, %v1175
  %1193 = vmatpush.bf16.msra.mxu0 %v1184
  %1194 = vmatpush.bf16.msra.mxu0 %v1183
  %1195 = vmatpush.bf16.msra.mxu0 %v1182
  %1196 = vmatpush.bf16.msra.mxu0 %v1181
  %1197 = vmatpush.bf16.msra.mxu0 %v1180
  %1198 = vmatpush.bf16.msra.mxu0 %v1179
  %1199 = vmatpush.bf16.msra.mxu0 %v1178
  %1200 = vmatpush.bf16.msra.mxu0 %v1177
  %1201 = vmatmul.bf16.gmra.mxu0 %v1048
  %v1202 = vpop.f32.mrf.mxu0
  %v1203 = vadd.f32 0.0, %v1202
  %v1204 = vpop.f32.mrf.mxu0
  %1205 = vdwg.mxu0
  %v1206 = vpack.c.bf16 %v1203, %v1203
  %s1207 = scalar_lea.vmem %s1, 384
  %v1208 = vld [vmem:[%s1207] sm:$0xf]
  %v1209 = vld [vmem:[%s1207 + $0x4] sm:$0xf]
  %v1210 = vld [vmem:[%s1207 + $0x8] sm:$0xf]
  %v1211 = vld [vmem:[%s1207 + $0xc] sm:$0xf]
  %v1212 = vld [vmem:[%s1207 + $0x10] sm:$0xf]
  %v1213 = vld [vmem:[%s1207 + $0x14] sm:$0xf]
  %v1214 = vld [vmem:[%s1207 + $0x18] sm:$0xf]
  %v1215 = vld [vmem:[%s1207 + $0x1c] sm:$0xf]
  %v1216 = vld [vmem:[%s1207 + $0x20] sm:$0xf]
  %v1217 = vld [vmem:[%s1207 + $0x24] sm:$0xf]
  %v1218 = vld [vmem:[%s1207 + $0x28] sm:$0xf]
  %v1219 = vld [vmem:[%s1207 + $0x2c] sm:$0xf]
  %v1220 = vld [vmem:[%s1207 + $0x30] sm:$0xf]
  %v1221 = vld [vmem:[%s1207 + $0x34] sm:$0xf]
  %v1222 = vld [vmem:[%s1207 + $0x38] sm:$0xf]
  %v1223 = vld [vmem:[%s1207 + $0x3c] sm:$0xf]
  %v1240 = vunpack.c.l.b16 %v1208
  %v1241 = vunpack.c.l.b16 %v1209
  %v1242 = vunpack.c.l.b16 %v1210
  %v1243 = vunpack.c.l.b16 %v1211
  %v1244 = vunpack.c.l.b16 %v1212
  %v1245 = vunpack.c.l.b16 %v1213
  %v1246 = vunpack.c.l.b16 %v1214
  %v1247 = vunpack.c.l.b16 %v1215
  %v1248 = vunpack.c.l.b16 %v1216
  %v1249 = vunpack.c.l.b16 %v1217
  %v1250 = vunpack.c.l.b16 %v1218
  %v1251 = vunpack.c.l.b16 %v1219
  %v1252 = vunpack.c.l.b16 %v1220
  %v1253 = vunpack.c.l.b16 %v1221
  %v1254 = vunpack.c.l.b16 %v1222
  %v1255 = vunpack.c.l.b16 %v1223
  %v1256 = vpack.c.b16 %v1241, %v1240
  %v1257 = vpack.c.b16 %v1243, %v1242
  %v1258 = vpack.c.b16 %v1245, %v1244
  %v1259 = vpack.c.b16 %v1247, %v1246
  %v1260 = vpack.c.b16 %v1249, %v1248
  %v1261 = vpack.c.b16 %v1251, %v1250
  %v1262 = vpack.c.b16 %v1253, %v1252
  %v1263 = vpack.c.b16 %v1255, %v1254
  %1272 = vmatpush.bf16.msra.mxu0 %v1263
  %1273 = vmatpush.bf16.msra.mxu0 %v1262
  %1274 = vmatpush.bf16.msra.mxu0 %v1261
  %1275 = vmatpush.bf16.msra.mxu0 %v1260
  %1276 = vmatpush.bf16.msra.mxu0 %v1259
  %1277 = vmatpush.bf16.msra.mxu0 %v1258
  %1278 = vmatpush.bf16.msra.mxu0 %v1257
  %1279 = vmatpush.bf16.msra.mxu0 %v1256
  %1280 = vmatmul.bf16.gmra.mxu0 %v1048
  %v1281 = vpop.f32.mrf.mxu0
  %v1282 = vadd.f32 0.0, %v1281
  %v1283 = vpop.f32.mrf.mxu0
  %1284 = vdwg.mxu0
  %v1285 = vand.u32 2147483647, %v1282
  %v1286 = vpack.c.bf16 %v1285, %v1285
  %s1287 = scalar_lea.vmem %s1, 448
  %v1288 = vld [vmem:[%s1287] sm:$0xf]
  %v1289 = vld [vmem:[%s1287 + $0x4] sm:$0xf]
  %v1290 = vld [vmem:[%s1287 + $0x8] sm:$0xf]
  %v1291 = vld [vmem:[%s1287 + $0xc] sm:$0xf]
  %v1292 = vld [vmem:[%s1287 + $0x10] sm:$0xf]
  %v1293 = vld [vmem:[%s1287 + $0x14] sm:$0xf]
  %v1294 = vld [vmem:[%s1287 + $0x18] sm:$0xf]
  %v1295 = vld [vmem:[%s1287 + $0x1c] sm:$0xf]
  %v1296 = vld [vmem:[%s1287 + $0x20] sm:$0xf]
  %v1297 = vld [vmem:[%s1287 + $0x24] sm:$0xf]
  %v1298 = vld [vmem:[%s1287 + $0x28] sm:$0xf]
  %v1299 = vld [vmem:[%s1287 + $0x2c] sm:$0xf]
  %v1300 = vld [vmem:[%s1287 + $0x30] sm:$0xf]
  %v1301 = vld [vmem:[%s1287 + $0x34] sm:$0xf]
  %v1302 = vld [vmem:[%s1287 + $0x38] sm:$0xf]
  %v1303 = vld [vmem:[%s1287 + $0x3c] sm:$0xf]
  %v1320 = vunpack.c.l.b16 %v1288
  %v1321 = vunpack.c.l.b16 %v1289
  %v1322 = vunpack.c.l.b16 %v1290
  %v1323 = vunpack.c.l.b16 %v1291
  %v1324 = vunpack.c.l.b16 %v1292
  %v1325 = vunpack.c.l.b16 %v1293
  %v1326 = vunpack.c.l.b16 %v1294
  %v1327 = vunpack.c.l.b16 %v1295
  %v1328 = vunpack.c.l.b16 %v1296
  %v1329 = vunpack.c.l.b16 %v1297
  %v1330 = vunpack.c.l.b16 %v1298
  %v1331 = vunpack.c.l.b16 %v1299
  %v1332 = vunpack.c.l.b16 %v1300
  %v1333 = vunpack.c.l.b16 %v1301
  %v1334 = vunpack.c.l.b16 %v1302
  %v1335 = vunpack.c.l.b16 %v1303
  %v1336 = vpack.c.b16 %v1321, %v1320
  %v1337 = vpack.c.b16 %v1323, %v1322
  %v1338 = vpack.c.b16 %v1325, %v1324
  %v1339 = vpack.c.b16 %v1327, %v1326
  %v1340 = vpack.c.b16 %v1329, %v1328
  %v1341 = vpack.c.b16 %v1331, %v1330
  %v1342 = vpack.c.b16 %v1333, %v1332
  %v1343 = vpack.c.b16 %v1335, %v1334
  %1352 = vmatpush.bf16.msra.mxu0 %v1343
  %1353 = vmatpush.bf16.msra.mxu0 %v1342
  %1354 = vmatpush.bf16.msra.mxu0 %v1341
  %1355 = vmatpush.bf16.msra.mxu0 %v1340
  %1356 = vmatpush.bf16.msra.mxu0 %v1339
  %1357 = vmatpush.bf16.msra.mxu0 %v1338
  %1358 = vmatpush.bf16.msra.mxu0 %v1337
  %1359 = vmatpush.bf16.msra.mxu0 %v1336
  %1360 = vmatmul.bf16.gmra.mxu0 %v1048
  %v1361 = vpop.f32.mrf.mxu0
  %v1362 = vadd.f32 0.0, %v1361
  %v1363 = vpop.f32.mrf.mxu0
  %1364 = vdwg.mxu0
  %v1365 = vand.u32 2147483647, %v1362
  %v1366 = vpack.c.bf16 %v1365, %v1365
  %v1368 = vsel %vm431, %v1127, 0
  %1370 = vmatpush.bf16.msra.mxu0 0
  %1371 = vmatpush.bf16.msra.mxu0 0
  %1372 = vmatpush.bf16.msra.mxu0 0
  %1373 = vmatpush.bf16.msra.mxu0 0
  %1374 = vmatpush.bf16.msra.mxu0 0
  %1375 = vmatpush.bf16.msra.mxu0 0
  %1376 = vmatpush.bf16.msra.mxu0 0
  %1377 = vmatpush.bf16.msra.mxu0 %v1368
  %1378 = vmatmul.bf16.gmra.mxu0 %v429
  %v1379 = vpop.f32.mrf.mxu0
  %v1380 = vadd.f32 0.0, %v1379
  %v1381 = vpop.f32.mrf.mxu0
  %v1382 = vadd.f32 0.0, %v1381
  %1383 = vdwg.mxu0
  %v1385 = vsel %vm431, %v1048, 0
  %1387 = vmatpush.bf16.msra.mxu0 0
  %1388 = vmatpush.bf16.msra.mxu0 0
  %1389 = vmatpush.bf16.msra.mxu0 0
  %1390 = vmatpush.bf16.msra.mxu0 0
  %1391 = vmatpush.bf16.msra.mxu0 0
  %1392 = vmatpush.bf16.msra.mxu0 0
  %1393 = vmatpush.bf16.msra.mxu0 0
  %1394 = vmatpush.bf16.msra.mxu0 %v1385
  %1395 = vmatmul.bf16.gmra.mxu0 %v455
  %v1396 = vpop.f32.mrf.mxu0
  %v1397 = vadd.f32 %v1380, %v1396
  %v1398 = vpop.f32.mrf.mxu0
  %v1399 = vadd.f32 %v1382, %v1398
  %1400 = vdwg.mxu0
  %v1402 = vsel %vm431, %v1206, 0
  %1404 = vmatpush.bf16.msra.mxu0 0
  %1405 = vmatpush.bf16.msra.mxu0 0
  %1406 = vmatpush.bf16.msra.mxu0 0
  %1407 = vmatpush.bf16.msra.mxu0 0
  %1408 = vmatpush.bf16.msra.mxu0 0
  %1409 = vmatpush.bf16.msra.mxu0 0
  %1410 = vmatpush.bf16.msra.mxu0 0
  %1411 = vmatpush.bf16.msra.mxu0 %v1402
  %1412 = vmatmul.bf16.gmra.mxu0 %v480
  %v1413 = vpop.f32.mrf.mxu0
  %v1414 = vadd.f32 0.0, %v1413
  %v1415 = vpop.f32.mrf.mxu0
  %v1416 = vadd.f32 0.0, %v1415
  %1417 = vdwg.mxu0
  %v1418 = vadd.f32 %v1397, %v1414
  %v1419 = vadd.f32 %v1399, %v1416
  %v1421 = vsel %vm431, %v1286, 0
  %1423 = vmatpush.bf16.msra.mxu0 0
  %1424 = vmatpush.bf16.msra.mxu0 0
  %1425 = vmatpush.bf16.msra.mxu0 0
  %1426 = vmatpush.bf16.msra.mxu0 0
  %1427 = vmatpush.bf16.msra.mxu0 0
  %1428 = vmatpush.bf16.msra.mxu0 0
  %1429 = vmatpush.bf16.msra.mxu0 0
  %1430 = vmatpush.bf16.msra.mxu0 %v1421
  %1431 = vmatmul.bf16.gmra.mxu0 %v507
  %v1432 = vpop.f32.mrf.mxu0
  %v1433 = vadd.f32 0.0, %v1432
  %v1434 = vpop.f32.mrf.mxu0
  %v1435 = vadd.f32 0.0, %v1434
  %1436 = vdwg.mxu0
  %v1437 = vadd.f32 %v1418, %v1433
  %v1438 = vadd.f32 %v1419, %v1435
  %v1440 = vsel %vm431, %v1366, 0
  %1442 = vmatpush.bf16.msra.mxu0 0
  %1443 = vmatpush.bf16.msra.mxu0 0
  %1444 = vmatpush.bf16.msra.mxu0 0
  %1445 = vmatpush.bf16.msra.mxu0 0
  %1446 = vmatpush.bf16.msra.mxu0 0
  %1447 = vmatpush.bf16.msra.mxu0 0
  %1448 = vmatpush.bf16.msra.mxu0 0
  %1449 = vmatpush.bf16.msra.mxu0 %v1440
  %1450 = vmatmul.bf16.gmra.mxu0 %v534
  %v1451 = vpop.f32.mrf.mxu0
  %v1452 = vadd.f32 0.0, %v1451
  %v1453 = vpop.f32.mrf.mxu0
  %v1454 = vadd.f32 0.0, %v1453
  %1455 = vdwg.mxu0
  %v1456 = vadd.f32 %v1437, %v1452
  %v1457 = vadd.f32 %v1438, %v1454
  %v1458 = vmul.f32 %v1456, %v36
  %v1459 = vmul.f32 %v1457, %v36
  %1460 = vadd.xlane.f32.xlu0 %v1458
  %v1461 = vpop.xlane.xlu0 %1460
  %1462 = vadd.xlane.f32.xlu0 %v1459
  %v1463 = vpop.xlane.xlu0 %1462
  %v1464 = vmul.f32 %v1461, 0.020833334
  %v1465 = vmul.f32 %v1463, 0.020833334
  %v1466 = vsub.f32 %v1456, %v1464
  %v1467 = vsub.f32 %v1457, %v1465
  %v1468 = vmul.f32 %v1466, %v36
  %v1469 = vmul.f32 %v1467, %v36
  %v1470 = vmul.f32 %v1468, %v1468
  %v1471 = vmul.f32 %v1469, %v1469
  %1472 = vadd.xlane.f32.xlu0 %v1470
  %v1473 = vpop.xlane.xlu0 %1472
  %1474 = vadd.xlane.f32.xlu0 %v1471
  %v1475 = vpop.xlane.xlu0 %1474
  %v1476 = vmul.f32 %v1473, 0.020833334
  %v1477 = vmul.f32 %v1475, 0.020833334
  %v1478 = vadd.f32 %v1476, 1e-05
  %v1479 = vadd.f32 %v1477, 1e-05
  %v1480 = vrsqrt.pop %v1478
  %v1481 = vmul.f32 %v1480, %v1478
  %v1482 = vmul.f32 %v1481, %v1480
  %v1483 = vmul.f32 0.5, %v1482
  %v1484 = vsub.f32 1.5, %v1483
  %v1485 = vmul.f32 %v1480, %v1484
  %vm1486 = vweird.f32 %v1478
  %vm1487 = vweird.f32 %v1480
  %vm1488 = vmor %vm1486, %vm1487
  %v1489 = vsel %vm1488, %v1480, %v1485
  %v1490 = vrsqrt.pop %v1479
  %v1491 = vmul.f32 %v1490, %v1479
  %v1492 = vmul.f32 %v1491, %v1490
  %v1493 = vmul.f32 0.5, %v1492
  %v1494 = vsub.f32 1.5, %v1493
  %v1495 = vmul.f32 %v1490, %v1494
  %vm1496 = vweird.f32 %v1479
  %vm1497 = vweird.f32 %v1490
  %vm1498 = vmor %vm1496, %vm1497
  %v1499 = vsel %vm1498, %v1490, %v1495
  %v1500 = vmul.f32 %v1466, %v1489
  %v1501 = vmul.f32 %v1467, %v1499
  %v1502 = vmax.f32 %v1500, 0.0
  %v1503 = vmax.f32 %v1501, 0.0
  %v1504 = vpack.c.bf16 %v1503, %v1502
  %1505 = vmatpush.bf16.msra.mxu0 %v1105
  %1506 = vmatpush.bf16.msra.mxu0 %v1104
  %1507 = vmatpush.bf16.msra.mxu0 %v1103
  %1508 = vmatpush.bf16.msra.mxu0 %v1102
  %1509 = vmatpush.bf16.msra.mxu0 %v1101
  %1510 = vmatpush.bf16.msra.mxu0 %v1100
  %1511 = vmatpush.bf16.msra.mxu0 %v1099
  %1512 = vmatpush.bf16.msra.mxu0 %v1098
  %1513 = vmatmul.bf16.gmra.mxu0 %v1504
  %v1514 = vpop.f32.mrf.mxu0
  %v1515 = vadd.f32 0.0, %v1514
  %v1516 = vpop.f32.mrf.mxu0
  %v1517 = vadd.f32 0.0, %v1516
  %1518 = vdwg.mxu0
  %v1519 = vpack.c.bf16 %v1517, %v1515
  %1520 = vmatpush.bf16.msra.mxu0 %v1184
  %1521 = vmatpush.bf16.msra.mxu0 %v1183
  %1522 = vmatpush.bf16.msra.mxu0 %v1182
  %1523 = vmatpush.bf16.msra.mxu0 %v1181
  %1524 = vmatpush.bf16.msra.mxu0 %v1180
  %1525 = vmatpush.bf16.msra.mxu0 %v1179
  %1526 = vmatpush.bf16.msra.mxu0 %v1178
  %1527 = vmatpush.bf16.msra.mxu0 %v1177
  %1528 = vmatmul.bf16.gmra.mxu0 %v1504
  %v1529 = vpop.f32.mrf.mxu0
  %v1530 = vadd.f32 0.0, %v1529
  %v1531 = vpop.f32.mrf.mxu0
  %v1532 = vadd.f32 0.0, %v1531
  %1533 = vdwg.mxu0
  %v1534 = vpack.c.bf16 %v1532, %v1530
  %1535 = vmatpush.bf16.msra.mxu0 %v1263
  %1536 = vmatpush.bf16.msra.mxu0 %v1262
  %1537 = vmatpush.bf16.msra.mxu0 %v1261
  %1538 = vmatpush.bf16.msra.mxu0 %v1260
  %1539 = vmatpush.bf16.msra.mxu0 %v1259
  %1540 = vmatpush.bf16.msra.mxu0 %v1258
  %1541 = vmatpush.bf16.msra.mxu0 %v1257
  %1542 = vmatpush.bf16.msra.mxu0 %v1256
  %1543 = vmatmul.bf16.gmra.mxu0 %v1504
  %v1544 = vpop.f32.mrf.mxu0
  %v1545 = vadd.f32 0.0, %v1544
  %v1546 = vpop.f32.mrf.mxu0
  %v1547 = vadd.f32 0.0, %v1546
  %1548 = vdwg.mxu0
  %v1549 = vand.u32 2147483647, %v1545
  %v1550 = vand.u32 2147483647, %v1547
  %v1551 = vpack.c.bf16 %v1550, %v1549
  %1552 = vmatpush.bf16.msra.mxu0 %v1343
  %1553 = vmatpush.bf16.msra.mxu0 %v1342
  %1554 = vmatpush.bf16.msra.mxu0 %v1341
  %1555 = vmatpush.bf16.msra.mxu0 %v1340
  %1556 = vmatpush.bf16.msra.mxu0 %v1339
  %1557 = vmatpush.bf16.msra.mxu0 %v1338
  %1558 = vmatpush.bf16.msra.mxu0 %v1337
  %1559 = vmatpush.bf16.msra.mxu0 %v1336
  %1560 = vmatmul.bf16.gmra.mxu0 %v1504
  %v1561 = vpop.f32.mrf.mxu0
  %v1562 = vadd.f32 0.0, %v1561
  %v1563 = vpop.f32.mrf.mxu0
  %v1564 = vadd.f32 0.0, %v1563
  %1565 = vdwg.mxu0
  %v1566 = vand.u32 2147483647, %v1562
  %v1567 = vand.u32 2147483647, %v1564
  %v1568 = vpack.c.bf16 %v1567, %v1566
  %1569 = vmatpush.bf16.msra.mxu0 0
  %1570 = vmatpush.bf16.msra.mxu0 0
  %1571 = vmatpush.bf16.msra.mxu0 0
  %1572 = vmatpush.bf16.msra.mxu0 0
  %1573 = vmatpush.bf16.msra.mxu0 0
  %1574 = vmatpush.bf16.msra.mxu0 0
  %1575 = vmatpush.bf16.msra.mxu0 0
  %1576 = vmatpush.bf16.msra.mxu0 %v1519
  %1577 = vmatmul.bf16.gmra.mxu0 %v673
  %v1578 = vpop.f32.mrf.mxu0
  %v1579 = vadd.f32 0.0, %v1578
  %v1580 = vpop.f32.mrf.mxu0
  %v1581 = vadd.f32 0.0, %v1580
  %1582 = vdwg.mxu0
  %1583 = vmatpush.bf16.msra.mxu0 0
  %1584 = vmatpush.bf16.msra.mxu0 0
  %1585 = vmatpush.bf16.msra.mxu0 0
  %1586 = vmatpush.bf16.msra.mxu0 0
  %1587 = vmatpush.bf16.msra.mxu0 0
  %1588 = vmatpush.bf16.msra.mxu0 0
  %1589 = vmatpush.bf16.msra.mxu0 0
  %1590 = vmatpush.bf16.msra.mxu0 %v1504
  %1591 = vmatmul.bf16.gmra.mxu0 %v695
  %v1592 = vpop.f32.mrf.mxu0
  %v1593 = vadd.f32 %v1579, %v1592
  %v1594 = vpop.f32.mrf.mxu0
  %v1595 = vadd.f32 %v1581, %v1594
  %1596 = vdwg.mxu0
  %1597 = vmatpush.bf16.msra.mxu0 0
  %1598 = vmatpush.bf16.msra.mxu0 0
  %1599 = vmatpush.bf16.msra.mxu0 0
  %1600 = vmatpush.bf16.msra.mxu0 0
  %1601 = vmatpush.bf16.msra.mxu0 0
  %1602 = vmatpush.bf16.msra.mxu0 0
  %1603 = vmatpush.bf16.msra.mxu0 0
  %1604 = vmatpush.bf16.msra.mxu0 %v1534
  %1605 = vmatmul.bf16.gmra.mxu0 %v717
  %v1606 = vpop.f32.mrf.mxu0
  %v1607 = vadd.f32 0.0, %v1606
  %v1608 = vpop.f32.mrf.mxu0
  %v1609 = vadd.f32 0.0, %v1608
  %1610 = vdwg.mxu0
  %v1611 = vadd.f32 %v1593, %v1607
  %v1612 = vadd.f32 %v1595, %v1609
  %1613 = vmatpush.bf16.msra.mxu0 0
  %1614 = vmatpush.bf16.msra.mxu0 0
  %1615 = vmatpush.bf16.msra.mxu0 0
  %1616 = vmatpush.bf16.msra.mxu0 0
  %1617 = vmatpush.bf16.msra.mxu0 0
  %1618 = vmatpush.bf16.msra.mxu0 0
  %1619 = vmatpush.bf16.msra.mxu0 0
  %1620 = vmatpush.bf16.msra.mxu0 %v1551
  %1621 = vmatmul.bf16.gmra.mxu0 %v741
  %v1622 = vpop.f32.mrf.mxu0
  %v1623 = vadd.f32 0.0, %v1622
  %v1624 = vpop.f32.mrf.mxu0
  %v1625 = vadd.f32 0.0, %v1624
  %1626 = vdwg.mxu0
  %v1627 = vadd.f32 %v1611, %v1623
  %v1628 = vadd.f32 %v1612, %v1625
  %1629 = vmatpush.bf16.msra.mxu0 0
  %1630 = vmatpush.bf16.msra.mxu0 0
  %1631 = vmatpush.bf16.msra.mxu0 0
  %1632 = vmatpush.bf16.msra.mxu0 0
  %1633 = vmatpush.bf16.msra.mxu0 0
  %1634 = vmatpush.bf16.msra.mxu0 0
  %1635 = vmatpush.bf16.msra.mxu0 0
  %1636 = vmatpush.bf16.msra.mxu0 %v1568
  %1637 = vmatmul.bf16.gmra.mxu0 %v765
  %v1638 = vpop.f32.mrf.mxu0
  %v1639 = vadd.f32 0.0, %v1638
  %v1640 = vpop.f32.mrf.mxu0
  %v1641 = vadd.f32 0.0, %v1640
  %1642 = vdwg.mxu0
  %v1643 = vadd.f32 %v1627, %v1639
  %v1644 = vadd.f32 %v1628, %v1641
  %v1645 = vmul.f32 %v1643, %v36
  %v1646 = vmul.f32 %v1644, %v36
  %1647 = vadd.xlane.f32.xlu0 %v1645
  %v1648 = vpop.xlane.xlu0 %1647
  %1649 = vadd.xlane.f32.xlu0 %v1646
  %v1650 = vpop.xlane.xlu0 %1649
  %v1651 = vmul.f32 %v1648, 0.020833334
  %v1652 = vmul.f32 %v1650, 0.020833334
  %v1653 = vsub.f32 %v1643, %v1651
  %v1654 = vsub.f32 %v1644, %v1652
  %v1655 = vmul.f32 %v1653, %v36
  %v1656 = vmul.f32 %v1654, %v36
  %v1657 = vmul.f32 %v1655, %v1655
  %v1658 = vmul.f32 %v1656, %v1656
  %1659 = vadd.xlane.f32.xlu0 %v1657
  %v1660 = vpop.xlane.xlu0 %1659
  %1661 = vadd.xlane.f32.xlu0 %v1658
  %v1662 = vpop.xlane.xlu0 %1661
  %v1663 = vmul.f32 %v1660, 0.020833334
  %v1664 = vmul.f32 %v1662, 0.020833334
  %v1665 = vadd.f32 %v1663, 1e-05
  %v1666 = vadd.f32 %v1664, 1e-05
  %v1667 = vrsqrt.pop %v1665
  %v1668 = vmul.f32 %v1667, %v1665
  %v1669 = vmul.f32 %v1668, %v1667
  %v1670 = vmul.f32 0.5, %v1669
  %v1671 = vsub.f32 1.5, %v1670
  %v1672 = vmul.f32 %v1667, %v1671
  %vm1673 = vweird.f32 %v1665
  %vm1674 = vweird.f32 %v1667
  %vm1675 = vmor %vm1673, %vm1674
  %v1676 = vsel %vm1675, %v1667, %v1672
  %v1677 = vrsqrt.pop %v1666
  %v1678 = vmul.f32 %v1677, %v1666
  %v1679 = vmul.f32 %v1678, %v1677
  %v1680 = vmul.f32 0.5, %v1679
  %v1681 = vsub.f32 1.5, %v1680
  %v1682 = vmul.f32 %v1677, %v1681
  %vm1683 = vweird.f32 %v1666
  %vm1684 = vweird.f32 %v1677
  %vm1685 = vmor %vm1683, %vm1684
  %v1686 = vsel %vm1685, %v1677, %v1682
  %v1687 = vmul.f32 %v1653, %v1676
  %v1688 = vmul.f32 %v1654, %v1686
  %1689 = vmatpush.bf16.msra.mxu0 0
  %1690 = vmatpush.bf16.msra.mxu0 0
  %1691 = vmatpush.bf16.msra.mxu0 0
  %1692 = vmatpush.bf16.msra.mxu0 0
  %1693 = vmatpush.bf16.msra.mxu0 0
  %1694 = vmatpush.bf16.msra.mxu0 0
  %1695 = vmatpush.bf16.msra.mxu0 0
  %1696 = vmatpush.bf16.msra.mxu0 %v1368
  %1697 = vmatmul.bf16.gmra.mxu0 %v833
  %v1698 = vpop.f32.mrf.mxu0
  %v1699 = vadd.f32 0.0, %v1698
  %v1700 = vpop.f32.mrf.mxu0
  %v1701 = vadd.f32 0.0, %v1700
  %1702 = vdwg.mxu0
  %1703 = vmatpush.bf16.msra.mxu0 0
  %1704 = vmatpush.bf16.msra.mxu0 0
  %1705 = vmatpush.bf16.msra.mxu0 0
  %1706 = vmatpush.bf16.msra.mxu0 0
  %1707 = vmatpush.bf16.msra.mxu0 0
  %1708 = vmatpush.bf16.msra.mxu0 0
  %1709 = vmatpush.bf16.msra.mxu0 0
  %1710 = vmatpush.bf16.msra.mxu0 %v1385
  %1711 = vmatmul.bf16.gmra.mxu0 %v855
  %v1712 = vpop.f32.mrf.mxu0
  %v1713 = vadd.f32 %v1699, %v1712
  %v1714 = vpop.f32.mrf.mxu0
  %v1715 = vadd.f32 %v1701, %v1714
  %1716 = vdwg.mxu0
  %1717 = vmatpush.bf16.msra.mxu0 0
  %1718 = vmatpush.bf16.msra.mxu0 0
  %1719 = vmatpush.bf16.msra.mxu0 0
  %1720 = vmatpush.bf16.msra.mxu0 0
  %1721 = vmatpush.bf16.msra.mxu0 0
  %1722 = vmatpush.bf16.msra.mxu0 0
  %1723 = vmatpush.bf16.msra.mxu0 0
  %1724 = vmatpush.bf16.msra.mxu0 %v1402
  %1725 = vmatmul.bf16.gmra.mxu0 %v877
  %v1726 = vpop.f32.mrf.mxu0
  %v1727 = vadd.f32 0.0, %v1726
  %v1728 = vpop.f32.mrf.mxu0
  %v1729 = vadd.f32 0.0, %v1728
  %1730 = vdwg.mxu0
  %v1731 = vadd.f32 %v1713, %v1727
  %v1732 = vadd.f32 %v1715, %v1729
  %1733 = vmatpush.bf16.msra.mxu0 0
  %1734 = vmatpush.bf16.msra.mxu0 0
  %1735 = vmatpush.bf16.msra.mxu0 0
  %1736 = vmatpush.bf16.msra.mxu0 0
  %1737 = vmatpush.bf16.msra.mxu0 0
  %1738 = vmatpush.bf16.msra.mxu0 0
  %1739 = vmatpush.bf16.msra.mxu0 0
  %1740 = vmatpush.bf16.msra.mxu0 %v1421
  %1741 = vmatmul.bf16.gmra.mxu0 %v901
  %v1742 = vpop.f32.mrf.mxu0
  %v1743 = vadd.f32 0.0, %v1742
  %v1744 = vpop.f32.mrf.mxu0
  %v1745 = vadd.f32 0.0, %v1744
  %1746 = vdwg.mxu0
  %v1747 = vadd.f32 %v1731, %v1743
  %v1748 = vadd.f32 %v1732, %v1745
  %1749 = vmatpush.bf16.msra.mxu0 0
  %1750 = vmatpush.bf16.msra.mxu0 0
  %1751 = vmatpush.bf16.msra.mxu0 0
  %1752 = vmatpush.bf16.msra.mxu0 0
  %1753 = vmatpush.bf16.msra.mxu0 0
  %1754 = vmatpush.bf16.msra.mxu0 0
  %1755 = vmatpush.bf16.msra.mxu0 0
  %1756 = vmatpush.bf16.msra.mxu0 %v1440
  %1757 = vmatmul.bf16.gmra.mxu0 %v925
  %v1758 = vpop.f32.mrf.mxu0
  %v1759 = vadd.f32 0.0, %v1758
  %v1760 = vpop.f32.mrf.mxu0
  %v1761 = vadd.f32 0.0, %v1760
  %1762 = vdwg.mxu0
  %v1763 = vadd.f32 %v1747, %v1759
  %v1764 = vadd.f32 %v1748, %v1761
  %v1765 = vadd.f32 %v1763, %v946
  %v1766 = vadd.f32 %v1764, %v951
  %v1767 = vadd.f32 %v1687, %v1765
  %v1768 = vadd.f32 %v1688, %v1766
  %v1769 = vmax.f32 %v1767, 0.0
  %v1770 = vmax.f32 %v1768, 0.0
  %v1771 = vmul.f32 %v1769, %v36
  %v1772 = vmul.f32 %v1770, %v36
  %v1773 = vadd.f32 %v1771, %v1772
  %1774 = vadd.xlane.f32.xlu0 %v1773
  %v1775 = vpop.xlane.xlu0 %1774
  %v1776 = vrot.slane %v1775, 4
  %v1777 = vadd.f32 %v1775, %v1776
  %v1778 = vrot.slane %v1777, 2
  %v1779 = vadd.f32 %v1777, %v1778
  %v1780 = vrot.slane %v1779, 1
  %v1781 = vadd.f32 %v1779, %v1780
  %s1782 = vtos %v1781
  %s1783 = smul.f32 %s1782, 0.0013020834
  %v1784 = vstv %s1783
  %v1785 = vsub.f32 %v1769, %v1784
  %v1786 = vsub.f32 %v1770, %v1784
  %v1787 = vmul.f32 %v1785, %v36
  %v1788 = vmul.f32 %v1786, %v36
  %v1789 = vmul.f32 %v1787, %v1787
  %v1790 = vmul.f32 %v1788, %v1788
  %v1791 = vadd.f32 %v1789, %v1790
  %1792 = vadd.xlane.f32.xlu0 %v1791
  %v1793 = vpop.xlane.xlu0 %1792
  %v1794 = vrot.slane %v1793, 4
  %v1795 = vadd.f32 %v1793, %v1794
  %v1796 = vrot.slane %v1795, 2
  %v1797 = vadd.f32 %v1795, %v1796
  %v1798 = vrot.slane %v1797, 1
  %v1799 = vadd.f32 %v1797, %v1798
  %s1800 = vtos %v1799
  %s1801 = smul.f32 %s1800, 0.0013020834
  %s1802 = sadd.f32 %s1801, 1e-05
  %v1803 = vstv %s1802
  %v1804 = vrsqrt.pop %v1803
  %v1805 = vmul.f32 %v1804, %v1803
  %v1806 = vmul.f32 %v1805, %v1804
  %v1807 = vmul.f32 0.5, %v1806
  %v1808 = vsub.f32 1.5, %v1807
  %v1809 = vmul.f32 %v1804, %v1808
  %vm1810 = vweird.f32 %v1803
  %vm1811 = vweird.f32 %v1804
  %vm1812 = vmor %vm1810, %vm1811
  %v1813 = vsel %vm1812, %v1804, %v1809
  %s1814 = vtos %v1813
  %v1815 = vstv %s1814
  %v1816 = vmul.f32 %v1785, %v1815
  %v1817 = vmul.f32 %v1786, %v1815
  %v1818 = vmul.f32 %v1816, %v1009
  %v1819 = vmul.f32 %v1817, %v1014
  %v1820 = vadd.f32 %v1818, %v1021
  %v1821 = vadd.f32 %v1819, %v1026
  %v1822 = vmax.f32 %v1820, 0.0
  %v1823 = vmax.f32 %v1821, 0.0
  %s1824 = scalar_lea.vmem %s8, 16
  %1825 = vst [vmem:[%s1824] sm:$0xff] %v1822
  %1826 = vst [vmem:[%s1824 + $0x8] sm:$0xff] %v1823
  %v1827 = vmul.f32 %v1822, %v1822
  %v1828 = vmul.f32 %v1823, %v1823
  %v1829 = vadd.f32 %v1827, %v1828
  %v1830 = vrot.slane %v1829, 4
  %v1831 = vadd.f32 %v1829, %v1830
  %v1832 = vrot.slane %v1831, 2
  %v1833 = vadd.f32 %v1831, %v1832
  %v1834 = vrot.slane %v1833, 1
  %v1835 = vadd.f32 %v1833, %v1834
  %v1836 = vsel %vm1043, %v1835, -1.0
  %s1837 = scalar_lea.vmem %s9, 1
  %1838 = vst [vmem:[%s1837] sm:$0x1] %v1836
  // Predicated region
  $region34: #{mesh_conv_net_forward.3} parent=0 // pred_check
    _
  $region35: #{mesh_conv_net_forward.3} parent=0 // pred_check_branch
    %1840 = sbr.rel (0) target = $region37
  $region36: #{mesh_conv_net_forward.3} parent=0 // pred_region
    _
  $region37: #{mesh_conv_net_forward.3} parent=0 // pred_fallthru
    _
  // Predicated region
  $region38: #{mesh_conv_net_forward.3} parent=0 // pred_check
    _
  $region39: #{mesh_conv_net_forward.3} parent=0 // pred_check_branch
    %1842 = sbr.rel (0) target = $region41
  $region40: #{mesh_conv_net_forward.3} parent=0 // pred_region
    _
  $region41: #{mesh_conv_net_forward.3} parent=0 // pred_fallthru
    _
  // Predicated region
  $region42: #{mesh_conv_net_forward.3} parent=0 // pred_check
    _
  $region43: #{mesh_conv_net_forward.3} parent=0 // pred_check_branch
    %1844 = sbr.rel (0) target = $region45
  $region44: #{mesh_conv_net_forward.3} parent=0 // pred_region
    _
  $region45: #{mesh_conv_net_forward.3} parent=0 // pred_fallthru
    _
  // Predicated region
  $region46: #{mesh_conv_net_forward.3} parent=0 // pred_check
    _
  $region47: #{mesh_conv_net_forward.3} parent=0 // pred_check_branch
    %1846 = sbr.rel (0) target = $region49
  $region48: #{mesh_conv_net_forward.3} parent=0 // pred_region
    _
  $region49: #{mesh_conv_net_forward.3} parent=0 // pred_fallthru
    _

</llo_original>
